<compile_context>
chip_gen: v7x
topology: tpu7x:2x2x1
jax: 0.10.0
libtpu: 0.0.40
codegen_flags: <defaults>
</compile_context>

<pallas_src>
import functools

import jax
import jax.numpy as jnp
import numpy as np
from jax import lax
from jax.experimental import pallas as pl
from jax.experimental.pallas import tpu as pltpu


def _layernorm(h, w, b, eps):
    mu = jnp.mean(h, axis=-1, keepdims=True)
    var = jnp.mean((h - mu) ** 2, axis=-1, keepdims=True)
    return (h - mu) * lax.rsqrt(var + eps) * w + b


def opt_decoder_layer_kernel(
    x_ref,
    ln1w_ref, ln1b_ref,
    wqkv_ref, bqkv_ref,
    wo_ref, bo_ref,
    ln2w_ref, ln2b_ref,
    w1_ref, b1_ref, w2_ref, b2_ref,
    out_ref,
    attn_scratch,
    *, num_heads, eps, causal, compute_dtype,
):
    BB, T, D = x_ref.shape
    M = BB * T
    hd = D // num_heads
    cd = compute_dtype

    x = x_ref[...].reshape(M, D)                          # (M, D) f32 rows

    # ---- self-attn layer norm (pre-LN), f32 ----
    h = _layernorm(x, ln1w_ref[...], ln1b_ref[...], eps)

    # ---- fused QKV projection: one (M, D) x (D, 3D) matmul ----
    qkv = jnp.dot(h.astype(cd), wqkv_ref[...].astype(cd),
                  preferred_element_type=jnp.float32) + bqkv_ref[...]
    # scaling already folded into the Q columns on the host
    q = qkv[:, :D].reshape(BB, T, D)
    k = qkv[:, D:2 * D].reshape(BB, T, D)
    v = qkv[:, 2 * D:].reshape(BB, T, D)

    # ---- causal mask generated in-kernel (no O(T^2) HBM traffic) ----
    neg = jnp.finfo(jnp.float32).min
    if causal:
        row = lax.broadcasted_iota(jnp.int32, (T, T), 0)
        col = lax.broadcasted_iota(jnp.int32, (T, T), 1)
        allowed = (col <= row)[None, :, :]                # (1, T, T)

    # ---- attention, batched over the BB sequences in this row tile ----
    for hh in range(num_heads):                           # static loop over heads
        sl = slice(hh * hd, (hh + 1) * hd)
        qh = q[:, :, sl]                                  # (BB, T, hd)
        kh = k[:, :, sl]
        vh = v[:, :, sl]
        s = jnp.einsum("bqd,bkd->bqk", qh.astype(cd), kh.astype(cd),
                       preferred_element_type=jnp.float32)        # (BB, T, T)
        if causal:
            s = jnp.where(allowed, s, neg)
        # numerically stable softmax in f32; divide via reciprocal (EUP slot)
        m = jnp.max(s, axis=-1, keepdims=True)
        e = jnp.exp(s - m)
        l = jnp.sum(e, axis=-1, keepdims=True)
        p = e * pl.reciprocal(l, approx=False)
        o = jnp.einsum("bqk,bkd->bqd", p.astype(cd), vh.astype(cd),
                       preferred_element_type=jnp.float32)        # (BB, T, hd)
        attn_scratch[:, sl] = o.reshape(M, hd)            # write into scratch slab

    attn = jnp.dot(attn_scratch[...].astype(cd), wo_ref[...].astype(cd),
                   preferred_element_type=jnp.float32) + bo_ref[...]

    # residual (dropouts are identity at inference)
    x = x + attn

    # ---- final layer norm + FFN ----
    h2 = _layernorm(x, ln2w_ref[...], ln2b_ref[...], eps)
    f = jnp.dot(h2.astype(cd), w1_ref[...].astype(cd),
                preferred_element_type=jnp.float32) + b1_ref[...]
    f = jnp.maximum(f, 0.0)                               # ReLU
    f = jnp.dot(f.astype(cd), w2_ref[...].astype(cd),
                preferred_element_type=jnp.float32) + b2_ref[...]

    out_ref[...] = (x + f).reshape(BB, T, D).astype(out_ref.dtype)


def opt_decoder_layer(x, params, *, num_heads, eps=1e-5, causal=True,
                      seqs_per_block=None, target_rows=128,
                      compute_dtype=jnp.float32):
    B, T, D = x.shape
    F = params["w1"].shape[1]
    assert D % num_heads == 0
    hd = D // num_heads
    scaling = hd ** (-0.5)

    # Rearrange torch's fused qkv layout (per head: [q|k|v]) into contiguous
    # [Q | K | V] column blocks (head-major inside each), folding the attention
    # scaling into the Q columns/bias.
    w_r = params["w_qkv"].reshape(D, num_heads, 3, hd)
    b_r = params["b_qkv"].reshape(1, num_heads, 3, hd)
    w_qkv = jnp.concatenate(
        [w_r[:, :, 0, :].reshape(D, D) * scaling,
         w_r[:, :, 1, :].reshape(D, D),
         w_r[:, :, 2, :].reshape(D, D)], axis=1)          # (D, 3D)
    b_qkv = jnp.concatenate(
        [b_r[:, :, 0, :].reshape(1, D) * scaling,
         b_r[:, :, 1, :].reshape(1, D),
         b_r[:, :, 2, :].reshape(1, D)], axis=1)          # (1, 3D)

    # Row tiling: pack whole sequences into one block so each grid step feeds
    # the MXU with >= target_rows rows.
    if seqs_per_block is None:
        want = max(1, target_rows // T)
        seqs_per_block = 1
        for c in range(1, B + 1):
            if B % c == 0 and c <= want:
                seqs_per_block = c
    BB = seqs_per_block
    assert B % BB == 0, "batch must be divisible by seqs_per_block"
    grid = (B // BB,)

    kernel = functools.partial(
        opt_decoder_layer_kernel,
        num_heads=num_heads, eps=eps, causal=causal, compute_dtype=compute_dtype)

    def _rep(shape):
        n = len(shape)
        return pl.BlockSpec(shape, lambda b: (0,) * n)

    in_specs = [
        pl.BlockSpec((BB, T, D), lambda b: (b, 0, 0)),     # x (row tile)
        _rep((1, D)), _rep((1, D)),                        # ln1 w/b
        _rep((D, 3 * D)), _rep((1, 3 * D)),                # fused Wqkv / bqkv
        _rep((D, D)), _rep((1, D)),                        # Wo / bo
        _rep((1, D)), _rep((1, D)),                        # ln2 w/b
        _rep((D, F)), _rep((1, F)),                        # fc1
        _rep((F, D)), _rep((1, D)),                        # fc2
    ]

    # VMEM budget: weight blocks (constant index_map) + double-buffered x/out
    # blocks + attention scratch + intermediates, clamped to [32, 64] MiB.
    f32b = 4
    weight_bytes = f32b * (D * 3 * D + 3 * D + D * D + D + D * F + F + F * D + D + 4 * D)
    block_bytes = f32b * BB * T * D
    interm_bytes = f32b * BB * T * max(3 * D, F) * 6
    vmem_limit = int(min(max(2 * weight_bytes + 4 * block_bytes + interm_bytes
                             + (8 << 20), 32 << 20), 64 << 20))

    return pl.pallas_call(
        kernel,
        out_shape=jax.ShapeDtypeStruct((B, T, D), x.dtype),
        grid_spec=pltpu.PrefetchScalarGridSpec(
            num_scalar_prefetch=0,
            grid=grid,
            in_specs=in_specs,
            out_specs=pl.BlockSpec((BB, T, D), lambda b: (b, 0, 0)),
            scratch_shapes=[pltpu.VMEM((BB * T, D), jnp.float32)],
        ),
        compiler_params=pltpu.CompilerParams(
            dimension_semantics=("parallel",),
            vmem_limit_bytes=vmem_limit,
        ),
    )(
        x,
        params["ln1_w"], params["ln1_b"],
        w_qkv, b_qkv,
        params["wo"], params["bo"],
        params["ln2_w"], params["ln2_b"],
        params["w1"], params["b1"], params["w2"], params["b2"],
    )


def make_params(key, D, F, H):
    ks = jax.random.split(key, 8)
    return {
        # fused qkv weight, torch layout: per head the output cols are [q_h|k_h|v_h]
        "w_qkv": jax.random.normal(ks[0], (D, 3 * D), jnp.float32) * 0.02,
        "b_qkv": jax.random.normal(ks[1], (1, 3 * D), jnp.float32) * 0.02,
        "wo": jax.random.normal(ks[2], (D, D), jnp.float32) * 0.02,
        "bo": jax.random.normal(ks[3], (1, D), jnp.float32) * 0.02,
        "w1": jax.random.normal(ks[4], (D, F), jnp.float32) * 0.02,
        "b1": jax.random.normal(ks[5], (1, F), jnp.float32) * 0.02,
        "w2": jax.random.normal(ks[6], (F, D), jnp.float32) * 0.02,
        "b2": jax.random.normal(ks[7], (1, D), jnp.float32) * 0.02,
        "ln1_w": jnp.ones((1, D), jnp.float32),
        "ln1_b": jnp.zeros((1, D), jnp.float32),
        "ln2_w": jnp.ones((1, D), jnp.float32),
        "ln2_b": jnp.zeros((1, D), jnp.float32),
    }


def reference(x, p, *, num_heads, eps=1e-5, causal=True):
    """Pure-JAX reference mirroring the PyTorch forward (inference, pre-LN,
    causal additive attention_mask as in the OPT decoder)."""
    B, T, D = x.shape
    hd = D // num_heads
    scaling = hd ** (-0.5)

    def ln(h, w, b):
        mu = jnp.mean(h, -1, keepdims=True)
        var = jnp.mean((h - mu) ** 2, -1, keepdims=True)
        return (h - mu) / jnp.sqrt(var + eps) * w + b

    with jax.default_matmul_precision("highest"):
        residual = x
        h = ln(x, p["ln1_w"], p["ln1_b"])
        qkv = h @ p["w_qkv"] + p["b_qkv"]                        # (B, T, 3D)
        qkv = qkv.reshape(B, T, num_heads, 3 * hd).transpose(0, 2, 1, 3)
        q, k, v = jnp.split(qkv, 3, axis=-1)                     # (B, H, T, hd)
        q = q * scaling
        s = jnp.einsum("bhqd,bhkd->bhqk", q, k)
        if causal:
            neg = jnp.finfo(jnp.float32).min
            mask = jnp.where(jnp.tril(jnp.ones((T, T), jnp.bool_)), 0.0, neg)
            s = jnp.maximum(s + mask, neg)
        a = jax.nn.softmax(s, axis=-1)
        o = jnp.einsum("bhqk,bhkd->bhqd", a, v)
        o = o.transpose(0, 2, 1, 3).reshape(B, T, D)
        o = o @ p["wo"] + p["bo"]
        x = residual + o
        residual = x
        h = ln(x, p["ln2_w"], p["ln2_b"])
        f = jnp.maximum(h @ p["w1"] + p["b1"], 0.0)
        f = f @ p["w2"] + p["b2"]
        return residual + f


if __name__ == "__main__":
    # small OPT-ish shapes: 4 sequences x 64 tokens, hidden 128, ffn 512, 4 heads
    B, T, D, F, H = 4, 64, 128, 512, 4

    key = jax.random.PRNGKey(0)
    kx, kp = jax.random.split(key)
    x = jax.random.normal(kx, (B, T, D), jnp.float32)
    params = make_params(kp, D, F, H)

    out = opt_decoder_layer(x, params, num_heads=H)   # 2 seqs (128 rows) / grid step
    out = jax.block_until_ready(out)

    ref = reference(x, params, num_heads=H)
    np.testing.assert_allclose(np.asarray(out), np.asarray(ref), rtol=1e-4, atol=1e-4)

    print("KERNEL_OK")
</pallas_src>

<mosaic_0001>
module attributes {stable_mosaic.version = 11 : i64} {
  func.func @opt_decoder_layer_kernel(%arg0: i32, %arg1: memref<2x64x128xf32, #tpu.memory_space<vmem>>, %arg2: memref<1x128xf32, #tpu.memory_space<vmem>>, %arg3: memref<1x128xf32, #tpu.memory_space<vmem>>, %arg4: memref<128x384xf32, #tpu.memory_space<vmem>>, %arg5: memref<1x384xf32, #tpu.memory_space<vmem>>, %arg6: memref<128x128xf32, #tpu.memory_space<vmem>>, %arg7: memref<1x128xf32, #tpu.memory_space<vmem>>, %arg8: memref<1x128xf32, #tpu.memory_space<vmem>>, %arg9: memref<1x128xf32, #tpu.memory_space<vmem>>, %arg10: memref<128x512xf32, #tpu.memory_space<vmem>>, %arg11: memref<1x512xf32, #tpu.memory_space<vmem>>, %arg12: memref<512x128xf32, #tpu.memory_space<vmem>>, %arg13: memref<1x128xf32, #tpu.memory_space<vmem>>, %arg14: memref<2x64x128xf32, #tpu.memory_space<vmem>>, %arg15: memref<128x128xf32, #tpu.memory_space<vmem>>) attributes {dimension_semantics = [#tpu.dimension_semantics<parallel>], iteration_bounds = array<i64: 2>, scalar_prefetch = 0 : i64, scratch_operands = 1 : i64, tpu.core_type = #tpu.core_type<tc>, window_params = [{transform_indices = @transform_0, window_bounds = array<i64: 2, 64, 128>}, {pipeline_mode = #tpu.pipeline_mode<synchronous>, transform_indices = @transform_1, window_bounds = array<i64: 1, 128>}, {pipeline_mode = #tpu.pipeline_mode<synchronous>, transform_indices = @transform_2, window_bounds = array<i64: 1, 128>}, {pipeline_mode = #tpu.pipeline_mode<synchronous>, transform_indices = @transform_3, window_bounds = array<i64: 128, 384>}, {pipeline_mode = #tpu.pipeline_mode<synchronous>, transform_indices = @transform_4, window_bounds = array<i64: 1, 384>}, {pipeline_mode = #tpu.pipeline_mode<synchronous>, transform_indices = @transform_5, window_bounds = array<i64: 128, 128>}, {pipeline_mode = #tpu.pipeline_mode<synchronous>, transform_indices = @transform_6, window_bounds = array<i64: 1, 128>}, {pipeline_mode = #tpu.pipeline_mode<synchronous>, transform_indices = @transform_7, window_bounds = array<i64: 1, 128>}, {pipeline_mode = #tpu.pipeline_mode<synchronous>, transform_indices = @transform_8, window_bounds = array<i64: 1, 128>}, {pipeline_mode = #tpu.pipeline_mode<synchronous>, transform_indices = @transform_9, window_bounds = array<i64: 128, 512>}, {pipeline_mode = #tpu.pipeline_mode<synchronous>, transform_indices = @transform_10, window_bounds = array<i64: 1, 512>}, {pipeline_mode = #tpu.pipeline_mode<synchronous>, transform_indices = @transform_11, window_bounds = array<i64: 512, 128>}, {pipeline_mode = #tpu.pipeline_mode<synchronous>, transform_indices = @transform_12, window_bounds = array<i64: 1, 128>}, {transform_indices = @transform_13, window_bounds = array<i64: 2, 64, 128>}]} {
    %c0 = arith.constant 0 : index
    %c0_0 = arith.constant 0 : index
    %c0_1 = arith.constant 0 : index
    %0 = vector.load %arg1[%c0, %c0_0, %c0_1] : memref<2x64x128xf32, #tpu.memory_space<vmem>>, vector<2x64x128xf32>
    %1 = vector.shape_cast %0 : vector<2x64x128xf32> to vector<128x128xf32>
    %c0_2 = arith.constant 0 : index
    %c0_3 = arith.constant 0 : index
    %2 = vector.load %arg2[%c0_2, %c0_3] : memref<1x128xf32, #tpu.memory_space<vmem>>, vector<1x128xf32>
    %c0_4 = arith.constant 0 : index
    %c0_5 = arith.constant 0 : index
    %3 = vector.load %arg3[%c0_4, %c0_5] : memref<1x128xf32, #tpu.memory_space<vmem>>, vector<1x128xf32>
    %cst = arith.constant dense<0.000000e+00> : vector<128xf32>
    %4 = vector.multi_reduction <add>, %1, %cst [1] : vector<128x128xf32> to vector<128xf32>
    %5 = vector.shape_cast %4 : vector<128xf32> to vector<128x1xf32>
    %cst_6 = arith.constant 1.280000e+02 : f32
    %6 = vector.broadcast %cst_6 : f32 to vector<128x1xf32>
    %7 = arith.divf %5, %6 : vector<128x1xf32>
    %8 = vector.broadcast %7 : vector<128x1xf32> to vector<128x128xf32>
    %9 = arith.subf %1, %8 : vector<128x128xf32>
    %10 = arith.mulf %9, %9 : vector<128x128xf32>
    %cst_7 = arith.constant dense<0.000000e+00> : vector<128xf32>
    %11 = vector.multi_reduction <add>, %10, %cst_7 [1] : vector<128x128xf32> to vector<128xf32>
    %12 = vector.shape_cast %11 : vector<128xf32> to vector<128x1xf32>
    %cst_8 = arith.constant 1.280000e+02 : f32
    %13 = vector.broadcast %cst_8 : f32 to vector<128x1xf32>
    %14 = arith.divf %12, %13 : vector<128x1xf32>
    %15 = vector.broadcast %7 : vector<128x1xf32> to vector<128x128xf32>
    %16 = arith.subf %1, %15 : vector<128x128xf32>
    %cst_9 = arith.constant 9.99999974E-6 : f32
    %17 = vector.broadcast %cst_9 : f32 to vector<128x1xf32>
    %18 = arith.addf %14, %17 : vector<128x1xf32>
    %19 = math.rsqrt %18 : vector<128x1xf32>
    %20 = vector.broadcast %19 : vector<128x1xf32> to vector<128x128xf32>
    %21 = arith.mulf %16, %20 : vector<128x128xf32>
    %22 = vector.broadcast %2 : vector<1x128xf32> to vector<128x128xf32>
    %23 = arith.mulf %21, %22 : vector<128x128xf32>
    %24 = vector.broadcast %3 : vector<1x128xf32> to vector<128x128xf32>
    %25 = arith.addf %23, %24 : vector<128x128xf32>
    %c0_10 = arith.constant 0 : index
    %c0_11 = arith.constant 0 : index
    %26 = vector.load %arg4[%c0_10, %c0_11] : memref<128x384xf32, #tpu.memory_space<vmem>>, vector<128x384xf32>
    %cst_12 = arith.constant dense<0.000000e+00> : vector<128x384xf32>
    %27 = tpu.matmul %25, %26, %cst_12 {dimension_numbers = #tpu.dot_dimension_numbers<[1], [0], [0], [1], [0, 0, 1, 1], [], []>} : vector<128x128xf32>, vector<128x384xf32>, vector<128x384xf32> -> vector<128x384xf32>
    %c0_13 = arith.constant 0 : index
    %c0_14 = arith.constant 0 : index
    %28 = vector.load %arg5[%c0_13, %c0_14] : memref<1x384xf32, #tpu.memory_space<vmem>>, vector<1x384xf32>
    %29 = vector.broadcast %28 : vector<1x384xf32> to vector<128x384xf32>
    %30 = arith.addf %27, %29 : vector<128x384xf32>
    %31 = vector.extract_strided_slice %30 {offsets = [0, 0], sizes = [128, 128], strides = [1, 1]} : vector<128x384xf32> to vector<128x128xf32>
    %32 = vector.shape_cast %31 : vector<128x128xf32> to vector<2x64x128xf32>
    %33 = vector.extract_strided_slice %30 {offsets = [0, 128], sizes = [128, 128], strides = [1, 1]} : vector<128x384xf32> to vector<128x128xf32>
    %34 = vector.shape_cast %33 : vector<128x128xf32> to vector<2x64x128xf32>
    %35 = vector.extract_strided_slice %30 {offsets = [0, 256], sizes = [128, 128], strides = [1, 1]} : vector<128x384xf32> to vector<128x128xf32>
    %36 = vector.shape_cast %35 : vector<128x128xf32> to vector<2x64x128xf32>
    %37 = tpu.iota {dimensions = array<i32: 0>} : vector<64x64xi32>
    %38 = tpu.iota {dimensions = array<i32: 1>} : vector<64x64xi32>
    %39 = arith.cmpi sle, %38, %37 : vector<64x64xi32>
    %40 = vector.shape_cast %39 : vector<64x64xi1> to vector<1x64x64xi1>
    %41 = vector.extract_strided_slice %32 {offsets = [0, 0, 0], sizes = [2, 64, 32], strides = [1, 1, 1]} : vector<2x64x128xf32> to vector<2x64x32xf32>
    %42 = vector.extract_strided_slice %34 {offsets = [0, 0, 0], sizes = [2, 64, 32], strides = [1, 1, 1]} : vector<2x64x128xf32> to vector<2x64x32xf32>
    %43 = vector.extract_strided_slice %36 {offsets = [0, 0, 0], sizes = [2, 64, 32], strides = [1, 1, 1]} : vector<2x64x128xf32> to vector<2x64x32xf32>
    "tpu.trace_start"() <{level = 10 : i32, message = "bqd,bkd->bqk"}> : () -> ()
    %cst_15 = arith.constant dense<0.000000e+00> : vector<2x64x64xf32>
    %44 = tpu.matmul %41, %42, %cst_15 {dimension_numbers = #tpu.dot_dimension_numbers<[2], [2], [1], [1], [0, 0, 0, 1, 1, 1], [0], [0]>} : vector<2x64x32xf32>, vector<2x64x32xf32>, vector<2x64x64xf32> -> vector<2x64x64xf32>
    %cst_16 = arith.constant -3.40282347E+38 : f32
    "tpu.trace_stop"() : () -> ()
    %45 = vector.shape_cast %40 : vector<1x64x64xi1> to vector<1x64x64xi1>
    %46 = vector.broadcast %45 : vector<1x64x64xi1> to vector<2x64x64xi1>
    %47 = vector.broadcast %cst_16 : f32 to vector<2x64x64xf32>
    %48 = arith.select %46, %44, %47 : vector<2x64x64xi1>, vector<2x64x64xf32>
    %cst_17 = arith.constant dense<0xFF800000> : vector<2x64xf32>
    %49 = vector.multi_reduction <maximumf>, %48, %cst_17 [2] : vector<2x64x64xf32> to vector<2x64xf32>
    %50 = vector.shape_cast %49 : vector<2x64xf32> to vector<2x64x1xf32>
    %51 = vector.broadcast %50 : vector<2x64x1xf32> to vector<2x64x64xf32>
    %52 = arith.subf %48, %51 : vector<2x64x64xf32>
    %53 = math.exp %52 : vector<2x64x64xf32>
    %cst_18 = arith.constant dense<0.000000e+00> : vector<2x64xf32>
    %54 = vector.multi_reduction <add>, %53, %cst_18 [2] : vector<2x64x64xf32> to vector<2x64xf32>
    %55 = vector.shape_cast %54 : vector<2x64xf32> to vector<2x64x1xf32>
    %56 = tpu.reciprocal %55 : vector<2x64x1xf32> -> vector<2x64x1xf32>
    %57 = vector.broadcast %56 : vector<2x64x1xf32> to vector<2x64x64xf32>
    %58 = arith.mulf %53, %57 : vector<2x64x64xf32>
    "tpu.trace_start"() <{level = 10 : i32, message = "bqk,bkd->bqd"}> : () -> ()
    %cst_19 = arith.constant dense<0.000000e+00> : vector<2x64x32xf32>
    %59 = tpu.matmul %58, %43, %cst_19 {dimension_numbers = #tpu.dot_dimension_numbers<[2], [1], [1], [2], [0, 0, 0, 1, 1, 2], [0], [0]>} : vector<2x64x64xf32>, vector<2x64x32xf32>, vector<2x64x32xf32> -> vector<2x64x32xf32>
    "tpu.trace_stop"() : () -> ()
    %60 = vector.shape_cast %59 : vector<2x64x32xf32> to vector<128x32xf32>
    %c0_20 = arith.constant 0 : index
    %c0_21 = arith.constant 0 : index
    %61 = vector.load %arg15[%c0_20, %c0_21] : memref<128x128xf32, #tpu.memory_space<vmem>>, vector<128x32xf32>
    tpu.vector_store %arg15[%c0_20, %c0_21], %60 {strides = array<i32>} : memref<128x128xf32, #tpu.memory_space<vmem>>, vector<128x32xf32>,
    %62 = vector.extract_strided_slice %32 {offsets = [0, 0, 32], sizes = [2, 64, 32], strides = [1, 1, 1]} : vector<2x64x128xf32> to vector<2x64x32xf32>
    %63 = vector.extract_strided_slice %34 {offsets = [0, 0, 32], sizes = [2, 64, 32], strides = [1, 1, 1]} : vector<2x64x128xf32> to vector<2x64x32xf32>
    %64 = vector.extract_strided_slice %36 {offsets = [0, 0, 32], sizes = [2, 64, 32], strides = [1, 1, 1]} : vector<2x64x128xf32> to vector<2x64x32xf32>
    "tpu.trace_start"() <{level = 10 : i32, message = "bqd,bkd->bqk"}> : () -> ()
    %cst_22 = arith.constant dense<0.000000e+00> : vector<2x64x64xf32>
    %65 = tpu.matmul %62, %63, %cst_22 {dimension_numbers = #tpu.dot_dimension_numbers<[2], [2], [1], [1], [0, 0, 0, 1, 1, 1], [0], [0]>} : vector<2x64x32xf32>, vector<2x64x32xf32>, vector<2x64x64xf32> -> vector<2x64x64xf32>
    %cst_23 = arith.constant -3.40282347E+38 : f32
    "tpu.trace_stop"() : () -> ()
    %66 = vector.shape_cast %40 : vector<1x64x64xi1> to vector<1x64x64xi1>
    %67 = vector.broadcast %66 : vector<1x64x64xi1> to vector<2x64x64xi1>
    %68 = vector.broadcast %cst_23 : f32 to vector<2x64x64xf32>
    %69 = arith.select %67, %65, %68 : vector<2x64x64xi1>, vector<2x64x64xf32>
    %cst_24 = arith.constant dense<0xFF800000> : vector<2x64xf32>
    %70 = vector.multi_reduction <maximumf>, %69, %cst_24 [2] : vector<2x64x64xf32> to vector<2x64xf32>
    %71 = vector.shape_cast %70 : vector<2x64xf32> to vector<2x64x1xf32>
    %72 = vector.broadcast %71 : vector<2x64x1xf32> to vector<2x64x64xf32>
    %73 = arith.subf %69, %72 : vector<2x64x64xf32>
    %74 = math.exp %73 : vector<2x64x64xf32>
    %cst_25 = arith.constant dense<0.000000e+00> : vector<2x64xf32>
    %75 = vector.multi_reduction <add>, %74, %cst_25 [2] : vector<2x64x64xf32> to vector<2x64xf32>
    %76 = vector.shape_cast %75 : vector<2x64xf32> to vector<2x64x1xf32>
    %77 = tpu.reciprocal %76 : vector<2x64x1xf32> -> vector<2x64x1xf32>
    %78 = vector.broadcast %77 : vector<2x64x1xf32> to vector<2x64x64xf32>
    %79 = arith.mulf %74, %78 : vector<2x64x64xf32>
    "tpu.trace_start"() <{level = 10 : i32, message = "bqk,bkd->bqd"}> : () -> ()
    %cst_26 = arith.constant dense<0.000000e+00> : vector<2x64x32xf32>
    %80 = tpu.matmul %79, %64, %cst_26 {dimension_numbers = #tpu.dot_dimension_numbers<[2], [1], [1], [2], [0, 0, 0, 1, 1, 2], [0], [0]>} : vector<2x64x64xf32>, vector<2x64x32xf32>, vector<2x64x32xf32> -> vector<2x64x32xf32>
    "tpu.trace_stop"() : () -> ()
    %81 = vector.shape_cast %80 : vector<2x64x32xf32> to vector<128x32xf32>
    %c0_27 = arith.constant 0 : index
    %c32 = arith.constant 32 : index
    %82 = vector.load %arg15[%c0_27, %c32] : memref<128x128xf32, #tpu.memory_space<vmem>>, vector<128x32xf32>
    tpu.vector_store %arg15[%c0_27, %c32], %81 {strides = array<i32>} : memref<128x128xf32, #tpu.memory_space<vmem>>, vector<128x32xf32>,
    %83 = vector.extract_strided_slice %32 {offsets = [0, 0, 64], sizes = [2, 64, 32], strides = [1, 1, 1]} : vector<2x64x128xf32> to vector<2x64x32xf32>
    %84 = vector.extract_strided_slice %34 {offsets = [0, 0, 64], sizes = [2, 64, 32], strides = [1, 1, 1]} : vector<2x64x128xf32> to vector<2x64x32xf32>
    %85 = vector.extract_strided_slice %36 {offsets = [0, 0, 64], sizes = [2, 64, 32], strides = [1, 1, 1]} : vector<2x64x128xf32> to vector<2x64x32xf32>
    "tpu.trace_start"() <{level = 10 : i32, message = "bqd,bkd->bqk"}> : () -> ()
    %cst_28 = arith.constant dense<0.000000e+00> : vector<2x64x64xf32>
    %86 = tpu.matmul %83, %84, %cst_28 {dimension_numbers = #tpu.dot_dimension_numbers<[2], [2], [1], [1], [0, 0, 0, 1, 1, 1], [0], [0]>} : vector<2x64x32xf32>, vector<2x64x32xf32>, vector<2x64x64xf32> -> vector<2x64x64xf32>
    %cst_29 = arith.constant -3.40282347E+38 : f32
    "tpu.trace_stop"() : () -> ()
    %87 = vector.shape_cast %40 : vector<1x64x64xi1> to vector<1x64x64xi1>
    %88 = vector.broadcast %87 : vector<1x64x64xi1> to vector<2x64x64xi1>
    %89 = vector.broadcast %cst_29 : f32 to vector<2x64x64xf32>
    %90 = arith.select %88, %86, %89 : vector<2x64x64xi1>, vector<2x64x64xf32>
    %cst_30 = arith.constant dense<0xFF800000> : vector<2x64xf32>
    %91 = vector.multi_reduction <maximumf>, %90, %cst_30 [2] : vector<2x64x64xf32> to vector<2x64xf32>
    %92 = vector.shape_cast %91 : vector<2x64xf32> to vector<2x64x1xf32>
    %93 = vector.broadcast %92 : vector<2x64x1xf32> to vector<2x64x64xf32>
    %94 = arith.subf %90, %93 : vector<2x64x64xf32>
    %95 = math.exp %94 : vector<2x64x64xf32>
    %cst_31 = arith.constant dense<0.000000e+00> : vector<2x64xf32>
    %96 = vector.multi_reduction <add>, %95, %cst_31 [2] : vector<2x64x64xf32> to vector<2x64xf32>
    %97 = vector.shape_cast %96 : vector<2x64xf32> to vector<2x64x1xf32>
    %98 = tpu.reciprocal %97 : vector<2x64x1xf32> -> vector<2x64x1xf32>
    %99 = vector.broadcast %98 : vector<2x64x1xf32> to vector<2x64x64xf32>
    %100 = arith.mulf %95, %99 : vector<2x64x64xf32>
    "tpu.trace_start"() <{level = 10 : i32, message = "bqk,bkd->bqd"}> : () -> ()
    %cst_32 = arith.constant dense<0.000000e+00> : vector<2x64x32xf32>
    %101 = tpu.matmul %100, %85, %cst_32 {dimension_numbers = #tpu.dot_dimension_numbers<[2], [1], [1], [2], [0, 0, 0, 1, 1, 2], [0], [0]>} : vector<2x64x64xf32>, vector<2x64x32xf32>, vector<2x64x32xf32> -> vector<2x64x32xf32>
    "tpu.trace_stop"() : () -> ()
    %102 = vector.shape_cast %101 : vector<2x64x32xf32> to vector<128x32xf32>
    %c0_33 = arith.constant 0 : index
    %c64 = arith.constant 64 : index
    %103 = vector.load %arg15[%c0_33, %c64] : memref<128x128xf32, #tpu.memory_space<vmem>>, vector<128x32xf32>
    tpu.vector_store %arg15[%c0_33, %c64], %102 {strides = array<i32>} : memref<128x128xf32, #tpu.memory_space<vmem>>, vector<128x32xf32>,
    %104 = vector.extract_strided_slice %32 {offsets = [0, 0, 96], sizes = [2, 64, 32], strides = [1, 1, 1]} : vector<2x64x128xf32> to vector<2x64x32xf32>
    %105 = vector.extract_strided_slice %34 {offsets = [0, 0, 96], sizes = [2, 64, 32], strides = [1, 1, 1]} : vector<2x64x128xf32> to vector<2x64x32xf32>
    %106 = vector.extract_strided_slice %36 {offsets = [0, 0, 96], sizes = [2, 64, 32], strides = [1, 1, 1]} : vector<2x64x128xf32> to vector<2x64x32xf32>
    "tpu.trace_start"() <{level = 10 : i32, message = "bqd,bkd->bqk"}> : () -> ()
    %cst_34 = arith.constant dense<0.000000e+00> : vector<2x64x64xf32>
    %107 = tpu.matmul %104, %105, %cst_34 {dimension_numbers = #tpu.dot_dimension_numbers<[2], [2], [1], [1], [0, 0, 0, 1, 1, 1], [0], [0]>} : vector<2x64x32xf32>, vector<2x64x32xf32>, vector<2x64x64xf32> -> vector<2x64x64xf32>
    %cst_35 = arith.constant -3.40282347E+38 : f32
    "tpu.trace_stop"() : () -> ()
    %108 = vector.shape_cast %40 : vector<1x64x64xi1> to vector<1x64x64xi1>
    %109 = vector.broadcast %108 : vector<1x64x64xi1> to vector<2x64x64xi1>
    %110 = vector.broadcast %cst_35 : f32 to vector<2x64x64xf32>
    %111 = arith.select %109, %107, %110 : vector<2x64x64xi1>, vector<2x64x64xf32>
    %cst_36 = arith.constant dense<0xFF800000> : vector<2x64xf32>
    %112 = vector.multi_reduction <maximumf>, %111, %cst_36 [2] : vector<2x64x64xf32> to vector<2x64xf32>
    %113 = vector.shape_cast %112 : vector<2x64xf32> to vector<2x64x1xf32>
    %114 = vector.broadcast %113 : vector<2x64x1xf32> to vector<2x64x64xf32>
    %115 = arith.subf %111, %114 : vector<2x64x64xf32>
    %116 = math.exp %115 : vector<2x64x64xf32>
    %cst_37 = arith.constant dense<0.000000e+00> : vector<2x64xf32>
    %117 = vector.multi_reduction <add>, %116, %cst_37 [2] : vector<2x64x64xf32> to vector<2x64xf32>
    %118 = vector.shape_cast %117 : vector<2x64xf32> to vector<2x64x1xf32>
    %119 = tpu.reciprocal %118 : vector<2x64x1xf32> -> vector<2x64x1xf32>
    %120 = vector.broadcast %119 : vector<2x64x1xf32> to vector<2x64x64xf32>
    %121 = arith.mulf %116, %120 : vector<2x64x64xf32>
    "tpu.trace_start"() <{level = 10 : i32, message = "bqk,bkd->bqd"}> : () -> ()
    %cst_38 = arith.constant dense<0.000000e+00> : vector<2x64x32xf32>
    %122 = tpu.matmul %121, %106, %cst_38 {dimension_numbers = #tpu.dot_dimension_numbers<[2], [1], [1], [2], [0, 0, 0, 1, 1, 2], [0], [0]>} : vector<2x64x64xf32>, vector<2x64x32xf32>, vector<2x64x32xf32> -> vector<2x64x32xf32>
    "tpu.trace_stop"() : () -> ()
    %123 = vector.shape_cast %122 : vector<2x64x32xf32> to vector<128x32xf32>
    %c0_39 = arith.constant 0 : index
    %c96 = arith.constant 96 : index
    %124 = vector.load %arg15[%c0_39, %c96] : memref<128x128xf32, #tpu.memory_space<vmem>>, vector<128x32xf32>
    tpu.vector_store %arg15[%c0_39, %c96], %123 {strides = array<i32>} : memref<128x128xf32, #tpu.memory_space<vmem>>, vector<128x32xf32>,
    %c0_40 = arith.constant 0 : index
    %c0_41 = arith.constant 0 : index
    %125 = vector.load %arg15[%c0_40, %c0_41] : memref<128x128xf32, #tpu.memory_space<vmem>>, vector<128x128xf32>
    %c0_42 = arith.constant 0 : index
    %c0_43 = arith.constant 0 : index
    %126 = vector.load %arg6[%c0_42, %c0_43] : memref<128x128xf32, #tpu.memory_space<vmem>>, vector<128x128xf32>
    %cst_44 = arith.constant dense<0.000000e+00> : vector<128x128xf32>
    %127 = tpu.matmul %125, %126, %cst_44 {dimension_numbers = #tpu.dot_dimension_numbers<[1], [0], [0], [1], [0, 0, 1, 1], [], []>} : vector<128x128xf32>, vector<128x128xf32>, vector<128x128xf32> -> vector<128x128xf32>
    %c0_45 = arith.constant 0 : index
    %c0_46 = arith.constant 0 : index
    %128 = vector.load %arg7[%c0_45, %c0_46] : memref<1x128xf32, #tpu.memory_space<vmem>>, vector<1x128xf32>
    %129 = vector.broadcast %128 : vector<1x128xf32> to vector<128x128xf32>
    %130 = arith.addf %127, %129 : vector<128x128xf32>
    %131 = arith.addf %1, %130 : vector<128x128xf32>
    %c0_47 = arith.constant 0 : index
    %c0_48 = arith.constant 0 : index
    %132 = vector.load %arg8[%c0_47, %c0_48] : memref<1x128xf32, #tpu.memory_space<vmem>>, vector<1x128xf32>
    %c0_49 = arith.constant 0 : index
    %c0_50 = arith.constant 0 : index
    %133 = vector.load %arg9[%c0_49, %c0_50] : memref<1x128xf32, #tpu.memory_space<vmem>>, vector<1x128xf32>
    %cst_51 = arith.constant dense<0.000000e+00> : vector<128xf32>
    %134 = vector.multi_reduction <add>, %131, %cst_51 [1] : vector<128x128xf32> to vector<128xf32>
    %135 = vector.shape_cast %134 : vector<128xf32> to vector<128x1xf32>
    %cst_52 = arith.constant 1.280000e+02 : f32
    %136 = vector.broadcast %cst_52 : f32 to vector<128x1xf32>
    %137 = arith.divf %135, %136 : vector<128x1xf32>
    %138 = vector.broadcast %137 : vector<128x1xf32> to vector<128x128xf32>
    %139 = arith.subf %131, %138 : vector<128x128xf32>
    %140 = arith.mulf %139, %139 : vector<128x128xf32>
    %cst_53 = arith.constant dense<0.000000e+00> : vector<128xf32>
    %141 = vector.multi_reduction <add>, %140, %cst_53 [1] : vector<128x128xf32> to vector<128xf32>
    %142 = vector.shape_cast %141 : vector<128xf32> to vector<128x1xf32>
    %cst_54 = arith.constant 1.280000e+02 : f32
    %143 = vector.broadcast %cst_54 : f32 to vector<128x1xf32>
    %144 = arith.divf %142, %143 : vector<128x1xf32>
    %145 = vector.broadcast %137 : vector<128x1xf32> to vector<128x128xf32>
    %146 = arith.subf %131, %145 : vector<128x128xf32>
    %cst_55 = arith.constant 9.99999974E-6 : f32
    %147 = vector.broadcast %cst_55 : f32 to vector<128x1xf32>
    %148 = arith.addf %144, %147 : vector<128x1xf32>
    %149 = math.rsqrt %148 : vector<128x1xf32>
    %150 = vector.broadcast %149 : vector<128x1xf32> to vector<128x128xf32>
    %151 = arith.mulf %146, %150 : vector<128x128xf32>
    %152 = vector.broadcast %132 : vector<1x128xf32> to vector<128x128xf32>
    %153 = arith.mulf %151, %152 : vector<128x128xf32>
    %154 = vector.broadcast %133 : vector<1x128xf32> to vector<128x128xf32>
    %155 = arith.addf %153, %154 : vector<128x128xf32>
    %c0_56 = arith.constant 0 : index
    %c0_57 = arith.constant 0 : index
    %156 = vector.load %arg10[%c0_56, %c0_57] : memref<128x512xf32, #tpu.memory_space<vmem>>, vector<128x512xf32>
    %cst_58 = arith.constant dense<0.000000e+00> : vector<128x512xf32>
    %157 = tpu.matmul %155, %156, %cst_58 {dimension_numbers = #tpu.dot_dimension_numbers<[1], [0], [0], [1], [0, 0, 1, 1], [], []>} : vector<128x128xf32>, vector<128x512xf32>, vector<128x512xf32> -> vector<128x512xf32>
    %c0_59 = arith.constant 0 : index
    %c0_60 = arith.constant 0 : index
    %158 = vector.load %arg11[%c0_59, %c0_60] : memref<1x512xf32, #tpu.memory_space<vmem>>, vector<1x512xf32>
    %159 = vector.broadcast %158 : vector<1x512xf32> to vector<128x512xf32>
    %160 = arith.addf %157, %159 : vector<128x512xf32>
    %cst_61 = arith.constant 0.000000e+00 : f32
    %161 = vector.broadcast %cst_61 : f32 to vector<128x512xf32>
    %162 = arith.maximumf %160, %161 : vector<128x512xf32>
    %c0_62 = arith.constant 0 : index
    %c0_63 = arith.constant 0 : index
    %163 = vector.load %arg12[%c0_62, %c0_63] : memref<512x128xf32, #tpu.memory_space<vmem>>, vector<512x128xf32>
    %cst_64 = arith.constant dense<0.000000e+00> : vector<128x128xf32>
    %164 = tpu.matmul %162, %163, %cst_64 {dimension_numbers = #tpu.dot_dimension_numbers<[1], [0], [0], [1], [0, 0, 1, 1], [], []>} : vector<128x512xf32>, vector<512x128xf32>, vector<128x128xf32> -> vector<128x128xf32>
    %c0_65 = arith.constant 0 : index
    %c0_66 = arith.constant 0 : index
    %165 = vector.load %arg13[%c0_65, %c0_66] : memref<1x128xf32, #tpu.memory_space<vmem>>, vector<1x128xf32>
    %166 = vector.broadcast %165 : vector<1x128xf32> to vector<128x128xf32>
    %167 = arith.addf %164, %166 : vector<128x128xf32>
    %168 = arith.addf %131, %167 : vector<128x128xf32>
    %169 = vector.shape_cast %168 : vector<128x128xf32> to vector<2x64x128xf32>
    %c0_67 = arith.constant 0 : index
    %c0_68 = arith.constant 0 : index
    %c0_69 = arith.constant 0 : index
    %170 = vector.load %arg14[%c0_67, %c0_68, %c0_69] : memref<2x64x128xf32, #tpu.memory_space<vmem>>, vector<2x64x128xf32>
    tpu.vector_store %arg14[%c0_67, %c0_68, %c0_69], %169 {strides = array<i32>} : memref<2x64x128xf32, #tpu.memory_space<vmem>>, vector<2x64x128xf32>,
    return
  }
  func.func @transform_0(%arg0: i32) -> (i32, i32, i32) {
    %c0_i32 = arith.constant 0 : i32
    %c0_i32_0 = arith.constant 0 : i32
    %c0_i32_1 = arith.constant 0 : i32
    return %arg0, %c0_i32, %c0_i32_0 : i32, i32, i32
  }
  func.func @transform_1(%arg0: i32) -> (i32, i32) {
    %c0_i32 = arith.constant 0 : i32
    %c0_i32_0 = arith.constant 0 : i32
    %c0_i32_1 = arith.constant 0 : i32
    return %c0_i32, %c0_i32_0 : i32, i32
  }
  func.func @transform_2(%arg0: i32) -> (i32, i32) {
    %c0_i32 = arith.constant 0 : i32
    %c0_i32_0 = arith.constant 0 : i32
    %c0_i32_1 = arith.constant 0 : i32
    return %c0_i32, %c0_i32_0 : i32, i32
  }
  func.func @transform_3(%arg0: i32) -> (i32, i32) {
    %c0_i32 = arith.constant 0 : i32
    %c0_i32_0 = arith.constant 0 : i32
    %c0_i32_1 = arith.constant 0 : i32
    return %c0_i32, %c0_i32_0 : i32, i32
  }
  func.func @transform_4(%arg0: i32) -> (i32, i32) {
    %c0_i32 = arith.constant 0 : i32
    %c0_i32_0 = arith.constant 0 : i32
    %c0_i32_1 = arith.constant 0 : i32
    return %c0_i32, %c0_i32_0 : i32, i32
  }
  func.func @transform_5(%arg0: i32) -> (i32, i32) {
    %c0_i32 = arith.constant 0 : i32
    %c0_i32_0 = arith.constant 0 : i32
    %c0_i32_1 = arith.constant 0 : i32
    return %c0_i32, %c0_i32_0 : i32, i32
  }
  func.func @transform_6(%arg0: i32) -> (i32, i32) {
    %c0_i32 = arith.constant 0 : i32
    %c0_i32_0 = arith.constant 0 : i32
    %c0_i32_1 = arith.constant 0 : i32
    return %c0_i32, %c0_i32_0 : i32, i32
  }
  func.func @transform_7(%arg0: i32) -> (i32, i32) {
    %c0_i32 = arith.constant 0 : i32
    %c0_i32_0 = arith.constant 0 : i32
    %c0_i32_1 = arith.constant 0 : i32
    return %c0_i32, %c0_i32_0 : i32, i32
  }
  func.func @transform_8(%arg0: i32) -> (i32, i32) {
    %c0_i32 = arith.constant 0 : i32
    %c0_i32_0 = arith.constant 0 : i32
    %c0_i32_1 = arith.constant 0 : i32
    return %c0_i32, %c0_i32_0 : i32, i32
  }
  func.func @transform_9(%arg0: i32) -> (i32, i32) {
    %c0_i32 = arith.constant 0 : i32
    %c0_i32_0 = arith.constant 0 : i32
    %c0_i32_1 = arith.constant 0 : i32
    return %c0_i32, %c0_i32_0 : i32, i32
  }
  func.func @transform_10(%arg0: i32) -> (i32, i32) {
    %c0_i32 = arith.constant 0 : i32
    %c0_i32_0 = arith.constant 0 : i32
    %c0_i32_1 = arith.constant 0 : i32
    return %c0_i32, %c0_i32_0 : i32, i32
  }
  func.func @transform_11(%arg0: i32) -> (i32, i32) {
    %c0_i32 = arith.constant 0 : i32
    %c0_i32_0 = arith.constant 0 : i32
    %c0_i32_1 = arith.constant 0 : i32
    return %c0_i32, %c0_i32_0 : i32, i32
  }
  func.func @transform_12(%arg0: i32) -> (i32, i32) {
    %c0_i32 = arith.constant 0 : i32
    %c0_i32_0 = arith.constant 0 : i32
    %c0_i32_1 = arith.constant 0 : i32
    return %c0_i32, %c0_i32_0 : i32, i32
  }
  func.func @transform_13(%arg0: i32) -> (i32, i32, i32) {
    %c0_i32 = arith.constant 0 : i32
    %c0_i32_0 = arith.constant 0 : i32
    %c0_i32_1 = arith.constant 0 : i32
    return %arg0, %c0_i32, %c0_i32_0 : i32, i32, i32
  }
}

</mosaic_0001>

<llo_original>
// kernel: tpu_custom_call.1
$region0: #{tpu_custom_call.1}
  #allocation0 [shape = 'u32[]', space=smem, size = 0x4, offset = 0x4, fixed_abs, tag = 'smem constant byte address 0x4 - core index']
  #allocation1 [shape = 'u32[144,128]{1,0:T(1,128)}', space=vmem, size = 0x12000, scoped, tag = 'internal scratch']
  #allocation2 [shape = 'f32[128,128]{1,0:T(8,128)}', space=vmem, size = 0x10000, scoped, tag = 'scratch operand']
  %s0 = inlined_call_operand.hbm [shape: f32[4,64,128], index: 0, kind: input, shape index: {}]
  %s1 = inlined_call_operand.hbm [shape: f32[1,128], index: 1, kind: input, shape index: {}]
  %s2 = inlined_call_operand.hbm [shape: f32[1,128], index: 2, kind: input, shape index: {}]
  %s3 = inlined_call_operand.hbm [shape: f32[128,384], index: 3, kind: input, shape index: {}]
  %s4 = inlined_call_operand.vmem [shape: f32[1,384], index: 4, kind: input, shape index: {}]
  %s5 = inlined_call_operand.hbm [shape: f32[128,128], index: 5, kind: input, shape index: {}]
  %s6 = inlined_call_operand.vmem [shape: f32[1,128], index: 6, kind: input, shape index: {}]
  %s7 = inlined_call_operand.vmem [shape: f32[1,128], index: 7, kind: input, shape index: {}]
  %s8 = inlined_call_operand.vmem [shape: f32[1,128], index: 8, kind: input, shape index: {}]
  %s9 = inlined_call_operand.hbm [shape: f32[128,512], index: 9, kind: input, shape index: {}]
  %s10 = inlined_call_operand.vmem [shape: f32[1,512], index: 10, kind: input, shape index: {}]
  %s11 = inlined_call_operand.hbm [shape: f32[512,128], index: 11, kind: input, shape index: {}]
  %s12 = inlined_call_operand.vmem [shape: f32[1,128], index: 12, kind: input, shape index: {}]
  %s13 = inlined_call_operand.hbm [shape: f32[4,64,128], index: 13, kind: output, shape index: {}]
  %s14 = sld [smem:[#allocation0]]
  $region113: #{tpu_custom_call.1} parent=0
    _
  %s16 = ssub.s32 1, %s14
  %s17 = scalar_select 0, %s16, %s14
  $region1: #{tpu_custom_call.1} parent=0
    #allocation3 [shape = 'u8[131072]{0}', space=vmem, size = 0x20000, scoped, tag = 'input window, operand 0']
    #allocation4 [shape = 's32[2]{0}', space=sflag, size = 0x8, scoped, tag = 'scoped memory for tpu_custom_call.1']
    #allocation5 [shape = 's32[2]{0}', space=sflag, size = 0x8, scoped, tag = 'scoped memory for tpu_custom_call.1']
    #allocation6 [shape = 'u8[512]{0}', space=vmem, size = 0x400, scoped, tag = 'input window, operand 1, single buffered']
    #allocation7 [shape = 's32[1]{0}', space=sflag, size = 0x4, scoped, tag = 'scoped memory for tpu_custom_call.1']
    #allocation8 [shape = 'u8[512]{0}', space=vmem, size = 0x400, scoped, tag = 'input window, operand 2, single buffered']
    #allocation9 [shape = 'u8[196608]{0}', space=vmem, size = 0x30000, scoped, tag = 'input window, operand 3, single buffered']
    #allocation10 [shape = 's32[1]{0}', space=sflag, size = 0x4, scoped, tag = 'scoped memory for tpu_custom_call.1']
    #allocation11 [shape = 'u8[65536]{0}', space=vmem, size = 0x10000, scoped, tag = 'input window, operand 5, single buffered']
    #allocation12 [shape = 'u8[262144]{0}', space=vmem, size = 0x40000, scoped, tag = 'input window, operand 9, single buffered']
    #allocation13 [shape = 's32[1]{0}', space=sflag, size = 0x4, scoped, tag = 'scoped memory for tpu_custom_call.1']
    #allocation14 [shape = 'u8[262144]{0}', space=vmem, size = 0x40000, scoped, tag = 'input window, operand 11, single buffered']
    #allocation15 [shape = 'u8[131072]{0}', space=vmem, size = 0x20000, scoped, tag = 'output window, operand 0']
    %18 = vsyncpa [#allocation4], 0
    %s19 = scalar_lea.sflag [#allocation4], 1
    %20 = vsyncpa %s19, 0
    %21 = vsyncpa [#allocation7], 0
    %22 = vsyncpa [#allocation10], 0
    %23 = vsyncpa [#allocation13], 0
    %24 = vsyncpa [#allocation5], 0
    %s25 = scalar_lea.sflag [#allocation5], 1
    %26 = vsyncpa %s25, 0
    loop: start=0, step=1, limit=4
    $region2: #{tpu_custom_call.1} parent=1 // loop_pre_header
      _
    $region3: #{tpu_custom_call.1} parent=1 // loop_header
      %s28 = sphi 0, %s32
      %p29 = scmp.ge.s32.totalorder %s28, 4
      %s38 = sphi 0, %s40
      %s41 = sphi 0, %s38
      %s42 = sphi 0, %s41
      %s58 = sphi 0, %s42
      %s62 = sphi 0, %s62
      %s64 = sphi 0, %s62
      %s65 = sphi 0, %s64
      %s79 = sphi 0, %s65
      %s83 = sphi 0, %s83
      %s85 = sphi 0, %s83
      %s86 = sphi 0, %s85
      %s100 = sphi 0, %s86
      %s104 = sphi 0, %s104
      %s106 = sphi 0, %s104
      %s107 = sphi 0, %s106
      %s121 = sphi 0, %s107
      %s125 = sphi 0, %s125
      %s127 = sphi 0, %s125
      %s128 = sphi 0, %s127
      %s142 = sphi 0, %s128
      %s146 = sphi 0, %s146
      %s148 = sphi 0, %s146
      %s149 = sphi 0, %s148
      %s163 = sphi 0, %s149
      %s167 = sphi 0, %s167
      %s169 = sphi 0, %s167
      %s170 = sphi 0, %s169
      %s184 = sphi 0, %s170
      %s188 = sphi 0, %s188
      %s190 = sphi 0, %s188
      %s191 = sphi 0, %s190
      %s205 = sphi 0, %s191
      %s209 = sphi 0, %s209
      %s211 = sphi 0, %s209
      %s212 = sphi 0, %s211
      %s226 = sphi 0, %s212
      %s230 = sphi 0, %s230
      %s232 = sphi 0, %s230
      %s233 = sphi 0, %s232
      %s247 = sphi 0, %s233
      %s251 = sphi 0, %s251
      %s253 = sphi 0, %s251
      %s254 = sphi 0, %s253
      %s268 = sphi 0, %s254
      %s272 = sphi 0, %s272
      %s274 = sphi 0, %s272
      %s275 = sphi 0, %s274
      %s289 = sphi 0, %s275
      %s293 = sphi 0, %s293
      %s295 = sphi 0, %s293
      %s296 = sphi 0, %s295
      %s310 = sphi 0, %s296
      %s316 = sphi 0, %s318
      %s319 = sphi 0, %s316
      %s320 = sphi 0, %s319
      %s336 = sphi 0, %s320
    $region4: #{tpu_custom_call.1} parent=1 // loop_header_branch
      %31 = sbr.rel (%p29) target = $region8
    $region5: #{tpu_custom_call.1} parent=1 // loop_body
      %s33 = ssub.s32 %s28, 1
      %s34 = ssub.s32 %s28, 2
      %s35 = sadd.s32 %s28, 1
      %s36 = ssub.s32 %s28, %s35
      %p37 = scmp.eq.s32.totalorder %s36, 0
      %s39 = sadd.s32 %s38, 1
      %s40 = scalar_select %p37, %s38, %s39
      %p43 = pneg %p37
      %p44 = scmp.eq.s32.totalorder %s28, 1
      %p45 = por %p43, %p44
      %p46 = scmp.ne.s32.totalorder %s38, %s41
      %p47 = scmp.eq.s32.totalorder %s28, 0
      %p48 = por %p46, %p47
      %p49 = scmp.ne.s32.totalorder %s38, %s41
      %p50 = scmp.eq.s32.totalorder %s33, 1
      %p51 = por %p49, %p50
      %p52 = scmp.ne.s32.totalorder %s41, %s42
      %p53 = scmp.eq.s32.totalorder %s33, 0
      %p54 = por %p52, %p53
      %p55 = scmp.ne.s32.totalorder %s41, %s42
      %p56 = scmp.eq.s32.totalorder %s34, 1
      %p57 = por %p55, %p56
      %p59 = scmp.ne.s32.totalorder %s42, %s58
      %p60 = scmp.eq.s32.totalorder %s34, 0
      %p61 = por %p59, %p60
      %s63 = sadd.s32 %s62, 1
      %p66 = scmp.eq.s32.totalorder %s28, 1
      %p67 = scmp.ne.s32.totalorder %s62, %s64
      %p68 = scmp.eq.s32.totalorder %s28, 0
      %p69 = por %p67, %p68
      %p70 = scmp.ne.s32.totalorder %s62, %s64
      %p71 = scmp.eq.s32.totalorder %s33, 1
      %p72 = por %p70, %p71
      %p73 = scmp.ne.s32.totalorder %s64, %s65
      %p74 = scmp.eq.s32.totalorder %s33, 0
      %p75 = por %p73, %p74
      %p76 = scmp.ne.s32.totalorder %s64, %s65
      %p77 = scmp.eq.s32.totalorder %s34, 1
      %p78 = por %p76, %p77
      %p80 = scmp.ne.s32.totalorder %s65, %s79
      %p81 = scmp.eq.s32.totalorder %s34, 0
      %p82 = por %p80, %p81
      %s84 = sadd.s32 %s83, 1
      %p87 = scmp.eq.s32.totalorder %s28, 1
      %p88 = scmp.ne.s32.totalorder %s83, %s85
      %p89 = scmp.eq.s32.totalorder %s28, 0
      %p90 = por %p88, %p89
      %p91 = scmp.ne.s32.totalorder %s83, %s85
      %p92 = scmp.eq.s32.totalorder %s33, 1
      %p93 = por %p91, %p92
      %p94 = scmp.ne.s32.totalorder %s85, %s86
      %p95 = scmp.eq.s32.totalorder %s33, 0
      %p96 = por %p94, %p95
      %p97 = scmp.ne.s32.totalorder %s85, %s86
      %p98 = scmp.eq.s32.totalorder %s34, 1
      %p99 = por %p97, %p98
      %p101 = scmp.ne.s32.totalorder %s86, %s100
      %p102 = scmp.eq.s32.totalorder %s34, 0
      %p103 = por %p101, %p102
      %s105 = sadd.s32 %s104, 1
      %p108 = scmp.eq.s32.totalorder %s28, 1
      %p109 = scmp.ne.s32.totalorder %s104, %s106
      %p110 = scmp.eq.s32.totalorder %s28, 0
      %p111 = por %p109, %p110
      %p112 = scmp.ne.s32.totalorder %s104, %s106
      %p113 = scmp.eq.s32.totalorder %s33, 1
      %p114 = por %p112, %p113
      %p115 = scmp.ne.s32.totalorder %s106, %s107
      %p116 = scmp.eq.s32.totalorder %s33, 0
      %p117 = por %p115, %p116
      %p118 = scmp.ne.s32.totalorder %s106, %s107
      %p119 = scmp.eq.s32.totalorder %s34, 1
      %p120 = por %p118, %p119
      %p122 = scmp.ne.s32.totalorder %s107, %s121
      %p123 = scmp.eq.s32.totalorder %s34, 0
      %p124 = por %p122, %p123
      %s126 = sadd.s32 %s125, 1
      %p129 = scmp.eq.s32.totalorder %s28, 1
      %p130 = scmp.ne.s32.totalorder %s125, %s127
      %p131 = scmp.eq.s32.totalorder %s28, 0
      %p132 = por %p130, %p131
      %p133 = scmp.ne.s32.totalorder %s125, %s127
      %p134 = scmp.eq.s32.totalorder %s33, 1
      %p135 = por %p133, %p134
      %p136 = scmp.ne.s32.totalorder %s127, %s128
      %p137 = scmp.eq.s32.totalorder %s33, 0
      %p138 = por %p136, %p137
      %p139 = scmp.ne.s32.totalorder %s127, %s128
      %p140 = scmp.eq.s32.totalorder %s34, 1
      %p141 = por %p139, %p140
      %p143 = scmp.ne.s32.totalorder %s128, %s142
      %p144 = scmp.eq.s32.totalorder %s34, 0
      %p145 = por %p143, %p144
      %s147 = sadd.s32 %s146, 1
      %p150 = scmp.eq.s32.totalorder %s28, 1
      %p151 = scmp.ne.s32.totalorder %s146, %s148
      %p152 = scmp.eq.s32.totalorder %s28, 0
      %p153 = por %p151, %p152
      %p154 = scmp.ne.s32.totalorder %s146, %s148
      %p155 = scmp.eq.s32.totalorder %s33, 1
      %p156 = por %p154, %p155
      %p157 = scmp.ne.s32.totalorder %s148, %s149
      %p158 = scmp.eq.s32.totalorder %s33, 0
      %p159 = por %p157, %p158
      %p160 = scmp.ne.s32.totalorder %s148, %s149
      %p161 = scmp.eq.s32.totalorder %s34, 1
      %p162 = por %p160, %p161
      %p164 = scmp.ne.s32.totalorder %s149, %s163
      %p165 = scmp.eq.s32.totalorder %s34, 0
      %p166 = por %p164, %p165
      %s168 = sadd.s32 %s167, 1
      %p171 = scmp.eq.s32.totalorder %s28, 1
      %p172 = scmp.ne.s32.totalorder %s167, %s169
      %p173 = scmp.eq.s32.totalorder %s28, 0
      %p174 = por %p172, %p173
      %p175 = scmp.ne.s32.totalorder %s167, %s169
      %p176 = scmp.eq.s32.totalorder %s33, 1
      %p177 = por %p175, %p176
      %p178 = scmp.ne.s32.totalorder %s169, %s170
      %p179 = scmp.eq.s32.totalorder %s33, 0
      %p180 = por %p178, %p179
      %p181 = scmp.ne.s32.totalorder %s169, %s170
      %p182 = scmp.eq.s32.totalorder %s34, 1
      %p183 = por %p181, %p182
      %p185 = scmp.ne.s32.totalorder %s170, %s184
      %p186 = scmp.eq.s32.totalorder %s34, 0
      %p187 = por %p185, %p186
      %s189 = sadd.s32 %s188, 1
      %p192 = scmp.eq.s32.totalorder %s28, 1
      %p193 = scmp.ne.s32.totalorder %s188, %s190
      %p194 = scmp.eq.s32.totalorder %s28, 0
      %p195 = por %p193, %p194
      %p196 = scmp.ne.s32.totalorder %s188, %s190
      %p197 = scmp.eq.s32.totalorder %s33, 1
      %p198 = por %p196, %p197
      %p199 = scmp.ne.s32.totalorder %s190, %s191
      %p200 = scmp.eq.s32.totalorder %s33, 0
      %p201 = por %p199, %p200
      %p202 = scmp.ne.s32.totalorder %s190, %s191
      %p203 = scmp.eq.s32.totalorder %s34, 1
      %p204 = por %p202, %p203
      %p206 = scmp.ne.s32.totalorder %s191, %s205
      %p207 = scmp.eq.s32.totalorder %s34, 0
      %p208 = por %p206, %p207
      %s210 = sadd.s32 %s209, 1
      %p213 = scmp.eq.s32.totalorder %s28, 1
      %p214 = scmp.ne.s32.totalorder %s209, %s211
      %p215 = scmp.eq.s32.totalorder %s28, 0
      %p216 = por %p214, %p215
      %p217 = scmp.ne.s32.totalorder %s209, %s211
      %p218 = scmp.eq.s32.totalorder %s33, 1
      %p219 = por %p217, %p218
      %p220 = scmp.ne.s32.totalorder %s211, %s212
      %p221 = scmp.eq.s32.totalorder %s33, 0
      %p222 = por %p220, %p221
      %p223 = scmp.ne.s32.totalorder %s211, %s212
      %p224 = scmp.eq.s32.totalorder %s34, 1
      %p225 = por %p223, %p224
      %p227 = scmp.ne.s32.totalorder %s212, %s226
      %p228 = scmp.eq.s32.totalorder %s34, 0
      %p229 = por %p227, %p228
      %s231 = sadd.s32 %s230, 1
      %p234 = scmp.eq.s32.totalorder %s28, 1
      %p235 = scmp.ne.s32.totalorder %s230, %s232
      %p236 = scmp.eq.s32.totalorder %s28, 0
      %p237 = por %p235, %p236
      %p238 = scmp.ne.s32.totalorder %s230, %s232
      %p239 = scmp.eq.s32.totalorder %s33, 1
      %p240 = por %p238, %p239
      %p241 = scmp.ne.s32.totalorder %s232, %s233
      %p242 = scmp.eq.s32.totalorder %s33, 0
      %p243 = por %p241, %p242
      %p244 = scmp.ne.s32.totalorder %s232, %s233
      %p245 = scmp.eq.s32.totalorder %s34, 1
      %p246 = por %p244, %p245
      %p248 = scmp.ne.s32.totalorder %s233, %s247
      %p249 = scmp.eq.s32.totalorder %s34, 0
      %p250 = por %p248, %p249
      %s252 = sadd.s32 %s251, 1
      %p255 = scmp.eq.s32.totalorder %s28, 1
      %p256 = scmp.ne.s32.totalorder %s251, %s253
      %p257 = scmp.eq.s32.totalorder %s28, 0
      %p258 = por %p256, %p257
      %p259 = scmp.ne.s32.totalorder %s251, %s253
      %p260 = scmp.eq.s32.totalorder %s33, 1
      %p261 = por %p259, %p260
      %p262 = scmp.ne.s32.totalorder %s253, %s254
      %p263 = scmp.eq.s32.totalorder %s33, 0
      %p264 = por %p262, %p263
      %p265 = scmp.ne.s32.totalorder %s253, %s254
      %p266 = scmp.eq.s32.totalorder %s34, 1
      %p267 = por %p265, %p266
      %p269 = scmp.ne.s32.totalorder %s254, %s268
      %p270 = scmp.eq.s32.totalorder %s34, 0
      %p271 = por %p269, %p270
      %s273 = sadd.s32 %s272, 1
      %p276 = scmp.eq.s32.totalorder %s28, 1
      %p277 = scmp.ne.s32.totalorder %s272, %s274
      %p278 = scmp.eq.s32.totalorder %s28, 0
      %p279 = por %p277, %p278
      %p280 = scmp.ne.s32.totalorder %s272, %s274
      %p281 = scmp.eq.s32.totalorder %s33, 1
      %p282 = por %p280, %p281
      %p283 = scmp.ne.s32.totalorder %s274, %s275
      %p284 = scmp.eq.s32.totalorder %s33, 0
      %p285 = por %p283, %p284
      %p286 = scmp.ne.s32.totalorder %s274, %s275
      %p287 = scmp.eq.s32.totalorder %s34, 1
      %p288 = por %p286, %p287
      %p290 = scmp.ne.s32.totalorder %s275, %s289
      %p291 = scmp.eq.s32.totalorder %s34, 0
      %p292 = por %p290, %p291
      %s294 = sadd.s32 %s293, 1
      %p297 = scmp.eq.s32.totalorder %s28, 1
      %p298 = scmp.ne.s32.totalorder %s293, %s295
      %p299 = scmp.eq.s32.totalorder %s28, 0
      %p300 = por %p298, %p299
      %p301 = scmp.ne.s32.totalorder %s293, %s295
      %p302 = scmp.eq.s32.totalorder %s33, 1
      %p303 = por %p301, %p302
      %p304 = scmp.ne.s32.totalorder %s295, %s296
      %p305 = scmp.eq.s32.totalorder %s33, 0
      %p306 = por %p304, %p305
      %p307 = scmp.ne.s32.totalorder %s295, %s296
      %p308 = scmp.eq.s32.totalorder %s34, 1
      %p309 = por %p307, %p308
      %p311 = scmp.ne.s32.totalorder %s296, %s310
      %p312 = scmp.eq.s32.totalorder %s34, 0
      %p313 = por %p311, %p312
      %s314 = ssub.s32 %s28, %s35
      %p315 = scmp.eq.s32.totalorder %s314, 0
      %s317 = sadd.s32 %s316, 1
      %s318 = scalar_select %p315, %s316, %s317
      %p321 = pneg %p315
      %p322 = scmp.eq.s32.totalorder %s28, 1
      %p323 = por %p321, %p322
      %p324 = scmp.ne.s32.totalorder %s316, %s319
      %p325 = scmp.eq.s32.totalorder %s28, 0
      %p326 = por %p324, %p325
      %p327 = scmp.ne.s32.totalorder %s316, %s319
      %p328 = scmp.eq.s32.totalorder %s33, 1
      %p329 = por %p327, %p328
      %p330 = scmp.ne.s32.totalorder %s319, %s320
      %p331 = scmp.eq.s32.totalorder %s33, 0
      %p332 = por %p330, %p331
      %p333 = scmp.ne.s32.totalorder %s319, %s320
      %p334 = scmp.eq.s32.totalorder %s34, 1
      %p335 = por %p333, %p334
      %p337 = scmp.ne.s32.totalorder %s320, %s336
      %p338 = scmp.eq.s32.totalorder %s34, 0
      %p339 = por %p337, %p338
      %p340 = scmp.le.s32.totalorder 1, %s28
      %p341 = scmp.lt.s32.totalorder %s28, 3
      %p342 = pnand %p340, %p341
      %p343 = pneg %p342
      // Predicated region
      $region9: #{tpu_custom_call.1} parent=5 // pred_check
        _
      $region10: #{tpu_custom_call.1} parent=5 // pred_check_branch
        %345 = sbr.rel (%p342) target = $region12
      $region11: #{tpu_custom_call.1} parent=5 // pred_region
        %s346 = ssub.s32 %s28, 1
        // Predicated region
        $region13: #{tpu_custom_call.1} parent=11 // pred_check
          %p347 = pneg %p75
        $region14: #{tpu_custom_call.1} parent=11 // pred_check_branch
          %349 = sbr.rel (%p347) target = $region16
        $region15: #{tpu_custom_call.1} parent=11 // pred_region
          %s351 = ssub.s32 16, 16
          %352 = vsyncadd [#allocation7], %s351
          %s354 = sshll.u32 [#allocation6], 4
          %s355 = int_to_ptr.vmem [resolvable:$true] %s354
          %357 = dma.hbm_to_vmem [thread:$0]  %s1, 16, %s355, [#allocation7]
        $region16: #{tpu_custom_call.1} parent=11 // pred_fallthru
          _
        // Predicated region
        $region17: #{tpu_custom_call.1} parent=11 // pred_check
          %p358 = pneg %p96
        $region18: #{tpu_custom_call.1} parent=11 // pred_check_branch
          %360 = sbr.rel (%p358) target = $region20
        $region19: #{tpu_custom_call.1} parent=11 // pred_region
          %s362 = ssub.s32 16, 16
          %363 = vsyncadd [#allocation7], %s362
          %s365 = sshll.u32 [#allocation8], 4
          %s366 = int_to_ptr.vmem [resolvable:$true] %s365
          %368 = dma.hbm_to_vmem [thread:$0]  %s2, 16, %s366, [#allocation7]
        $region20: #{tpu_custom_call.1} parent=11 // pred_fallthru
          _
        // Predicated region
        $region21: #{tpu_custom_call.1} parent=11 // pred_check
          %p369 = pneg %p117
        $region22: #{tpu_custom_call.1} parent=11 // pred_check_branch
          %371 = sbr.rel (%p369) target = $region24
        $region23: #{tpu_custom_call.1} parent=11 // pred_region
          %s373 = ssub.s32 6144, 6144
          %374 = vsyncadd [#allocation10], %s373
          %s375 = sshll.u32 [#allocation9], 4
          %s376 = int_to_ptr.vmem [resolvable:$true] %s375
          %381 = dma.hbm_to_vmem [thread:$0]  %s3, 6144, %s376, [#allocation10], 384, 384, 24
        $region24: #{tpu_custom_call.1} parent=11 // pred_fallthru
          _
        // Predicated region
        $region25: #{tpu_custom_call.1} parent=11 // pred_check
          %p382 = pneg %p138
        $region26: #{tpu_custom_call.1} parent=11 // pred_check_branch
          %384 = sbr.rel (%p382) target = $region28
        $region27: #{tpu_custom_call.1} parent=11 // pred_region
          _
        $region28: #{tpu_custom_call.1} parent=11 // pred_fallthru
          _
        // Predicated region
        $region29: #{tpu_custom_call.1} parent=11 // pred_check
          %p385 = pneg %p159
        $region30: #{tpu_custom_call.1} parent=11 // pred_check_branch
          %387 = sbr.rel (%p385) target = $region32
        $region31: #{tpu_custom_call.1} parent=11 // pred_region
          %s389 = ssub.s32 2048, 2048
          %390 = vsyncadd [#allocation10], %s389
          %s391 = sshll.u32 [#allocation11], 4
          %s392 = int_to_ptr.vmem [resolvable:$true] %s391
          %397 = dma.hbm_to_vmem [thread:$0]  %s5, 2048, %s392, [#allocation10], 128, 128, 8
        $region32: #{tpu_custom_call.1} parent=11 // pred_fallthru
          _
        // Predicated region
        $region33: #{tpu_custom_call.1} parent=11 // pred_check
          %p398 = pneg %p180
        $region34: #{tpu_custom_call.1} parent=11 // pred_check_branch
          %400 = sbr.rel (%p398) target = $region36
        $region35: #{tpu_custom_call.1} parent=11 // pred_region
          _
        $region36: #{tpu_custom_call.1} parent=11 // pred_fallthru
          _
        // Predicated region
        $region37: #{tpu_custom_call.1} parent=11 // pred_check
          %p401 = pneg %p201
        $region38: #{tpu_custom_call.1} parent=11 // pred_check_branch
          %403 = sbr.rel (%p401) target = $region40
        $region39: #{tpu_custom_call.1} parent=11 // pred_region
          _
        $region40: #{tpu_custom_call.1} parent=11 // pred_fallthru
          _
        // Predicated region
        $region41: #{tpu_custom_call.1} parent=11 // pred_check
          %p404 = pneg %p222
        $region42: #{tpu_custom_call.1} parent=11 // pred_check_branch
          %406 = sbr.rel (%p404) target = $region44
        $region43: #{tpu_custom_call.1} parent=11 // pred_region
          _
        $region44: #{tpu_custom_call.1} parent=11 // pred_fallthru
          _
        // Predicated region
        $region45: #{tpu_custom_call.1} parent=11 // pred_check
          %p407 = pneg %p243
        $region46: #{tpu_custom_call.1} parent=11 // pred_check_branch
          %409 = sbr.rel (%p407) target = $region48
        $region47: #{tpu_custom_call.1} parent=11 // pred_region
          %s411 = ssub.s32 8192, 8192
          %412 = vsyncadd [#allocation13], %s411
          %s413 = sshll.u32 [#allocation12], 4
          %s414 = int_to_ptr.vmem [resolvable:$true] %s413
          %419 = dma.hbm_to_vmem [thread:$0]  %s9, 8192, %s414, [#allocation13], 512, 512, 32
        $region48: #{tpu_custom_call.1} parent=11 // pred_fallthru
          _
        // Predicated region
        $region49: #{tpu_custom_call.1} parent=11 // pred_check
          %p420 = pneg %p264
        $region50: #{tpu_custom_call.1} parent=11 // pred_check_branch
          %422 = sbr.rel (%p420) target = $region52
        $region51: #{tpu_custom_call.1} parent=11 // pred_region
          _
        $region52: #{tpu_custom_call.1} parent=11 // pred_fallthru
          _
        // Predicated region
        $region53: #{tpu_custom_call.1} parent=11 // pred_check
          %p423 = pneg %p285
        $region54: #{tpu_custom_call.1} parent=11 // pred_check_branch
          %425 = sbr.rel (%p423) target = $region56
        $region55: #{tpu_custom_call.1} parent=11 // pred_region
          %s427 = ssub.s32 8192, 8192
          %428 = vsyncadd [#allocation13], %s427
          %s429 = sshll.u32 [#allocation14], 4
          %s430 = int_to_ptr.vmem [resolvable:$true] %s429
          %435 = dma.hbm_to_vmem [thread:$0]  %s11, 8192, %s430, [#allocation13], 128, 128, 8
        $region56: #{tpu_custom_call.1} parent=11 // pred_fallthru
          _
        // Predicated region
        $region57: #{tpu_custom_call.1} parent=11 // pred_check
          %p436 = pneg %p306
        $region58: #{tpu_custom_call.1} parent=11 // pred_check_branch
          %438 = sbr.rel (%p436) target = $region60
        $region59: #{tpu_custom_call.1} parent=11 // pred_region
          _
        $region60: #{tpu_custom_call.1} parent=11 // pred_fallthru
          _
      $region12: #{tpu_custom_call.1} parent=5 // pred_fallthru
        _
      %p439 = scmp.lt.s32.totalorder %s28, 2
      // Predicated region
      $region61: #{tpu_custom_call.1} parent=5 // pred_check
        %p440 = pneg %p439
      $region62: #{tpu_custom_call.1} parent=5 // pred_check_branch
        %442 = sbr.rel (%p440) target = $region64
      $region63: #{tpu_custom_call.1} parent=5 // pred_region
        // Predicated region
        $region65: #{tpu_custom_call.1} parent=63 // pred_check
          %p443 = pneg %p48
        $region66: #{tpu_custom_call.1} parent=63 // pred_check_branch
          %445 = sbr.rel (%p443) target = $region68
        $region67: #{tpu_custom_call.1} parent=63 // pred_region
          %s446 = sand.u32 %s38, 1
          %s447 = scalar_lea.sflag [#allocation4], %s446
          %s448 = sand.u32 %s38, 1
          %s449 = smul.addr %s448, 128
          %s450 = scalar_lea.vmem [#allocation3], %s449
          %s451 = smul.u32 2, %s28
          %s453 = ssub.s32 2048, 2048
          %454 = vsyncadd %s447, %s453
          %s455 = smul.addr %s451, 8
          %s456 = smul.addr %s455, 128
          %s457 = scalar_lea.hbm %s0, %s456
          %s458 = sshll.u32 %s450, 4
          %s459 = int_to_ptr.vmem [resolvable:$true] %s458
          %464 = dma.hbm_to_vmem [thread:$0]  %s457, 2048, %s459, %s447, 128, 128, 8
        $region68: #{tpu_custom_call.1} parent=63 // pred_fallthru
          _
      $region64: #{tpu_custom_call.1} parent=5 // pred_fallthru
        _
      %p465 = scmp.le.s32.totalorder 1, %s28
      %p466 = scmp.lt.s32.totalorder %s28, 3
      %p467 = pnand %p465, %p466
      %p468 = pneg %p467
      // Predicated region
      $region69: #{tpu_custom_call.1} parent=5 // pred_check
        _
      $region70: #{tpu_custom_call.1} parent=5 // pred_check_branch
        %470 = sbr.rel (%p467) target = $region72
      $region71: #{tpu_custom_call.1} parent=5 // pred_region
        %s471 = ssub.s32 %s28, 1
        %s472 = sand.u32 %s41, 1
        %s473 = scalar_lea.sflag [#allocation4], %s472
        %s474 = sand.u32 %s41, 1
        %s475 = smul.addr %s474, 128
        %s476 = scalar_lea.vmem [#allocation3], %s475
        // Predicated region
        $region73: #{tpu_custom_call.1} parent=71 // pred_check
          %p477 = pneg %p54
        $region74: #{tpu_custom_call.1} parent=71 // pred_check_branch
          %479 = sbr.rel (%p477) target = $region76
        $region75: #{tpu_custom_call.1} parent=71 // pred_region
          %480 = dma.done %s473, 2048
        $region76: #{tpu_custom_call.1} parent=71 // pred_fallthru
          _
        // Predicated region
        $region77: #{tpu_custom_call.1} parent=71 // pred_check
          %p481 = pneg %p75
        $region78: #{tpu_custom_call.1} parent=71 // pred_check_branch
          %483 = sbr.rel (%p481) target = $region80
        $region79: #{tpu_custom_call.1} parent=71 // pred_region
          %484 = dma.done [#allocation7], 16
        $region80: #{tpu_custom_call.1} parent=71 // pred_fallthru
          _
        // Predicated region
        $region81: #{tpu_custom_call.1} parent=71 // pred_check
          %p485 = pneg %p96
        $region82: #{tpu_custom_call.1} parent=71 // pred_check_branch
          %487 = sbr.rel (%p485) target = $region84
        $region83: #{tpu_custom_call.1} parent=71 // pred_region
          %488 = dma.done [#allocation7], 16
        $region84: #{tpu_custom_call.1} parent=71 // pred_fallthru
          _
        // Predicated region
        $region85: #{tpu_custom_call.1} parent=71 // pred_check
          %p489 = pneg %p117
        $region86: #{tpu_custom_call.1} parent=71 // pred_check_branch
          %491 = sbr.rel (%p489) target = $region88
        $region87: #{tpu_custom_call.1} parent=71 // pred_region
          %492 = dma.done [#allocation10], 6144
        $region88: #{tpu_custom_call.1} parent=71 // pred_fallthru
          _
        // Predicated region
        $region89: #{tpu_custom_call.1} parent=71 // pred_check
          %p493 = pneg %p159
        $region90: #{tpu_custom_call.1} parent=71 // pred_check_branch
          %495 = sbr.rel (%p493) target = $region92
        $region91: #{tpu_custom_call.1} parent=71 // pred_region
          %496 = dma.done [#allocation10], 2048
        $region92: #{tpu_custom_call.1} parent=71 // pred_fallthru
          _
        // Predicated region
        $region93: #{tpu_custom_call.1} parent=71 // pred_check
          %p497 = pneg %p243
        $region94: #{tpu_custom_call.1} parent=71 // pred_check_branch
          %499 = sbr.rel (%p497) target = $region96
        $region95: #{tpu_custom_call.1} parent=71 // pred_region
          %500 = dma.done [#allocation13], 8192
        $region96: #{tpu_custom_call.1} parent=71 // pred_fallthru
          _
        // Predicated region
        $region97: #{tpu_custom_call.1} parent=71 // pred_check
          %p501 = pneg %p285
        $region98: #{tpu_custom_call.1} parent=71 // pred_check_branch
          %503 = sbr.rel (%p501) target = $region100
        $region99: #{tpu_custom_call.1} parent=71 // pred_region
          %504 = dma.done [#allocation13], 8192
        $region100: #{tpu_custom_call.1} parent=71 // pred_fallthru
          _
        %s505 = sand.u32 %s41, 1
        %s506 = scalar_lea.sflag [#allocation4], %s505
        %s507 = sand.u32 %s41, 1
        %s508 = smul.addr %s507, 128
        %s509 = scalar_lea.vmem [#allocation3], %s508
        %p510 = pneg %p54
        %p511 = pneg %p51
        %p512 = pneg %p75
        %p513 = pneg %p72
        %p514 = pneg %p96
        %p515 = pneg %p93
        %p516 = pneg %p117
        %p517 = pneg %p114
        %p518 = pneg %p138
        %p519 = pneg %p135
        %p520 = pneg %p159
        %p521 = pneg %p156
        %p522 = pneg %p180
        %p523 = pneg %p177
        %p524 = pneg %p201
        %p525 = pneg %p198
        %p526 = pneg %p222
        %p527 = pneg %p219
        %p528 = pneg %p243
        %p529 = pneg %p240
        %p530 = pneg %p264
        %p531 = pneg %p261
        %p532 = pneg %p285
        %p533 = pneg %p282
        %p534 = pneg %p306
        %p535 = pneg %p303
        %p536 = pneg %p332
        %p537 = pneg %p329
        %s538 = sand.u32 %s319, 1
        %s539 = scalar_lea.sflag [#allocation5], %s538
        %s540 = sand.u32 %s319, 1
        %s541 = smul.addr %s540, 128
        %s542 = scalar_lea.vmem [#allocation15], %s541
        %s543 = smul.u32 2, %s33
        %s544 = smul.u32 2, %s33
        %v545 = vld [vmem:[%s476] sm:$0xff]
        %v546 = vld [vmem:[%s476 + $0x8] sm:$0xff]
        %v547 = vld [vmem:[%s476 + $0x10] sm:$0xff]
        %v548 = vld [vmem:[%s476 + $0x18] sm:$0xff]
        %v549 = vld [vmem:[%s476 + $0x20] sm:$0xff]
        %v550 = vld [vmem:[%s476 + $0x28] sm:$0xff]
        %v551 = vld [vmem:[%s476 + $0x30] sm:$0xff]
        %v552 = vld [vmem:[%s476 + $0x38] sm:$0xff]
        %v553 = vld [vmem:[%s476 + $0x40] sm:$0xff]
        %v554 = vld [vmem:[%s476 + $0x48] sm:$0xff]
        %v555 = vld [vmem:[%s476 + $0x50] sm:$0xff]
        %v556 = vld [vmem:[%s476 + $0x58] sm:$0xff]
        %v557 = vld [vmem:[%s476 + $0x60] sm:$0xff]
        %v558 = vld [vmem:[%s476 + $0x68] sm:$0xff]
        %v559 = vld [vmem:[%s476 + $0x70] sm:$0xff]
        %v560 = vld [vmem:[%s476 + $0x78] sm:$0xff]
        %v561 = vld [vmem:[#allocation6] sm:$0x1]
        %v562 = vld [vmem:[#allocation8] sm:$0x1]
        %563 = vadd.xlane.f32.xlu0 %v545
        %v564 = vpop.xlane.xlu0 %563
        %565 = vadd.xlane.f32.xlu0 %v546
        %v566 = vpop.xlane.xlu0 %565
        %567 = vadd.xlane.f32.xlu0 %v547
        %v568 = vpop.xlane.xlu0 %567
        %569 = vadd.xlane.f32.xlu0 %v548
        %v570 = vpop.xlane.xlu0 %569
        %571 = vadd.xlane.f32.xlu0 %v549
        %v572 = vpop.xlane.xlu0 %571
        %573 = vadd.xlane.f32.xlu0 %v550
        %v574 = vpop.xlane.xlu0 %573
        %575 = vadd.xlane.f32.xlu0 %v551
        %v576 = vpop.xlane.xlu0 %575
        %577 = vadd.xlane.f32.xlu0 %v552
        %v578 = vpop.xlane.xlu0 %577
        %579 = vadd.xlane.f32.xlu0 %v553
        %v580 = vpop.xlane.xlu0 %579
        %581 = vadd.xlane.f32.xlu0 %v554
        %v582 = vpop.xlane.xlu0 %581
        %583 = vadd.xlane.f32.xlu0 %v555
        %v584 = vpop.xlane.xlu0 %583
        %585 = vadd.xlane.f32.xlu0 %v556
        %v586 = vpop.xlane.xlu0 %585
        %587 = vadd.xlane.f32.xlu0 %v557
        %v588 = vpop.xlane.xlu0 %587
        %589 = vadd.xlane.f32.xlu0 %v558
        %v590 = vpop.xlane.xlu0 %589
        %591 = vadd.xlane.f32.xlu0 %v559
        %v592 = vpop.xlane.xlu0 %591
        %593 = vadd.xlane.f32.xlu0 %v560
        %v594 = vpop.xlane.xlu0 %593
        %v595 = vrcp.pop 128.0
        %v596 = vmul.f32 %v564, %v595
        %v597 = vmul.f32 %v566, %v595
        %v598 = vmul.f32 %v568, %v595
        %v599 = vmul.f32 %v570, %v595
        %v600 = vmul.f32 %v572, %v595
        %v601 = vmul.f32 %v574, %v595
        %v602 = vmul.f32 %v576, %v595
        %v603 = vmul.f32 %v578, %v595
        %v604 = vmul.f32 %v580, %v595
        %v605 = vmul.f32 %v582, %v595
        %v606 = vmul.f32 %v584, %v595
        %v607 = vmul.f32 %v586, %v595
        %v608 = vmul.f32 %v588, %v595
        %v609 = vmul.f32 %v590, %v595
        %v610 = vmul.f32 %v592, %v595
        %v611 = vmul.f32 %v594, %v595
        %v612 = vsub.f32 %v545, %v596
        %v613 = vsub.f32 %v546, %v597
        %v614 = vsub.f32 %v547, %v598
        %v615 = vsub.f32 %v548, %v599
        %v616 = vsub.f32 %v549, %v600
        %v617 = vsub.f32 %v550, %v601
        %v618 = vsub.f32 %v551, %v602
        %v619 = vsub.f32 %v552, %v603
        %v620 = vsub.f32 %v553, %v604
        %v621 = vsub.f32 %v554, %v605
        %v622 = vsub.f32 %v555, %v606
        %v623 = vsub.f32 %v556, %v607
        %v624 = vsub.f32 %v557, %v608
        %v625 = vsub.f32 %v558, %v609
        %v626 = vsub.f32 %v559, %v610
        %v627 = vsub.f32 %v560, %v611
        %v628 = vmul.f32 %v612, %v612
        %v629 = vmul.f32 %v613, %v613
        %v630 = vmul.f32 %v614, %v614
        %v631 = vmul.f32 %v615, %v615
        %v632 = vmul.f32 %v616, %v616
        %v633 = vmul.f32 %v617, %v617
        %v634 = vmul.f32 %v618, %v618
        %v635 = vmul.f32 %v619, %v619
        %v636 = vmul.f32 %v620, %v620
        %v637 = vmul.f32 %v621, %v621
        %v638 = vmul.f32 %v622, %v622
        %v639 = vmul.f32 %v623, %v623
        %v640 = vmul.f32 %v624, %v624
        %v641 = vmul.f32 %v625, %v625
        %v642 = vmul.f32 %v626, %v626
        %v643 = vmul.f32 %v627, %v627
        %644 = vadd.xlane.f32.xlu0 %v628
        %v645 = vpop.xlane.xlu0 %644
        %646 = vadd.xlane.f32.xlu0 %v629
        %v647 = vpop.xlane.xlu0 %646
        %648 = vadd.xlane.f32.xlu0 %v630
        %v649 = vpop.xlane.xlu0 %648
        %650 = vadd.xlane.f32.xlu0 %v631
        %v651 = vpop.xlane.xlu0 %650
        %652 = vadd.xlane.f32.xlu0 %v632
        %v653 = vpop.xlane.xlu0 %652
        %654 = vadd.xlane.f32.xlu0 %v633
        %v655 = vpop.xlane.xlu0 %654
        %656 = vadd.xlane.f32.xlu0 %v634
        %v657 = vpop.xlane.xlu0 %656
        %658 = vadd.xlane.f32.xlu0 %v635
        %v659 = vpop.xlane.xlu0 %658
        %660 = vadd.xlane.f32.xlu0 %v636
        %v661 = vpop.xlane.xlu0 %660
        %662 = vadd.xlane.f32.xlu0 %v637
        %v663 = vpop.xlane.xlu0 %662
        %664 = vadd.xlane.f32.xlu0 %v638
        %v665 = vpop.xlane.xlu0 %664
        %666 = vadd.xlane.f32.xlu0 %v639
        %v667 = vpop.xlane.xlu0 %666
        %668 = vadd.xlane.f32.xlu0 %v640
        %v669 = vpop.xlane.xlu0 %668
        %670 = vadd.xlane.f32.xlu0 %v641
        %v671 = vpop.xlane.xlu0 %670
        %672 = vadd.xlane.f32.xlu0 %v642
        %v673 = vpop.xlane.xlu0 %672
        %674 = vadd.xlane.f32.xlu0 %v643
        %v675 = vpop.xlane.xlu0 %674
        %v676 = vmul.f32 %v645, %v595
        %v677 = vmul.f32 %v647, %v595
        %v678 = vmul.f32 %v649, %v595
        %v679 = vmul.f32 %v651, %v595
        %v680 = vmul.f32 %v653, %v595
        %v681 = vmul.f32 %v655, %v595
        %v682 = vmul.f32 %v657, %v595
        %v683 = vmul.f32 %v659, %v595
        %v684 = vmul.f32 %v661, %v595
        %v685 = vmul.f32 %v663, %v595
        %v686 = vmul.f32 %v665, %v595
        %v687 = vmul.f32 %v667, %v595
        %v688 = vmul.f32 %v669, %v595
        %v689 = vmul.f32 %v671, %v595
        %v690 = vmul.f32 %v673, %v595
        %v691 = vmul.f32 %v675, %v595
        %v692 = vadd.f32 %v676, 1e-05
        %v693 = vadd.f32 %v677, 1e-05
        %v694 = vadd.f32 %v678, 1e-05
        %v695 = vadd.f32 %v679, 1e-05
        %v696 = vadd.f32 %v680, 1e-05
        %v697 = vadd.f32 %v681, 1e-05
        %v698 = vadd.f32 %v682, 1e-05
        %v699 = vadd.f32 %v683, 1e-05
        %v700 = vadd.f32 %v684, 1e-05
        %v701 = vadd.f32 %v685, 1e-05
        %v702 = vadd.f32 %v686, 1e-05
        %v703 = vadd.f32 %v687, 1e-05
        %v704 = vadd.f32 %v688, 1e-05
        %v705 = vadd.f32 %v689, 1e-05
        %v706 = vadd.f32 %v690, 1e-05
        %v707 = vadd.f32 %v691, 1e-05
        %v708 = vrsqrt.pop %v692
        %v709 = vrsqrt.pop %v693
        %v710 = vrsqrt.pop %v694
        %v711 = vrsqrt.pop %v695
        %v712 = vrsqrt.pop %v696
        %v713 = vrsqrt.pop %v697
        %v714 = vrsqrt.pop %v698
        %v715 = vrsqrt.pop %v699
        %v716 = vrsqrt.pop %v700
        %v717 = vrsqrt.pop %v701
        %v718 = vrsqrt.pop %v702
        %v719 = vrsqrt.pop %v703
        %v720 = vrsqrt.pop %v704
        %v721 = vrsqrt.pop %v705
        %v722 = vrsqrt.pop %v706
        %v723 = vrsqrt.pop %v707
        %v724 = vmul.f32 %v612, %v708
        %v725 = vmul.f32 %v613, %v709
        %v726 = vmul.f32 %v614, %v710
        %v727 = vmul.f32 %v615, %v711
        %v728 = vmul.f32 %v616, %v712
        %v729 = vmul.f32 %v617, %v713
        %v730 = vmul.f32 %v618, %v714
        %v731 = vmul.f32 %v619, %v715
        %v732 = vmul.f32 %v620, %v716
        %v733 = vmul.f32 %v621, %v717
        %v734 = vmul.f32 %v622, %v718
        %v735 = vmul.f32 %v623, %v719
        %v736 = vmul.f32 %v624, %v720
        %v737 = vmul.f32 %v625, %v721
        %v738 = vmul.f32 %v626, %v722
        %v739 = vmul.f32 %v627, %v723
        %v741 = vlaneseq
        %v742 = vshrl.u32 %v741, 7
        %v743 = vsub.s32 0, %v742
        %v744 = vrot.slane %v561, %v743
        %v746 = vmul.f32 %v724, %v744
        %v747 = vmul.f32 %v725, %v744
        %v748 = vmul.f32 %v726, %v744
        %v749 = vmul.f32 %v727, %v744
        %v750 = vmul.f32 %v728, %v744
        %v751 = vmul.f32 %v729, %v744
        %v752 = vmul.f32 %v730, %v744
        %v753 = vmul.f32 %v731, %v744
        %v754 = vmul.f32 %v732, %v744
        %v755 = vmul.f32 %v733, %v744
        %v756 = vmul.f32 %v734, %v744
        %v757 = vmul.f32 %v735, %v744
        %v758 = vmul.f32 %v736, %v744
        %v759 = vmul.f32 %v737, %v744
        %v760 = vmul.f32 %v738, %v744
        %v761 = vmul.f32 %v739, %v744
        %v763 = vlaneseq
        %v764 = vshrl.u32 %v763, 7
        %v765 = vsub.s32 0, %v764
        %v766 = vrot.slane %v562, %v765
        %v768 = vadd.f32 %v746, %v766
        %v769 = vadd.f32 %v747, %v766
        %v770 = vadd.f32 %v748, %v766
        %v771 = vadd.f32 %v749, %v766
        %v772 = vadd.f32 %v750, %v766
        %v773 = vadd.f32 %v751, %v766
        %v774 = vadd.f32 %v752, %v766
        %v775 = vadd.f32 %v753, %v766
        %v776 = vadd.f32 %v754, %v766
        %v777 = vadd.f32 %v755, %v766
        %v778 = vadd.f32 %v756, %v766
        %v779 = vadd.f32 %v757, %v766
        %v780 = vadd.f32 %v758, %v766
        %v781 = vadd.f32 %v759, %v766
        %v782 = vadd.f32 %v760, %v766
        %v783 = vadd.f32 %v761, %v766
        %v784 = vld [vmem:[#allocation9] sm:$0xff]
        %v785 = vld [vmem:[#allocation9 + $0x8] sm:$0xff]
        %v786 = vld [vmem:[#allocation9 + $0x10] sm:$0xff]
        %v787 = vld [vmem:[#allocation9 + $0x18] sm:$0xff]
        %v788 = vld [vmem:[#allocation9 + $0x20] sm:$0xff]
        %v789 = vld [vmem:[#allocation9 + $0x28] sm:$0xff]
        %v790 = vld [vmem:[#allocation9 + $0x30] sm:$0xff]
        %v791 = vld [vmem:[#allocation9 + $0x38] sm:$0xff]
        %v792 = vld [vmem:[#allocation9 + $0x40] sm:$0xff]
        %v793 = vld [vmem:[#allocation9 + $0x48] sm:$0xff]
        %v794 = vld [vmem:[#allocation9 + $0x50] sm:$0xff]
        %v795 = vld [vmem:[#allocation9 + $0x58] sm:$0xff]
        %v796 = vld [vmem:[#allocation9 + $0x60] sm:$0xff]
        %v797 = vld [vmem:[#allocation9 + $0x68] sm:$0xff]
        %v798 = vld [vmem:[#allocation9 + $0x70] sm:$0xff]
        %v799 = vld [vmem:[#allocation9 + $0x78] sm:$0xff]
        %v800 = vld [vmem:[#allocation9 + $0x80] sm:$0xff]
        %v801 = vld [vmem:[#allocation9 + $0x88] sm:$0xff]
        %v802 = vld [vmem:[#allocation9 + $0x90] sm:$0xff]
        %v803 = vld [vmem:[#allocation9 + $0x98] sm:$0xff]
        %v804 = vld [vmem:[#allocation9 + $0xa0] sm:$0xff]
        %v805 = vld [vmem:[#allocation9 + $0xa8] sm:$0xff]
        %v806 = vld [vmem:[#allocation9 + $0xb0] sm:$0xff]
        %v807 = vld [vmem:[#allocation9 + $0xb8] sm:$0xff]
        %v808 = vld [vmem:[#allocation9 + $0xc0] sm:$0xff]
        %v809 = vld [vmem:[#allocation9 + $0xc8] sm:$0xff]
        %v810 = vld [vmem:[#allocation9 + $0xd0] sm:$0xff]
        %v811 = vld [vmem:[#allocation9 + $0xd8] sm:$0xff]
        %v812 = vld [vmem:[#allocation9 + $0xe0] sm:$0xff]
        %v813 = vld [vmem:[#allocation9 + $0xe8] sm:$0xff]
        %v814 = vld [vmem:[#allocation9 + $0xf0] sm:$0xff]
        %v815 = vld [vmem:[#allocation9 + $0xf8] sm:$0xff]
        %v816 = vld [vmem:[#allocation9 + $0x100] sm:$0xff]
        %v817 = vld [vmem:[#allocation9 + $0x108] sm:$0xff]
        %v818 = vld [vmem:[#allocation9 + $0x110] sm:$0xff]
        %v819 = vld [vmem:[#allocation9 + $0x118] sm:$0xff]
        %v820 = vld [vmem:[#allocation9 + $0x120] sm:$0xff]
        %v821 = vld [vmem:[#allocation9 + $0x128] sm:$0xff]
        %v822 = vld [vmem:[#allocation9 + $0x130] sm:$0xff]
        %v823 = vld [vmem:[#allocation9 + $0x138] sm:$0xff]
        %v824 = vld [vmem:[#allocation9 + $0x140] sm:$0xff]
        %v825 = vld [vmem:[#allocation9 + $0x148] sm:$0xff]
        %v826 = vld [vmem:[#allocation9 + $0x150] sm:$0xff]
        %v827 = vld [vmem:[#allocation9 + $0x158] sm:$0xff]
        %v828 = vld [vmem:[#allocation9 + $0x160] sm:$0xff]
        %v829 = vld [vmem:[#allocation9 + $0x168] sm:$0xff]
        %v830 = vld [vmem:[#allocation9 + $0x170] sm:$0xff]
        %v831 = vld [vmem:[#allocation9 + $0x178] sm:$0xff]
        %v832 = vld [vmem:[%s4] sm:$0x7]
        %v834 = vlaneseq
        %v835 = vshrl.u32 %v834, 7
        %v836 = vsub.s32 0, %v835
        %v837 = vrot.slane %v832, %v836
        %v838 = vlaneseq
        %v839 = vshrl.u32 %v838, 7
        %v840 = vsub.s32 1, %v839
        %v841 = vrot.slane %v832, %v840
        %v842 = vlaneseq
        %v843 = vshrl.u32 %v842, 7
        %v844 = vsub.s32 2, %v843
        %v845 = vrot.slane %v832, %v844
        %849 = vmatprep.subr.mxu0 %v785
        %850 = vmatpush1.msra.mxu0 %v784
        %851 = vmatprep.subr.mxu0 %v788
        %852 = vmatpush1.msra.mxu0 %v787
        %853 = vmatprep.subr.mxu0 %v791
        %854 = vmatpush1.msra.mxu0 %v790
        %855 = vmatprep.subr.mxu0 %v794
        %856 = vmatpush1.msra.mxu0 %v793
        %857 = vmatprep.subr.mxu0 %v797
        %858 = vmatpush1.msra.mxu0 %v796
        %859 = vmatprep.subr.mxu0 %v800
        %860 = vmatpush1.msra.mxu0 %v799
        %861 = vmatprep.subr.mxu0 %v803
        %862 = vmatpush1.msra.mxu0 %v802
        %863 = vmatprep.subr.mxu0 %v806
        %864 = vmatpush1.msra.mxu0 %v805
        %865 = vmatprep.subr.mxu0 %v809
        %866 = vmatpush1.msra.mxu0 %v808
        %867 = vmatprep.subr.mxu0 %v812
        %868 = vmatpush1.msra.mxu0 %v811
        %869 = vmatprep.subr.mxu0 %v815
        %870 = vmatpush1.msra.mxu0 %v814
        %871 = vmatprep.subr.mxu0 %v818
        %872 = vmatpush1.msra.mxu0 %v817
        %873 = vmatprep.subr.mxu0 %v821
        %874 = vmatpush1.msra.mxu0 %v820
        %875 = vmatprep.subr.mxu0 %v824
        %876 = vmatpush1.msra.mxu0 %v823
        %877 = vmatprep.subr.mxu0 %v827
        %878 = vmatpush1.msra.mxu0 %v826
        %879 = vmatprep.subr.mxu0 %v830
        %880 = vmatpush1.msra.mxu0 %v829
        %881 = vmatprep.subr.mxu0 0.0
        %882 = vmatpush1.msra.mxu0 0.0
        %883 = vmatprep.subr.mxu0 0.0
        %884 = vmatpush1.msra.mxu0 0.0
        %885 = vmatprep.subr.mxu0 0.0
        %886 = vmatpush1.msra.mxu0 0.0
        %887 = vmatprep.subr.mxu0 0.0
        %888 = vmatpush1.msra.mxu0 0.0
        %889 = vmatprep.subr.mxu0 0.0
        %890 = vmatpush1.msra.mxu0 0.0
        %891 = vmatprep.subr.mxu0 0.0
        %892 = vmatpush1.msra.mxu0 0.0
        %893 = vmatprep.subr.mxu0 0.0
        %894 = vmatpush1.msra.mxu0 0.0
        %895 = vmatprep.subr.mxu0 0.0
        %896 = vmatpush1.msra.mxu0 0.0
        %897 = vmatprep.subr.mxu0 0.0
        %898 = vmatpush1.msra.mxu0 0.0
        %899 = vmatprep.subr.mxu0 0.0
        %900 = vmatpush1.msra.mxu0 0.0
        %901 = vmatprep.subr.mxu0 0.0
        %902 = vmatpush1.msra.mxu0 0.0
        %903 = vmatprep.subr.mxu0 0.0
        %904 = vmatpush1.msra.mxu0 0.0
        %905 = vmatprep.subr.mxu0 0.0
        %906 = vmatpush1.msra.mxu0 0.0
        %907 = vmatprep.subr.mxu0 0.0
        %908 = vmatpush1.msra.mxu0 0.0
        %909 = vmatprep.subr.mxu0 0.0
        %910 = vmatpush1.msra.mxu0 0.0
        %911 = vmatprep.subr.mxu0 0.0
        %912 = vmatpush1.msra.mxu0 0.0
        %913 = vmatprep.mubr.f32.mxu0 0.0
        %914 = vmatmul.mubr.f32.gmra.mrb[0].mxu0 %v768
        %v915 = vpop.f32.mrb[0].mxu0
        %v916 = vadd.f32 %v837, %v915
        %v917 = vpop.f32.mrb[0].mxu0
        %v918 = vadd.f32 %v841, %v917
        %919 = vmatprep.mubr.f32.mxu0 0.0
        %920 = vmatmul.mubr.f32.gmra.mrb[0].mxu0 %v769
        %v921 = vpop.f32.mrb[0].mxu0
        %v922 = vadd.f32 %v837, %v921
        %v923 = vpop.f32.mrb[0].mxu0
        %v924 = vadd.f32 %v841, %v923
        %925 = vmatprep.mubr.f32.mxu0 0.0
        %926 = vmatmul.mubr.f32.gmra.mrb[0].mxu0 %v770
        %v927 = vpop.f32.mrb[0].mxu0
        %v928 = vadd.f32 %v837, %v927
        %v929 = vpop.f32.mrb[0].mxu0
        %v930 = vadd.f32 %v841, %v929
        %931 = vmatprep.mubr.f32.mxu0 0.0
        %932 = vmatmul.mubr.f32.gmra.mrb[0].mxu0 %v771
        %v933 = vpop.f32.mrb[0].mxu0
        %v934 = vadd.f32 %v837, %v933
        %v935 = vpop.f32.mrb[0].mxu0
        %v936 = vadd.f32 %v841, %v935
        %937 = vmatprep.mubr.f32.mxu0 0.0
        %938 = vmatmul.mubr.f32.gmra.mrb[0].mxu0 %v772
        %v939 = vpop.f32.mrb[0].mxu0
        %v940 = vadd.f32 %v837, %v939
        %v941 = vpop.f32.mrb[0].mxu0
        %v942 = vadd.f32 %v841, %v941
        %943 = vmatprep.mubr.f32.mxu0 0.0
        %944 = vmatmul.mubr.f32.gmra.mrb[0].mxu0 %v773
        %v945 = vpop.f32.mrb[0].mxu0
        %v946 = vadd.f32 %v837, %v945
        %v947 = vpop.f32.mrb[0].mxu0
        %v948 = vadd.f32 %v841, %v947
        %949 = vmatprep.mubr.f32.mxu0 0.0
        %950 = vmatmul.mubr.f32.gmra.mrb[0].mxu0 %v774
        %v951 = vpop.f32.mrb[0].mxu0
        %v952 = vadd.f32 %v837, %v951
        %v953 = vpop.f32.mrb[0].mxu0
        %v954 = vadd.f32 %v841, %v953
        %955 = vmatprep.mubr.f32.mxu0 0.0
        %956 = vmatmul.mubr.f32.gmra.mrb[0].mxu0 %v775
        %v957 = vpop.f32.mrb[0].mxu0
        %v958 = vadd.f32 %v837, %v957
        %v959 = vpop.f32.mrb[0].mxu0
        %v960 = vadd.f32 %v841, %v959
        %961 = vmatprep.mubr.f32.mxu0 0.0
        %962 = vmatmul.mubr.f32.gmra.mrb[0].mxu0 %v776
        %v963 = vpop.f32.mrb[0].mxu0
        %v964 = vadd.f32 %v837, %v963
        %v965 = vpop.f32.mrb[0].mxu0
        %v966 = vadd.f32 %v841, %v965
        %967 = vmatprep.mubr.f32.mxu0 0.0
        %968 = vmatmul.mubr.f32.gmra.mrb[0].mxu0 %v777
        %v969 = vpop.f32.mrb[0].mxu0
        %v970 = vadd.f32 %v837, %v969
        %v971 = vpop.f32.mrb[0].mxu0
        %v972 = vadd.f32 %v841, %v971
        %973 = vmatprep.mubr.f32.mxu0 0.0
        %974 = vmatmul.mubr.f32.gmra.mrb[0].mxu0 %v778
        %v975 = vpop.f32.mrb[0].mxu0
        %v976 = vadd.f32 %v837, %v975
        %v977 = vpop.f32.mrb[0].mxu0
        %v978 = vadd.f32 %v841, %v977
        %979 = vmatprep.mubr.f32.mxu0 0.0
        %980 = vmatmul.mubr.f32.gmra.mrb[0].mxu0 %v779
        %v981 = vpop.f32.mrb[0].mxu0
        %v982 = vadd.f32 %v837, %v981
        %v983 = vpop.f32.mrb[0].mxu0
        %v984 = vadd.f32 %v841, %v983
        %985 = vmatprep.mubr.f32.mxu0 0.0
        %986 = vmatmul.mubr.f32.gmra.mrb[0].mxu0 %v780
        %v987 = vpop.f32.mrb[0].mxu0
        %v988 = vadd.f32 %v837, %v987
        %v989 = vpop.f32.mrb[0].mxu0
        %v990 = vadd.f32 %v841, %v989
        %991 = vmatprep.mubr.f32.mxu0 0.0
        %992 = vmatmul.mubr.f32.gmra.mrb[0].mxu0 %v781
        %v993 = vpop.f32.mrb[0].mxu0
        %v994 = vadd.f32 %v837, %v993
        %v995 = vpop.f32.mrb[0].mxu0
        %v996 = vadd.f32 %v841, %v995
        %997 = vmatprep.mubr.f32.mxu0 0.0
        %998 = vmatmul.mubr.f32.gmra.mrb[0].mxu0 %v782
        %v999 = vpop.f32.mrb[0].mxu0
        %v1000 = vadd.f32 %v837, %v999
        %v1001 = vpop.f32.mrb[0].mxu0
        %v1002 = vadd.f32 %v841, %v1001
        %1003 = vmatprep.mubr.f32.mxu0 0.0
        %1004 = vmatmul.mubr.f32.gmra.mrb[0].mxu0 %v783
        %v1005 = vpop.f32.mrb[0].mxu0
        %v1006 = vadd.f32 %v837, %v1005
        %v1007 = vpop.f32.mrb[0].mxu0
        %v1008 = vadd.f32 %v841, %v1007
        %1009 = vdwg.mxu0
        %1010 = vmatprep.subr.mxu0 0.0
        %1011 = vmatpush1.msra.mxu0 %v786
        %1012 = vmatprep.subr.mxu0 0.0
        %1013 = vmatpush1.msra.mxu0 %v789
        %1014 = vmatprep.subr.mxu0 0.0
        %1015 = vmatpush1.msra.mxu0 %v792
        %1016 = vmatprep.subr.mxu0 0.0
        %1017 = vmatpush1.msra.mxu0 %v795
        %1018 = vmatprep.subr.mxu0 0.0
        %1019 = vmatpush1.msra.mxu0 %v798
        %1020 = vmatprep.subr.mxu0 0.0
        %1021 = vmatpush1.msra.mxu0 %v801
        %1022 = vmatprep.subr.mxu0 0.0
        %1023 = vmatpush1.msra.mxu0 %v804
        %1024 = vmatprep.subr.mxu0 0.0
        %1025 = vmatpush1.msra.mxu0 %v807
        %1026 = vmatprep.subr.mxu0 0.0
        %1027 = vmatpush1.msra.mxu0 %v810
        %1028 = vmatprep.subr.mxu0 0.0
        %1029 = vmatpush1.msra.mxu0 %v813
        %1030 = vmatprep.subr.mxu0 0.0
        %1031 = vmatpush1.msra.mxu0 %v816
        %1032 = vmatprep.subr.mxu0 0.0
        %1033 = vmatpush1.msra.mxu0 %v819
        %1034 = vmatprep.subr.mxu0 0.0
        %1035 = vmatpush1.msra.mxu0 %v822
        %1036 = vmatprep.subr.mxu0 0.0
        %1037 = vmatpush1.msra.mxu0 %v825
        %1038 = vmatprep.subr.mxu0 0.0
        %1039 = vmatpush1.msra.mxu0 %v828
        %1040 = vmatprep.subr.mxu0 0.0
        %1041 = vmatpush1.msra.mxu0 %v831
        %1042 = vmatprep.subr.mxu0 0.0
        %1043 = vmatpush1.msra.mxu0 0.0
        %1044 = vmatprep.subr.mxu0 0.0
        %1045 = vmatpush1.msra.mxu0 0.0
        %1046 = vmatprep.subr.mxu0 0.0
        %1047 = vmatpush1.msra.mxu0 0.0
        %1048 = vmatprep.subr.mxu0 0.0
        %1049 = vmatpush1.msra.mxu0 0.0
        %1050 = vmatprep.subr.mxu0 0.0
        %1051 = vmatpush1.msra.mxu0 0.0
        %1052 = vmatprep.subr.mxu0 0.0
        %1053 = vmatpush1.msra.mxu0 0.0
        %1054 = vmatprep.subr.mxu0 0.0
        %1055 = vmatpush1.msra.mxu0 0.0
        %1056 = vmatprep.subr.mxu0 0.0
        %1057 = vmatpush1.msra.mxu0 0.0
        %1058 = vmatprep.subr.mxu0 0.0
        %1059 = vmatpush1.msra.mxu0 0.0
        %1060 = vmatprep.subr.mxu0 0.0
        %1061 = vmatpush1.msra.mxu0 0.0
        %1062 = vmatprep.subr.mxu0 0.0
        %1063 = vmatpush1.msra.mxu0 0.0
        %1064 = vmatprep.subr.mxu0 0.0
        %1065 = vmatpush1.msra.mxu0 0.0
        %1066 = vmatprep.subr.mxu0 0.0
        %1067 = vmatpush1.msra.mxu0 0.0
        %1068 = vmatprep.subr.mxu0 0.0
        %1069 = vmatpush1.msra.mxu0 0.0
        %1070 = vmatprep.subr.mxu0 0.0
        %1071 = vmatpush1.msra.mxu0 0.0
        %1072 = vmatprep.subr.mxu0 0.0
        %1073 = vmatpush1.msra.mxu0 0.0
        %1074 = vmatprep.mubr.f32.mxu0 0.0
        %1075 = vmatmul.mubr.f32.gmra.mrb[0].mxu0 %v768
        %v1076 = vpop.f32.mrb[0].mxu0
        %v1077 = vadd.f32 %v845, %v1076
        %v1078 = vpop.f32.mrb[0].mxu0
        %1079 = vmatprep.mubr.f32.mxu0 0.0
        %1080 = vmatmul.mubr.f32.gmra.mrb[0].mxu0 %v769
        %v1081 = vpop.f32.mrb[0].mxu0
        %v1082 = vadd.f32 %v845, %v1081
        %v1083 = vpop.f32.mrb[0].mxu0
        %1084 = vmatprep.mubr.f32.mxu0 0.0
        %1085 = vmatmul.mubr.f32.gmra.mrb[0].mxu0 %v770
        %v1086 = vpop.f32.mrb[0].mxu0
        %v1087 = vadd.f32 %v845, %v1086
        %v1088 = vpop.f32.mrb[0].mxu0
        %1089 = vmatprep.mubr.f32.mxu0 0.0
        %1090 = vmatmul.mubr.f32.gmra.mrb[0].mxu0 %v771
        %v1091 = vpop.f32.mrb[0].mxu0
        %v1092 = vadd.f32 %v845, %v1091
        %v1093 = vpop.f32.mrb[0].mxu0
        %1094 = vmatprep.mubr.f32.mxu0 0.0
        %1095 = vmatmul.mubr.f32.gmra.mrb[0].mxu0 %v772
        %v1096 = vpop.f32.mrb[0].mxu0
        %v1097 = vadd.f32 %v845, %v1096
        %v1098 = vpop.f32.mrb[0].mxu0
        %1099 = vmatprep.mubr.f32.mxu0 0.0
        %1100 = vmatmul.mubr.f32.gmra.mrb[0].mxu0 %v773
        %v1101 = vpop.f32.mrb[0].mxu0
        %v1102 = vadd.f32 %v845, %v1101
        %v1103 = vpop.f32.mrb[0].mxu0
        %1104 = vmatprep.mubr.f32.mxu0 0.0
        %1105 = vmatmul.mubr.f32.gmra.mrb[0].mxu0 %v774
        %v1106 = vpop.f32.mrb[0].mxu0
        %v1107 = vadd.f32 %v845, %v1106
        %v1108 = vpop.f32.mrb[0].mxu0
        %1109 = vmatprep.mubr.f32.mxu0 0.0
        %1110 = vmatmul.mubr.f32.gmra.mrb[0].mxu0 %v775
        %v1111 = vpop.f32.mrb[0].mxu0
        %v1112 = vadd.f32 %v845, %v1111
        %v1113 = vpop.f32.mrb[0].mxu0
        %1114 = vmatprep.mubr.f32.mxu0 0.0
        %1115 = vmatmul.mubr.f32.gmra.mrb[0].mxu0 %v776
        %v1116 = vpop.f32.mrb[0].mxu0
        %v1117 = vadd.f32 %v845, %v1116
        %v1118 = vpop.f32.mrb[0].mxu0
        %1119 = vmatprep.mubr.f32.mxu0 0.0
        %1120 = vmatmul.mubr.f32.gmra.mrb[0].mxu0 %v777
        %v1121 = vpop.f32.mrb[0].mxu0
        %v1122 = vadd.f32 %v845, %v1121
        %v1123 = vpop.f32.mrb[0].mxu0
        %1124 = vmatprep.mubr.f32.mxu0 0.0
        %1125 = vmatmul.mubr.f32.gmra.mrb[0].mxu0 %v778
        %v1126 = vpop.f32.mrb[0].mxu0
        %v1127 = vadd.f32 %v845, %v1126
        %v1128 = vpop.f32.mrb[0].mxu0
        %1129 = vmatprep.mubr.f32.mxu0 0.0
        %1130 = vmatmul.mubr.f32.gmra.mrb[0].mxu0 %v779
        %v1131 = vpop.f32.mrb[0].mxu0
        %v1132 = vadd.f32 %v845, %v1131
        %v1133 = vpop.f32.mrb[0].mxu0
        %1134 = vmatprep.mubr.f32.mxu0 0.0
        %1135 = vmatmul.mubr.f32.gmra.mrb[0].mxu0 %v780
        %v1136 = vpop.f32.mrb[0].mxu0
        %v1137 = vadd.f32 %v845, %v1136
        %v1138 = vpop.f32.mrb[0].mxu0
        %1139 = vmatprep.mubr.f32.mxu0 0.0
        %1140 = vmatmul.mubr.f32.gmra.mrb[0].mxu0 %v781
        %v1141 = vpop.f32.mrb[0].mxu0
        %v1142 = vadd.f32 %v845, %v1141
        %v1143 = vpop.f32.mrb[0].mxu0
        %1144 = vmatprep.mubr.f32.mxu0 0.0
        %1145 = vmatmul.mubr.f32.gmra.mrb[0].mxu0 %v782
        %v1146 = vpop.f32.mrb[0].mxu0
        %v1147 = vadd.f32 %v845, %v1146
        %v1148 = vpop.f32.mrb[0].mxu0
        %1149 = vmatprep.mubr.f32.mxu0 0.0
        %1150 = vmatmul.mubr.f32.gmra.mrb[0].mxu0 %v783
        %v1151 = vpop.f32.mrb[0].mxu0
        %v1152 = vadd.f32 %v845, %v1151
        %v1153 = vpop.f32.mrb[0].mxu0
        %1154 = vdwg.mxu0
        %v1155 = vlaneseq
        %v1156 = vshrl.u32 %v1155, 7
        %v1157 = vadd.s32 %v1156, 8
        %v1158 = vadd.s32 %v1156, 16
        %v1159 = vadd.s32 %v1156, 24
        %v1160 = vadd.s32 %v1156, 32
        %v1161 = vadd.s32 %v1156, 40
        %v1162 = vadd.s32 %v1156, 48
        %v1163 = vadd.s32 %v1156, 56
        %v1164 = vlaneseq
        %v1165 = vand.u32 %v1164, 127
        %vm1166 = vcmp.le.s32.totalorder %v1165, %v1156
        %vm1167 = vcmp.le.s32.totalorder %v1165, %v1157
        %vm1168 = vcmp.le.s32.totalorder %v1165, %v1158
        %vm1169 = vcmp.le.s32.totalorder %v1165, %v1159
        %vm1170 = vcmp.le.s32.totalorder %v1165, %v1160
        %vm1171 = vcmp.le.s32.totalorder %v1165, %v1161
        %vm1172 = vcmp.le.s32.totalorder %v1165, %v1162
        %vm1173 = vcmp.le.s32.totalorder %v1165, %v1163
        %vm1174 = vcmask 261120
        %v1176 = vsel %vm1174, %v916, 0
        %v1179 = vsel %vm1174, %v922, 0
        %v1182 = vsel %vm1174, %v928, 0
        %v1185 = vsel %vm1174, %v934, 0
        %v1188 = vsel %vm1174, %v940, 0
        %v1191 = vsel %vm1174, %v946, 0
        %v1194 = vsel %vm1174, %v952, 0
        %v1197 = vsel %vm1174, %v958, 0
        %v1200 = vsel %vm1174, %v918, 0
        %v1203 = vsel %vm1174, %v924, 0
        %v1206 = vsel %vm1174, %v930, 0
        %v1209 = vsel %vm1174, %v936, 0
        %v1212 = vsel %vm1174, %v942, 0
        %v1215 = vsel %vm1174, %v948, 0
        %v1218 = vsel %vm1174, %v954, 0
        %v1221 = vsel %vm1174, %v960, 0
        %1223 = vmatprep.subr.mxu0 0.0
        %1224 = vmatpush1.xpose.msra.mxu0 %v1200
        %1225 = vmatprep.subr.mxu0 0.0
        %1226 = vmatpush1.xpose.msra.mxu0 %v1203
        %1227 = vmatprep.subr.mxu0 0.0
        %1228 = vmatpush1.xpose.msra.mxu0 %v1206
        %1229 = vmatprep.subr.mxu0 0.0
        %1230 = vmatpush1.xpose.msra.mxu0 %v1209
        %1231 = vmatprep.subr.mxu0 0.0
        %1232 = vmatpush1.xpose.msra.mxu0 %v1212
        %1233 = vmatprep.subr.mxu0 0.0
        %1234 = vmatpush1.xpose.msra.mxu0 %v1215
        %1235 = vmatprep.subr.mxu0 0.0
        %1236 = vmatpush1.xpose.msra.mxu0 %v1218
        %1237 = vmatprep.subr.mxu0 0.0
        %1238 = vmatpush1.xpose.msra.mxu0 %v1221
        %1239 = vmatprep.subr.mxu0 0.0
        %1240 = vmatpush1.xpose.msra.mxu0 0.0
        %1241 = vmatprep.subr.mxu0 0.0
        %1242 = vmatpush1.xpose.msra.mxu0 0.0
        %1243 = vmatprep.subr.mxu0 0.0
        %1244 = vmatpush1.xpose.msra.mxu0 0.0
        %1245 = vmatprep.subr.mxu0 0.0
        %1246 = vmatpush1.xpose.msra.mxu0 0.0
        %1247 = vmatprep.subr.mxu0 0.0
        %1248 = vmatpush1.xpose.msra.mxu0 0.0
        %1249 = vmatprep.subr.mxu0 0.0
        %1250 = vmatpush1.xpose.msra.mxu0 0.0
        %1251 = vmatprep.subr.mxu0 0.0
        %1252 = vmatpush1.xpose.msra.mxu0 0.0
        %1253 = vmatprep.subr.mxu0 0.0
        %1254 = vmatpush1.xpose.msra.mxu0 0.0
        %1255 = vmatprep.subr.mxu0 0.0
        %1256 = vmatpush1.xpose.msra.mxu0 0.0
        %1257 = vmatprep.subr.mxu0 0.0
        %1258 = vmatpush1.xpose.msra.mxu0 0.0
        %1259 = vmatprep.subr.mxu0 0.0
        %1260 = vmatpush1.xpose.msra.mxu0 0.0
        %1261 = vmatprep.subr.mxu0 0.0
        %1262 = vmatpush1.xpose.msra.mxu0 0.0
        %1263 = vmatprep.subr.mxu0 0.0
        %1264 = vmatpush1.xpose.msra.mxu0 0.0
        %1265 = vmatprep.subr.mxu0 0.0
        %1266 = vmatpush1.xpose.msra.mxu0 0.0
        %1267 = vmatprep.subr.mxu0 0.0
        %1268 = vmatpush1.xpose.msra.mxu0 0.0
        %1269 = vmatprep.subr.mxu0 0.0
        %1270 = vmatpush1.xpose.msra.mxu0 0.0
        %1271 = vmatprep.subr.mxu0 0.0
        %1272 = vmatpush1.xpose.msra.mxu0 0.0
        %1273 = vmatprep.subr.mxu0 0.0
        %1274 = vmatpush1.xpose.msra.mxu0 0.0
        %1275 = vmatprep.subr.mxu0 0.0
        %1276 = vmatpush1.xpose.msra.mxu0 0.0
        %1277 = vmatprep.subr.mxu0 0.0
        %1278 = vmatpush1.xpose.msra.mxu0 0.0
        %1279 = vmatprep.subr.mxu0 0.0
        %1280 = vmatpush1.xpose.msra.mxu0 0.0
        %1281 = vmatprep.subr.mxu0 0.0
        %1282 = vmatpush1.xpose.msra.mxu0 0.0
        %1283 = vmatprep.subr.mxu0 0.0
        %1284 = vmatpush1.xpose.msra.mxu0 0.0
        %1285 = vmatprep.subr.mxu0 0.0
        %1286 = vmatpush1.xpose.msra.mxu0 0.0
        %1287 = vmatprep.mubr.f32.mxu0 0.0
        %1288 = vmatmul.mubr.f32.gmra.mrb[0].mxu0 %v1176
        %v1289 = vpop.f32.mrb[0].mxu0
        %v1290 = vadd.f32 0.0, %v1289
        %v1291 = vpop.f32.mrb[0].mxu0
        %1292 = vmatprep.mubr.f32.mxu0 0.0
        %1293 = vmatmul.mubr.f32.gmra.mrb[0].mxu0 %v1179
        %v1294 = vpop.f32.mrb[0].mxu0
        %v1295 = vadd.f32 0.0, %v1294
        %v1296 = vpop.f32.mrb[0].mxu0
        %1297 = vmatprep.mubr.f32.mxu0 0.0
        %1298 = vmatmul.mubr.f32.gmra.mrb[0].mxu0 %v1182
        %v1299 = vpop.f32.mrb[0].mxu0
        %v1300 = vadd.f32 0.0, %v1299
        %v1301 = vpop.f32.mrb[0].mxu0
        %1302 = vmatprep.mubr.f32.mxu0 0.0
        %1303 = vmatmul.mubr.f32.gmra.mrb[0].mxu0 %v1185
        %v1304 = vpop.f32.mrb[0].mxu0
        %v1305 = vadd.f32 0.0, %v1304
        %v1306 = vpop.f32.mrb[0].mxu0
        %1307 = vmatprep.mubr.f32.mxu0 0.0
        %1308 = vmatmul.mubr.f32.gmra.mrb[0].mxu0 %v1188
        %v1309 = vpop.f32.mrb[0].mxu0
        %v1310 = vadd.f32 0.0, %v1309
        %v1311 = vpop.f32.mrb[0].mxu0
        %1312 = vmatprep.mubr.f32.mxu0 0.0
        %1313 = vmatmul.mubr.f32.gmra.mrb[0].mxu0 %v1191
        %v1314 = vpop.f32.mrb[0].mxu0
        %v1315 = vadd.f32 0.0, %v1314
        %v1316 = vpop.f32.mrb[0].mxu0
        %1317 = vmatprep.mubr.f32.mxu0 0.0
        %1318 = vmatmul.mubr.f32.gmra.mrb[0].mxu0 %v1194
        %v1319 = vpop.f32.mrb[0].mxu0
        %v1320 = vadd.f32 0.0, %v1319
        %v1321 = vpop.f32.mrb[0].mxu0
        %1322 = vmatprep.mubr.f32.mxu0 0.0
        %1323 = vmatmul.mubr.f32.gmra.mrb[0].mxu0 %v1197
        %v1324 = vpop.f32.mrb[0].mxu0
        %v1325 = vadd.f32 0.0, %v1324
        %v1326 = vpop.f32.mrb[0].mxu0
        %1327 = vdwg.mxu0
        %v1329 = vsel %vm1174, %v964, 0
        %v1332 = vsel %vm1174, %v970, 0
        %v1335 = vsel %vm1174, %v976, 0
        %v1338 = vsel %vm1174, %v982, 0
        %v1341 = vsel %vm1174, %v988, 0
        %v1344 = vsel %vm1174, %v994, 0
        %v1347 = vsel %vm1174, %v1000, 0
        %v1350 = vsel %vm1174, %v1006, 0
        %v1353 = vsel %vm1174, %v966, 0
        %v1356 = vsel %vm1174, %v972, 0
        %v1359 = vsel %vm1174, %v978, 0
        %v1362 = vsel %vm1174, %v984, 0
        %v1365 = vsel %vm1174, %v990, 0
        %v1368 = vsel %vm1174, %v996, 0
        %v1371 = vsel %vm1174, %v1002, 0
        %v1374 = vsel %vm1174, %v1008, 0
        %1376 = vmatprep.subr.mxu0 0.0
        %1377 = vmatpush1.xpose.msra.mxu0 %v1353
        %1378 = vmatprep.subr.mxu0 0.0
        %1379 = vmatpush1.xpose.msra.mxu0 %v1356
        %1380 = vmatprep.subr.mxu0 0.0
        %1381 = vmatpush1.xpose.msra.mxu0 %v1359
        %1382 = vmatprep.subr.mxu0 0.0
        %1383 = vmatpush1.xpose.msra.mxu0 %v1362
        %1384 = vmatprep.subr.mxu0 0.0
        %1385 = vmatpush1.xpose.msra.mxu0 %v1365
        %1386 = vmatprep.subr.mxu0 0.0
        %1387 = vmatpush1.xpose.msra.mxu0 %v1368
        %1388 = vmatprep.subr.mxu0 0.0
        %1389 = vmatpush1.xpose.msra.mxu0 %v1371
        %1390 = vmatprep.subr.mxu0 0.0
        %1391 = vmatpush1.xpose.msra.mxu0 %v1374
        %1392 = vmatprep.subr.mxu0 0.0
        %1393 = vmatpush1.xpose.msra.mxu0 0.0
        %1394 = vmatprep.subr.mxu0 0.0
        %1395 = vmatpush1.xpose.msra.mxu0 0.0
        %1396 = vmatprep.subr.mxu0 0.0
        %1397 = vmatpush1.xpose.msra.mxu0 0.0
        %1398 = vmatprep.subr.mxu0 0.0
        %1399 = vmatpush1.xpose.msra.mxu0 0.0
        %1400 = vmatprep.subr.mxu0 0.0
        %1401 = vmatpush1.xpose.msra.mxu0 0.0
        %1402 = vmatprep.subr.mxu0 0.0
        %1403 = vmatpush1.xpose.msra.mxu0 0.0
        %1404 = vmatprep.subr.mxu0 0.0
        %1405 = vmatpush1.xpose.msra.mxu0 0.0
        %1406 = vmatprep.subr.mxu0 0.0
        %1407 = vmatpush1.xpose.msra.mxu0 0.0
        %1408 = vmatprep.subr.mxu0 0.0
        %1409 = vmatpush1.xpose.msra.mxu0 0.0
        %1410 = vmatprep.subr.mxu0 0.0
        %1411 = vmatpush1.xpose.msra.mxu0 0.0
        %1412 = vmatprep.subr.mxu0 0.0
        %1413 = vmatpush1.xpose.msra.mxu0 0.0
        %1414 = vmatprep.subr.mxu0 0.0
        %1415 = vmatpush1.xpose.msra.mxu0 0.0
        %1416 = vmatprep.subr.mxu0 0.0
        %1417 = vmatpush1.xpose.msra.mxu0 0.0
        %1418 = vmatprep.subr.mxu0 0.0
        %1419 = vmatpush1.xpose.msra.mxu0 0.0
        %1420 = vmatprep.subr.mxu0 0.0
        %1421 = vmatpush1.xpose.msra.mxu0 0.0
        %1422 = vmatprep.subr.mxu0 0.0
        %1423 = vmatpush1.xpose.msra.mxu0 0.0
        %1424 = vmatprep.subr.mxu0 0.0
        %1425 = vmatpush1.xpose.msra.mxu0 0.0
        %1426 = vmatprep.subr.mxu0 0.0
        %1427 = vmatpush1.xpose.msra.mxu0 0.0
        %1428 = vmatprep.subr.mxu0 0.0
        %1429 = vmatpush1.xpose.msra.mxu0 0.0
        %1430 = vmatprep.subr.mxu0 0.0
        %1431 = vmatpush1.xpose.msra.mxu0 0.0
        %1432 = vmatprep.subr.mxu0 0.0
        %1433 = vmatpush1.xpose.msra.mxu0 0.0
        %1434 = vmatprep.subr.mxu0 0.0
        %1435 = vmatpush1.xpose.msra.mxu0 0.0
        %1436 = vmatprep.subr.mxu0 0.0
        %1437 = vmatpush1.xpose.msra.mxu0 0.0
        %1438 = vmatprep.subr.mxu0 0.0
        %1439 = vmatpush1.xpose.msra.mxu0 0.0
        %1440 = vmatprep.mubr.f32.mxu0 0.0
        %1441 = vmatmul.mubr.f32.gmra.mrb[0].mxu0 %v1329
        %v1442 = vpop.f32.mrb[0].mxu0
        %v1443 = vadd.f32 0.0, %v1442
        %v1444 = vpop.f32.mrb[0].mxu0
        %1445 = vmatprep.mubr.f32.mxu0 0.0
        %1446 = vmatmul.mubr.f32.gmra.mrb[0].mxu0 %v1332
        %v1447 = vpop.f32.mrb[0].mxu0
        %v1448 = vadd.f32 0.0, %v1447
        %v1449 = vpop.f32.mrb[0].mxu0
        %1450 = vmatprep.mubr.f32.mxu0 0.0
        %1451 = vmatmul.mubr.f32.gmra.mrb[0].mxu0 %v1335
        %v1452 = vpop.f32.mrb[0].mxu0
        %v1453 = vadd.f32 0.0, %v1452
        %v1454 = vpop.f32.mrb[0].mxu0
        %1455 = vmatprep.mubr.f32.mxu0 0.0
        %1456 = vmatmul.mubr.f32.gmra.mrb[0].mxu0 %v1338
        %v1457 = vpop.f32.mrb[0].mxu0
        %v1458 = vadd.f32 0.0, %v1457
        %v1459 = vpop.f32.mrb[0].mxu0
        %1460 = vmatprep.mubr.f32.mxu0 0.0
        %1461 = vmatmul.mubr.f32.gmra.mrb[0].mxu0 %v1341
        %v1462 = vpop.f32.mrb[0].mxu0
        %v1463 = vadd.f32 0.0, %v1462
        %v1464 = vpop.f32.mrb[0].mxu0
        %1465 = vmatprep.mubr.f32.mxu0 0.0
        %1466 = vmatmul.mubr.f32.gmra.mrb[0].mxu0 %v1344
        %v1467 = vpop.f32.mrb[0].mxu0
        %v1468 = vadd.f32 0.0, %v1467
        %v1469 = vpop.f32.mrb[0].mxu0
        %1470 = vmatprep.mubr.f32.mxu0 0.0
        %1471 = vmatmul.mubr.f32.gmra.mrb[0].mxu0 %v1347
        %v1472 = vpop.f32.mrb[0].mxu0
        %v1473 = vadd.f32 0.0, %v1472
        %v1474 = vpop.f32.mrb[0].mxu0
        %1475 = vmatprep.mubr.f32.mxu0 0.0
        %1476 = vmatmul.mubr.f32.gmra.mrb[0].mxu0 %v1350
        %v1477 = vpop.f32.mrb[0].mxu0
        %v1478 = vadd.f32 0.0, %v1477
        %v1479 = vpop.f32.mrb[0].mxu0
        %1480 = vdwg.mxu0
        %v1481 = vsel %vm1166, 1, 0
        %v1482 = vsel %vm1167, 1, 0
        %v1483 = vsel %vm1168, 1, 0
        %v1484 = vsel %vm1169, 1, 0
        %v1485 = vsel %vm1170, 1, 0
        %v1486 = vsel %vm1171, 1, 0
        %v1487 = vsel %vm1172, 1, 0
        %v1488 = vsel %vm1173, 1, 0
        %vm1489 = vcmp.eq.s32.totalorder %v1481, 1
        %vm1490 = vcmp.eq.s32.totalorder %v1482, 1
        %vm1491 = vcmp.eq.s32.totalorder %v1483, 1
        %vm1492 = vcmp.eq.s32.totalorder %v1484, 1
        %vm1493 = vcmp.eq.s32.totalorder %v1485, 1
        %vm1494 = vcmp.eq.s32.totalorder %v1486, 1
        %vm1495 = vcmp.eq.s32.totalorder %v1487, 1
        %vm1496 = vcmp.eq.s32.totalorder %v1488, 1
        %v1497 = vsel %vm1489, %v1290, -3.4028235e+38
        %v1498 = vsel %vm1490, %v1295, -3.4028235e+38
        %v1499 = vsel %vm1491, %v1300, -3.4028235e+38
        %v1500 = vsel %vm1492, %v1305, -3.4028235e+38
        %v1501 = vsel %vm1493, %v1310, -3.4028235e+38
        %v1502 = vsel %vm1494, %v1315, -3.4028235e+38
        %v1503 = vsel %vm1495, %v1320, -3.4028235e+38
        %v1504 = vsel %vm1496, %v1325, -3.4028235e+38
        %v1505 = vsel %vm1489, %v1443, -3.4028235e+38
        %v1506 = vsel %vm1490, %v1448, -3.4028235e+38
        %v1507 = vsel %vm1491, %v1453, -3.4028235e+38
        %v1508 = vsel %vm1492, %v1458, -3.4028235e+38
        %v1509 = vsel %vm1493, %v1463, -3.4028235e+38
        %v1510 = vsel %vm1494, %v1468, -3.4028235e+38
        %v1511 = vsel %vm1495, %v1473, -3.4028235e+38
        %v1512 = vsel %vm1496, %v1478, -3.4028235e+38
        %vm1513 = vcmask 523264
        %v1514 = vsel %vm1513, %v1497, -inf
        %1515 = vmax.xlane.f32.xlu0 %v1514
        %v1516 = vpop.xlane.xlu0 %1515
        %v1517 = vsel %vm1513, %v1498, -inf
        %1518 = vmax.xlane.f32.xlu0 %v1517
        %v1519 = vpop.xlane.xlu0 %1518
        %v1520 = vsel %vm1513, %v1499, -inf
        %1521 = vmax.xlane.f32.xlu0 %v1520
        %v1522 = vpop.xlane.xlu0 %1521
        %v1523 = vsel %vm1513, %v1500, -inf
        %1524 = vmax.xlane.f32.xlu0 %v1523
        %v1525 = vpop.xlane.xlu0 %1524
        %v1526 = vsel %vm1513, %v1501, -inf
        %1527 = vmax.xlane.f32.xlu0 %v1526
        %v1528 = vpop.xlane.xlu0 %1527
        %v1529 = vsel %vm1513, %v1502, -inf
        %1530 = vmax.xlane.f32.xlu0 %v1529
        %v1531 = vpop.xlane.xlu0 %1530
        %v1532 = vsel %vm1513, %v1503, -inf
        %1533 = vmax.xlane.f32.xlu0 %v1532
        %v1534 = vpop.xlane.xlu0 %1533
        %v1535 = vsel %vm1513, %v1504, -inf
        %1536 = vmax.xlane.f32.xlu0 %v1535
        %v1537 = vpop.xlane.xlu0 %1536
        %v1538 = vsel %vm1513, %v1505, -inf
        %1539 = vmax.xlane.f32.xlu0 %v1538
        %v1540 = vpop.xlane.xlu0 %1539
        %v1541 = vsel %vm1513, %v1506, -inf
        %1542 = vmax.xlane.f32.xlu0 %v1541
        %v1543 = vpop.xlane.xlu0 %1542
        %v1544 = vsel %vm1513, %v1507, -inf
        %1545 = vmax.xlane.f32.xlu0 %v1544
        %v1546 = vpop.xlane.xlu0 %1545
        %v1547 = vsel %vm1513, %v1508, -inf
        %1548 = vmax.xlane.f32.xlu0 %v1547
        %v1549 = vpop.xlane.xlu0 %1548
        %v1550 = vsel %vm1513, %v1509, -inf
        %1551 = vmax.xlane.f32.xlu0 %v1550
        %v1552 = vpop.xlane.xlu0 %1551
        %v1553 = vsel %vm1513, %v1510, -inf
        %1554 = vmax.xlane.f32.xlu0 %v1553
        %v1555 = vpop.xlane.xlu0 %1554
        %v1556 = vsel %vm1513, %v1511, -inf
        %1557 = vmax.xlane.f32.xlu0 %v1556
        %v1558 = vpop.xlane.xlu0 %1557
        %v1559 = vsel %vm1513, %v1512, -inf
        %1560 = vmax.xlane.f32.xlu0 %v1559
        %v1561 = vpop.xlane.xlu0 %1560
        %v1562 = vsub.f32 %v1497, %v1516
        %v1563 = vsub.f32 %v1498, %v1519
        %v1564 = vsub.f32 %v1499, %v1522
        %v1565 = vsub.f32 %v1500, %v1525
        %v1566 = vsub.f32 %v1501, %v1528
        %v1567 = vsub.f32 %v1502, %v1531
        %v1568 = vsub.f32 %v1503, %v1534
        %v1569 = vsub.f32 %v1504, %v1537
        %v1570 = vsub.f32 %v1505, %v1540
        %v1571 = vsub.f32 %v1506, %v1543
        %v1572 = vsub.f32 %v1507, %v1546
        %v1573 = vsub.f32 %v1508, %v1549
        %v1574 = vsub.f32 %v1509, %v1552
        %v1575 = vsub.f32 %v1510, %v1555
        %v1576 = vsub.f32 %v1511, %v1558
        %v1577 = vsub.f32 %v1512, %v1561
        %v1578 = vmul.f32 %v1562, 1.442695
        %v1579 = vpow.pop %v1578
        %v1580 = vmul.f32 %v1563, 1.442695
        %v1581 = vpow.pop %v1580
        %v1582 = vmul.f32 %v1564, 1.442695
        %v1583 = vpow.pop %v1582
        %v1584 = vmul.f32 %v1565, 1.442695
        %v1585 = vpow.pop %v1584
        %v1586 = vmul.f32 %v1566, 1.442695
        %v1587 = vpow.pop %v1586
        %v1588 = vmul.f32 %v1567, 1.442695
        %v1589 = vpow.pop %v1588
        %v1590 = vmul.f32 %v1568, 1.442695
        %v1591 = vpow.pop %v1590
        %v1592 = vmul.f32 %v1569, 1.442695
        %v1593 = vpow.pop %v1592
        %v1594 = vmul.f32 %v1570, 1.442695
        %v1595 = vpow.pop %v1594
        %v1596 = vmul.f32 %v1571, 1.442695
        %v1597 = vpow.pop %v1596
        %v1598 = vmul.f32 %v1572, 1.442695
        %v1599 = vpow.pop %v1598
        %v1600 = vmul.f32 %v1573, 1.442695
        %v1601 = vpow.pop %v1600
        %v1602 = vmul.f32 %v1574, 1.442695
        %v1603 = vpow.pop %v1602
        %v1604 = vmul.f32 %v1575, 1.442695
        %v1605 = vpow.pop %v1604
        %v1606 = vmul.f32 %v1576, 1.442695
        %v1607 = vpow.pop %v1606
        %v1608 = vmul.f32 %v1577, 1.442695
        %v1609 = vpow.pop %v1608
        %v1610 = vsel %vm1513, %v1579, 0.0
        %1611 = vadd.xlane.f32.xlu0 %v1610
        %v1612 = vpop.xlane.xlu0 %1611
        %v1613 = vsel %vm1513, %v1581, 0.0
        %1614 = vadd.xlane.f32.xlu0 %v1613
        %v1615 = vpop.xlane.xlu0 %1614
        %v1616 = vsel %vm1513, %v1583, 0.0
        %1617 = vadd.xlane.f32.xlu0 %v1616
        %v1618 = vpop.xlane.xlu0 %1617
        %v1619 = vsel %vm1513, %v1585, 0.0
        %1620 = vadd.xlane.f32.xlu0 %v1619
        %v1621 = vpop.xlane.xlu0 %1620
        %v1622 = vsel %vm1513, %v1587, 0.0
        %1623 = vadd.xlane.f32.xlu0 %v1622
        %v1624 = vpop.xlane.xlu0 %1623
        %v1625 = vsel %vm1513, %v1589, 0.0
        %1626 = vadd.xlane.f32.xlu0 %v1625
        %v1627 = vpop.xlane.xlu0 %1626
        %v1628 = vsel %vm1513, %v1591, 0.0
        %1629 = vadd.xlane.f32.xlu0 %v1628
        %v1630 = vpop.xlane.xlu0 %1629
        %v1631 = vsel %vm1513, %v1593, 0.0
        %1632 = vadd.xlane.f32.xlu0 %v1631
        %v1633 = vpop.xlane.xlu0 %1632
        %v1634 = vsel %vm1513, %v1595, 0.0
        %1635 = vadd.xlane.f32.xlu0 %v1634
        %v1636 = vpop.xlane.xlu0 %1635
        %v1637 = vsel %vm1513, %v1597, 0.0
        %1638 = vadd.xlane.f32.xlu0 %v1637
        %v1639 = vpop.xlane.xlu0 %1638
        %v1640 = vsel %vm1513, %v1599, 0.0
        %1641 = vadd.xlane.f32.xlu0 %v1640
        %v1642 = vpop.xlane.xlu0 %1641
        %v1643 = vsel %vm1513, %v1601, 0.0
        %1644 = vadd.xlane.f32.xlu0 %v1643
        %v1645 = vpop.xlane.xlu0 %1644
        %v1646 = vsel %vm1513, %v1603, 0.0
        %1647 = vadd.xlane.f32.xlu0 %v1646
        %v1648 = vpop.xlane.xlu0 %1647
        %v1649 = vsel %vm1513, %v1605, 0.0
        %1650 = vadd.xlane.f32.xlu0 %v1649
        %v1651 = vpop.xlane.xlu0 %1650
        %v1652 = vsel %vm1513, %v1607, 0.0
        %1653 = vadd.xlane.f32.xlu0 %v1652
        %v1654 = vpop.xlane.xlu0 %1653
        %v1655 = vsel %vm1513, %v1609, 0.0
        %1656 = vadd.xlane.f32.xlu0 %v1655
        %v1657 = vpop.xlane.xlu0 %1656
        %v1658 = vrcp.pop %v1612
        %v1659 = vrcp.pop %v1615
        %v1660 = vrcp.pop %v1618
        %v1661 = vrcp.pop %v1621
        %v1662 = vrcp.pop %v1624
        %v1663 = vrcp.pop %v1627
        %v1664 = vrcp.pop %v1630
        %v1665 = vrcp.pop %v1633
        %v1666 = vrcp.pop %v1636
        %v1667 = vrcp.pop %v1639
        %v1668 = vrcp.pop %v1642
        %v1669 = vrcp.pop %v1645
        %v1670 = vrcp.pop %v1648
        %v1671 = vrcp.pop %v1651
        %v1672 = vrcp.pop %v1654
        %v1673 = vrcp.pop %v1657
        %v1674 = vmul.f32 %v1579, %v1658
        %v1675 = vmul.f32 %v1581, %v1659
        %v1676 = vmul.f32 %v1583, %v1660
        %v1677 = vmul.f32 %v1585, %v1661
        %v1678 = vmul.f32 %v1587, %v1662
        %v1679 = vmul.f32 %v1589, %v1663
        %v1680 = vmul.f32 %v1591, %v1664
        %v1681 = vmul.f32 %v1593, %v1665
        %v1682 = vmul.f32 %v1595, %v1666
        %v1683 = vmul.f32 %v1597, %v1667
        %v1684 = vmul.f32 %v1599, %v1668
        %v1685 = vmul.f32 %v1601, %v1669
        %v1686 = vmul.f32 %v1603, %v1670
        %v1687 = vmul.f32 %v1605, %v1671
        %v1688 = vmul.f32 %v1607, %v1672
        %v1689 = vmul.f32 %v1609, %v1673
        %v1691 = vsel %vm1513, %v1674, 0
        %v1694 = vsel %vm1513, %v1675, 0
        %v1697 = vsel %vm1513, %v1676, 0
        %v1700 = vsel %vm1513, %v1677, 0
        %v1703 = vsel %vm1513, %v1678, 0
        %v1706 = vsel %vm1513, %v1679, 0
        %v1709 = vsel %vm1513, %v1680, 0
        %v1712 = vsel %vm1513, %v1681, 0
        %1714 = vmatprep.subr.mxu0 0.0
        %1715 = vmatpush1.msra.mxu0 %v1077
        %1716 = vmatprep.subr.mxu0 0.0
        %1717 = vmatpush1.msra.mxu0 %v1082
        %1718 = vmatprep.subr.mxu0 0.0
        %1719 = vmatpush1.msra.mxu0 %v1087
        %1720 = vmatprep.subr.mxu0 0.0
        %1721 = vmatpush1.msra.mxu0 %v1092
        %1722 = vmatprep.subr.mxu0 0.0
        %1723 = vmatpush1.msra.mxu0 %v1097
        %1724 = vmatprep.subr.mxu0 0.0
        %1725 = vmatpush1.msra.mxu0 %v1102
        %1726 = vmatprep.subr.mxu0 0.0
        %1727 = vmatpush1.msra.mxu0 %v1107
        %1728 = vmatprep.subr.mxu0 0.0
        %1729 = vmatpush1.msra.mxu0 %v1112
        %1730 = vmatprep.subr.mxu0 0.0
        %1731 = vmatpush1.msra.mxu0 0.0
        %1732 = vmatprep.subr.mxu0 0.0
        %1733 = vmatpush1.msra.mxu0 0.0
        %1734 = vmatprep.subr.mxu0 0.0
        %1735 = vmatpush1.msra.mxu0 0.0
        %1736 = vmatprep.subr.mxu0 0.0
        %1737 = vmatpush1.msra.mxu0 0.0
        %1738 = vmatprep.subr.mxu0 0.0
        %1739 = vmatpush1.msra.mxu0 0.0
        %1740 = vmatprep.subr.mxu0 0.0
        %1741 = vmatpush1.msra.mxu0 0.0
        %1742 = vmatprep.subr.mxu0 0.0
        %1743 = vmatpush1.msra.mxu0 0.0
        %1744 = vmatprep.subr.mxu0 0.0
        %1745 = vmatpush1.msra.mxu0 0.0
        %1746 = vmatprep.subr.mxu0 0.0
        %1747 = vmatpush1.msra.mxu0 0.0
        %1748 = vmatprep.subr.mxu0 0.0
        %1749 = vmatpush1.msra.mxu0 0.0
        %1750 = vmatprep.subr.mxu0 0.0
        %1751 = vmatpush1.msra.mxu0 0.0
        %1752 = vmatprep.subr.mxu0 0.0
        %1753 = vmatpush1.msra.mxu0 0.0
        %1754 = vmatprep.subr.mxu0 0.0
        %1755 = vmatpush1.msra.mxu0 0.0
        %1756 = vmatprep.subr.mxu0 0.0
        %1757 = vmatpush1.msra.mxu0 0.0
        %1758 = vmatprep.subr.mxu0 0.0
        %1759 = vmatpush1.msra.mxu0 0.0
        %1760 = vmatprep.subr.mxu0 0.0
        %1761 = vmatpush1.msra.mxu0 0.0
        %1762 = vmatprep.subr.mxu0 0.0
        %1763 = vmatpush1.msra.mxu0 0.0
        %1764 = vmatprep.subr.mxu0 0.0
        %1765 = vmatpush1.msra.mxu0 0.0
        %1766 = vmatprep.subr.mxu0 0.0
        %1767 = vmatpush1.msra.mxu0 0.0
        %1768 = vmatprep.subr.mxu0 0.0
        %1769 = vmatpush1.msra.mxu0 0.0
        %1770 = vmatprep.subr.mxu0 0.0
        %1771 = vmatpush1.msra.mxu0 0.0
        %1772 = vmatprep.subr.mxu0 0.0
        %1773 = vmatpush1.msra.mxu0 0.0
        %1774 = vmatprep.subr.mxu0 0.0
        %1775 = vmatpush1.msra.mxu0 0.0
        %1776 = vmatprep.subr.mxu0 0.0
        %1777 = vmatpush1.msra.mxu0 0.0
        %1778 = vmatprep.mubr.f32.mxu0 0.0
        %1779 = vmatmul.mubr.f32.gmra.mrb[0].mxu0 %v1691
        %v1780 = vpop.f32.mrb[0].mxu0
        %v1781 = vadd.f32 0.0, %v1780
        %v1782 = vpop.f32.mrb[0].mxu0
        %1783 = vmatprep.mubr.f32.mxu0 0.0
        %1784 = vmatmul.mubr.f32.gmra.mrb[0].mxu0 %v1694
        %v1785 = vpop.f32.mrb[0].mxu0
        %v1786 = vadd.f32 0.0, %v1785
        %v1787 = vpop.f32.mrb[0].mxu0
        %1788 = vmatprep.mubr.f32.mxu0 0.0
        %1789 = vmatmul.mubr.f32.gmra.mrb[0].mxu0 %v1697
        %v1790 = vpop.f32.mrb[0].mxu0
        %v1791 = vadd.f32 0.0, %v1790
        %v1792 = vpop.f32.mrb[0].mxu0
        %1793 = vmatprep.mubr.f32.mxu0 0.0
        %1794 = vmatmul.mubr.f32.gmra.mrb[0].mxu0 %v1700
        %v1795 = vpop.f32.mrb[0].mxu0
        %v1796 = vadd.f32 0.0, %v1795
        %v1797 = vpop.f32.mrb[0].mxu0
        %1798 = vmatprep.mubr.f32.mxu0 0.0
        %1799 = vmatmul.mubr.f32.gmra.mrb[0].mxu0 %v1703
        %v1800 = vpop.f32.mrb[0].mxu0
        %v1801 = vadd.f32 0.0, %v1800
        %v1802 = vpop.f32.mrb[0].mxu0
        %1803 = vmatprep.mubr.f32.mxu0 0.0
        %1804 = vmatmul.mubr.f32.gmra.mrb[0].mxu0 %v1706
        %v1805 = vpop.f32.mrb[0].mxu0
        %v1806 = vadd.f32 0.0, %v1805
        %v1807 = vpop.f32.mrb[0].mxu0
        %1808 = vmatprep.mubr.f32.mxu0 0.0
        %1809 = vmatmul.mubr.f32.gmra.mrb[0].mxu0 %v1709
        %v1810 = vpop.f32.mrb[0].mxu0
        %v1811 = vadd.f32 0.0, %v1810
        %v1812 = vpop.f32.mrb[0].mxu0
        %1813 = vmatprep.mubr.f32.mxu0 0.0
        %1814 = vmatmul.mubr.f32.gmra.mrb[0].mxu0 %v1712
        %v1815 = vpop.f32.mrb[0].mxu0
        %v1816 = vadd.f32 0.0, %v1815
        %v1817 = vpop.f32.mrb[0].mxu0
        %1818 = vdwg.mxu0
        %v1820 = vsel %vm1513, %v1682, 0
        %v1823 = vsel %vm1513, %v1683, 0
        %v1826 = vsel %vm1513, %v1684, 0
        %v1829 = vsel %vm1513, %v1685, 0
        %v1832 = vsel %vm1513, %v1686, 0
        %v1835 = vsel %vm1513, %v1687, 0
        %v1838 = vsel %vm1513, %v1688, 0
        %v1841 = vsel %vm1513, %v1689, 0
        %1843 = vmatprep.subr.mxu0 0.0
        %1844 = vmatpush1.msra.mxu0 %v1117
        %1845 = vmatprep.subr.mxu0 0.0
        %1846 = vmatpush1.msra.mxu0 %v1122
        %1847 = vmatprep.subr.mxu0 0.0
        %1848 = vmatpush1.msra.mxu0 %v1127
        %1849 = vmatprep.subr.mxu0 0.0
        %1850 = vmatpush1.msra.mxu0 %v1132
        %1851 = vmatprep.subr.mxu0 0.0
        %1852 = vmatpush1.msra.mxu0 %v1137
        %1853 = vmatprep.subr.mxu0 0.0
        %1854 = vmatpush1.msra.mxu0 %v1142
        %1855 = vmatprep.subr.mxu0 0.0
        %1856 = vmatpush1.msra.mxu0 %v1147
        %1857 = vmatprep.subr.mxu0 0.0
        %1858 = vmatpush1.msra.mxu0 %v1152
        %1859 = vmatprep.subr.mxu0 0.0
        %1860 = vmatpush1.msra.mxu0 0.0
        %1861 = vmatprep.subr.mxu0 0.0
        %1862 = vmatpush1.msra.mxu0 0.0
        %1863 = vmatprep.subr.mxu0 0.0
        %1864 = vmatpush1.msra.mxu0 0.0
        %1865 = vmatprep.subr.mxu0 0.0
        %1866 = vmatpush1.msra.mxu0 0.0
        %1867 = vmatprep.subr.mxu0 0.0
        %1868 = vmatpush1.msra.mxu0 0.0
        %1869 = vmatprep.subr.mxu0 0.0
        %1870 = vmatpush1.msra.mxu0 0.0
        %1871 = vmatprep.subr.mxu0 0.0
        %1872 = vmatpush1.msra.mxu0 0.0
        %1873 = vmatprep.subr.mxu0 0.0
        %1874 = vmatpush1.msra.mxu0 0.0
        %1875 = vmatprep.subr.mxu0 0.0
        %1876 = vmatpush1.msra.mxu0 0.0
        %1877 = vmatprep.subr.mxu0 0.0
        %1878 = vmatpush1.msra.mxu0 0.0
        %1879 = vmatprep.subr.mxu0 0.0
        %1880 = vmatpush1.msra.mxu0 0.0
        %1881 = vmatprep.subr.mxu0 0.0
        %1882 = vmatpush1.msra.mxu0 0.0
        %1883 = vmatprep.subr.mxu0 0.0
        %1884 = vmatpush1.msra.mxu0 0.0
        %1885 = vmatprep.subr.mxu0 0.0
        %1886 = vmatpush1.msra.mxu0 0.0
        %1887 = vmatprep.subr.mxu0 0.0
        %1888 = vmatpush1.msra.mxu0 0.0
        %1889 = vmatprep.subr.mxu0 0.0
        %1890 = vmatpush1.msra.mxu0 0.0
        %1891 = vmatprep.subr.mxu0 0.0
        %1892 = vmatpush1.msra.mxu0 0.0
        %1893 = vmatprep.subr.mxu0 0.0
        %1894 = vmatpush1.msra.mxu0 0.0
        %1895 = vmatprep.subr.mxu0 0.0
        %1896 = vmatpush1.msra.mxu0 0.0
        %1897 = vmatprep.subr.mxu0 0.0
        %1898 = vmatpush1.msra.mxu0 0.0
        %1899 = vmatprep.subr.mxu0 0.0
        %1900 = vmatpush1.msra.mxu0 0.0
        %1901 = vmatprep.subr.mxu0 0.0
        %1902 = vmatpush1.msra.mxu0 0.0
        %1903 = vmatprep.subr.mxu0 0.0
        %1904 = vmatpush1.msra.mxu0 0.0
        %1905 = vmatprep.subr.mxu0 0.0
        %1906 = vmatpush1.msra.mxu0 0.0
        %1907 = vmatprep.mubr.f32.mxu0 0.0
        %1908 = vmatmul.mubr.f32.gmra.mrb[0].mxu0 %v1820
        %v1909 = vpop.f32.mrb[0].mxu0
        %v1910 = vadd.f32 0.0, %v1909
        %v1911 = vpop.f32.mrb[0].mxu0
        %1912 = vmatprep.mubr.f32.mxu0 0.0
        %1913 = vmatmul.mubr.f32.gmra.mrb[0].mxu0 %v1823
        %v1914 = vpop.f32.mrb[0].mxu0
        %v1915 = vadd.f32 0.0, %v1914
        %v1916 = vpop.f32.mrb[0].mxu0
        %1917 = vmatprep.mubr.f32.mxu0 0.0
        %1918 = vmatmul.mubr.f32.gmra.mrb[0].mxu0 %v1826
        %v1919 = vpop.f32.mrb[0].mxu0
        %v1920 = vadd.f32 0.0, %v1919
        %v1921 = vpop.f32.mrb[0].mxu0
        %1922 = vmatprep.mubr.f32.mxu0 0.0
        %1923 = vmatmul.mubr.f32.gmra.mrb[0].mxu0 %v1829
        %v1924 = vpop.f32.mrb[0].mxu0
        %v1925 = vadd.f32 0.0, %v1924
        %v1926 = vpop.f32.mrb[0].mxu0
        %1927 = vmatprep.mubr.f32.mxu0 0.0
        %1928 = vmatmul.mubr.f32.gmra.mrb[0].mxu0 %v1832
        %v1929 = vpop.f32.mrb[0].mxu0
        %v1930 = vadd.f32 0.0, %v1929
        %v1931 = vpop.f32.mrb[0].mxu0
        %1932 = vmatprep.mubr.f32.mxu0 0.0
        %1933 = vmatmul.mubr.f32.gmra.mrb[0].mxu0 %v1835
        %v1934 = vpop.f32.mrb[0].mxu0
        %v1935 = vadd.f32 0.0, %v1934
        %v1936 = vpop.f32.mrb[0].mxu0
        %1937 = vmatprep.mubr.f32.mxu0 0.0
        %1938 = vmatmul.mubr.f32.gmra.mrb[0].mxu0 %v1838
        %v1939 = vpop.f32.mrb[0].mxu0
        %v1940 = vadd.f32 0.0, %v1939
        %v1941 = vpop.f32.mrb[0].mxu0
        %1942 = vmatprep.mubr.f32.mxu0 0.0
        %1943 = vmatmul.mubr.f32.gmra.mrb[0].mxu0 %v1841
        %v1944 = vpop.f32.mrb[0].mxu0
        %v1945 = vadd.f32 0.0, %v1944
        %v1946 = vpop.f32.mrb[0].mxu0
        %1947 = vdwg.mxu0
        %1948 = vst.msk [vmem:[#allocation2] sm:$0xff] %vm1174, %v1781
        %1949 = vst.msk [vmem:[#allocation2 + $0x8] sm:$0xff] %vm1174, %v1786
        %1950 = vst.msk [vmem:[#allocation2 + $0x10] sm:$0xff] %vm1174, %v1791
        %1951 = vst.msk [vmem:[#allocation2 + $0x18] sm:$0xff] %vm1174, %v1796
        %1952 = vst.msk [vmem:[#allocation2 + $0x20] sm:$0xff] %vm1174, %v1801
        %1953 = vst.msk [vmem:[#allocation2 + $0x28] sm:$0xff] %vm1174, %v1806
        %1954 = vst.msk [vmem:[#allocation2 + $0x30] sm:$0xff] %vm1174, %v1811
        %1955 = vst.msk [vmem:[#allocation2 + $0x38] sm:$0xff] %vm1174, %v1816
        %1956 = vst.msk [vmem:[#allocation2 + $0x40] sm:$0xff] %vm1174, %v1910
        %1957 = vst.msk [vmem:[#allocation2 + $0x48] sm:$0xff] %vm1174, %v1915
        %1958 = vst.msk [vmem:[#allocation2 + $0x50] sm:$0xff] %vm1174, %v1920
        %1959 = vst.msk [vmem:[#allocation2 + $0x58] sm:$0xff] %vm1174, %v1925
        %1960 = vst.msk [vmem:[#allocation2 + $0x60] sm:$0xff] %vm1174, %v1930
        %1961 = vst.msk [vmem:[#allocation2 + $0x68] sm:$0xff] %vm1174, %v1935
        %1962 = vst.msk [vmem:[#allocation2 + $0x70] sm:$0xff] %vm1174, %v1940
        %1963 = vst.msk [vmem:[#allocation2 + $0x78] sm:$0xff] %vm1174, %v1945
        %1964 = vrot.lane.b32.xlu0 %v916, 96
        %v1965 = vpop.permute.xlu0 %1964
        %1966 = vrot.lane.b32.xlu0 %v922, 96
        %v1967 = vpop.permute.xlu0 %1966
        %1968 = vrot.lane.b32.xlu0 %v928, 96
        %v1969 = vpop.permute.xlu0 %1968
        %1970 = vrot.lane.b32.xlu0 %v934, 96
        %v1971 = vpop.permute.xlu0 %1970
        %1972 = vrot.lane.b32.xlu0 %v940, 96
        %v1973 = vpop.permute.xlu0 %1972
        %1974 = vrot.lane.b32.xlu0 %v946, 96
        %v1975 = vpop.permute.xlu0 %1974
        %1976 = vrot.lane.b32.xlu0 %v952, 96
        %v1977 = vpop.permute.xlu0 %1976
        %1978 = vrot.lane.b32.xlu0 %v958, 96
        %v1979 = vpop.permute.xlu0 %1978
        %1980 = vrot.lane.b32.xlu0 %v918, 96
        %v1981 = vpop.permute.xlu0 %1980
        %1982 = vrot.lane.b32.xlu0 %v924, 96
        %v1983 = vpop.permute.xlu0 %1982
        %1984 = vrot.lane.b32.xlu0 %v930, 96
        %v1985 = vpop.permute.xlu0 %1984
        %1986 = vrot.lane.b32.xlu0 %v936, 96
        %v1987 = vpop.permute.xlu0 %1986
        %1988 = vrot.lane.b32.xlu0 %v942, 96
        %v1989 = vpop.permute.xlu0 %1988
        %1990 = vrot.lane.b32.xlu0 %v948, 96
        %v1991 = vpop.permute.xlu0 %1990
        %1992 = vrot.lane.b32.xlu0 %v954, 96
        %v1993 = vpop.permute.xlu0 %1992
        %1994 = vrot.lane.b32.xlu0 %v960, 96
        %v1995 = vpop.permute.xlu0 %1994
        %v1996 = vsel %vm1174, %v1965, 0
        %v1998 = vsel %vm1174, %v1967, 0
        %v2000 = vsel %vm1174, %v1969, 0
        %v2002 = vsel %vm1174, %v1971, 0
        %v2004 = vsel %vm1174, %v1973, 0
        %v2006 = vsel %vm1174, %v1975, 0
        %v2008 = vsel %vm1174, %v1977, 0
        %v2010 = vsel %vm1174, %v1979, 0
        %v2012 = vsel %vm1174, %v1981, 0
        %v2014 = vsel %vm1174, %v1983, 0
        %v2016 = vsel %vm1174, %v1985, 0
        %v2018 = vsel %vm1174, %v1987, 0
        %v2020 = vsel %vm1174, %v1989, 0
        %v2022 = vsel %vm1174, %v1991, 0
        %v2024 = vsel %vm1174, %v1993, 0
        %v2026 = vsel %vm1174, %v1995, 0
        %2028 = vmatprep.subr.mxu0 0.0
        %2029 = vmatpush1.xpose.msra.mxu0 %v2012
        %2030 = vmatprep.subr.mxu0 0.0
        %2031 = vmatpush1.xpose.msra.mxu0 %v2014
        %2032 = vmatprep.subr.mxu0 0.0
        %2033 = vmatpush1.xpose.msra.mxu0 %v2016
        %2034 = vmatprep.subr.mxu0 0.0
        %2035 = vmatpush1.xpose.msra.mxu0 %v2018
        %2036 = vmatprep.subr.mxu0 0.0
        %2037 = vmatpush1.xpose.msra.mxu0 %v2020
        %2038 = vmatprep.subr.mxu0 0.0
        %2039 = vmatpush1.xpose.msra.mxu0 %v2022
        %2040 = vmatprep.subr.mxu0 0.0
        %2041 = vmatpush1.xpose.msra.mxu0 %v2024
        %2042 = vmatprep.subr.mxu0 0.0
        %2043 = vmatpush1.xpose.msra.mxu0 %v2026
        %2044 = vmatprep.subr.mxu0 0.0
        %2045 = vmatpush1.xpose.msra.mxu0 0.0
        %2046 = vmatprep.subr.mxu0 0.0
        %2047 = vmatpush1.xpose.msra.mxu0 0.0
        %2048 = vmatprep.subr.mxu0 0.0
        %2049 = vmatpush1.xpose.msra.mxu0 0.0
        %2050 = vmatprep.subr.mxu0 0.0
        %2051 = vmatpush1.xpose.msra.mxu0 0.0
        %2052 = vmatprep.subr.mxu0 0.0
        %2053 = vmatpush1.xpose.msra.mxu0 0.0
        %2054 = vmatprep.subr.mxu0 0.0
        %2055 = vmatpush1.xpose.msra.mxu0 0.0
        %2056 = vmatprep.subr.mxu0 0.0
        %2057 = vmatpush1.xpose.msra.mxu0 0.0
        %2058 = vmatprep.subr.mxu0 0.0
        %2059 = vmatpush1.xpose.msra.mxu0 0.0
        %2060 = vmatprep.subr.mxu0 0.0
        %2061 = vmatpush1.xpose.msra.mxu0 0.0
        %2062 = vmatprep.subr.mxu0 0.0
        %2063 = vmatpush1.xpose.msra.mxu0 0.0
        %2064 = vmatprep.subr.mxu0 0.0
        %2065 = vmatpush1.xpose.msra.mxu0 0.0
        %2066 = vmatprep.subr.mxu0 0.0
        %2067 = vmatpush1.xpose.msra.mxu0 0.0
        %2068 = vmatprep.subr.mxu0 0.0
        %2069 = vmatpush1.xpose.msra.mxu0 0.0
        %2070 = vmatprep.subr.mxu0 0.0
        %2071 = vmatpush1.xpose.msra.mxu0 0.0
        %2072 = vmatprep.subr.mxu0 0.0
        %2073 = vmatpush1.xpose.msra.mxu0 0.0
        %2074 = vmatprep.subr.mxu0 0.0
        %2075 = vmatpush1.xpose.msra.mxu0 0.0
        %2076 = vmatprep.subr.mxu0 0.0
        %2077 = vmatpush1.xpose.msra.mxu0 0.0
        %2078 = vmatprep.subr.mxu0 0.0
        %2079 = vmatpush1.xpose.msra.mxu0 0.0
        %2080 = vmatprep.subr.mxu0 0.0
        %2081 = vmatpush1.xpose.msra.mxu0 0.0
        %2082 = vmatprep.subr.mxu0 0.0
        %2083 = vmatpush1.xpose.msra.mxu0 0.0
        %2084 = vmatprep.subr.mxu0 0.0
        %2085 = vmatpush1.xpose.msra.mxu0 0.0
        %2086 = vmatprep.subr.mxu0 0.0
        %2087 = vmatpush1.xpose.msra.mxu0 0.0
        %2088 = vmatprep.subr.mxu0 0.0
        %2089 = vmatpush1.xpose.msra.mxu0 0.0
        %2090 = vmatprep.subr.mxu0 0.0
        %2091 = vmatpush1.xpose.msra.mxu0 0.0
        %2092 = vmatprep.mubr.f32.mxu0 0.0
        %2093 = vmatmul.mubr.f32.gmra.mrb[0].mxu0 %v1996
        %v2094 = vpop.f32.mrb[0].mxu0
        %v2095 = vadd.f32 0.0, %v2094
        %v2096 = vpop.f32.mrb[0].mxu0
        %2097 = vmatprep.mubr.f32.mxu0 0.0
        %2098 = vmatmul.mubr.f32.gmra.mrb[0].mxu0 %v1998
        %v2099 = vpop.f32.mrb[0].mxu0
        %v2100 = vadd.f32 0.0, %v2099
        %v2101 = vpop.f32.mrb[0].mxu0
        %2102 = vmatprep.mubr.f32.mxu0 0.0
        %2103 = vmatmul.mubr.f32.gmra.mrb[0].mxu0 %v2000
        %v2104 = vpop.f32.mrb[0].mxu0
        %v2105 = vadd.f32 0.0, %v2104
        %v2106 = vpop.f32.mrb[0].mxu0
        %2107 = vmatprep.mubr.f32.mxu0 0.0
        %2108 = vmatmul.mubr.f32.gmra.mrb[0].mxu0 %v2002
        %v2109 = vpop.f32.mrb[0].mxu0
        %v2110 = vadd.f32 0.0, %v2109
        %v2111 = vpop.f32.mrb[0].mxu0
        %2112 = vmatprep.mubr.f32.mxu0 0.0
        %2113 = vmatmul.mubr.f32.gmra.mrb[0].mxu0 %v2004
        %v2114 = vpop.f32.mrb[0].mxu0
        %v2115 = vadd.f32 0.0, %v2114
        %v2116 = vpop.f32.mrb[0].mxu0
        %2117 = vmatprep.mubr.f32.mxu0 0.0
        %2118 = vmatmul.mubr.f32.gmra.mrb[0].mxu0 %v2006
        %v2119 = vpop.f32.mrb[0].mxu0
        %v2120 = vadd.f32 0.0, %v2119
        %v2121 = vpop.f32.mrb[0].mxu0
        %2122 = vmatprep.mubr.f32.mxu0 0.0
        %2123 = vmatmul.mubr.f32.gmra.mrb[0].mxu0 %v2008
        %v2124 = vpop.f32.mrb[0].mxu0
        %v2125 = vadd.f32 0.0, %v2124
        %v2126 = vpop.f32.mrb[0].mxu0
        %2127 = vmatprep.mubr.f32.mxu0 0.0
        %2128 = vmatmul.mubr.f32.gmra.mrb[0].mxu0 %v2010
        %v2129 = vpop.f32.mrb[0].mxu0
        %v2130 = vadd.f32 0.0, %v2129
        %v2131 = vpop.f32.mrb[0].mxu0
        %2132 = vdwg.mxu0
        %2133 = vrot.lane.b32.xlu0 %v964, 96
        %v2134 = vpop.permute.xlu0 %2133
        %2135 = vrot.lane.b32.xlu0 %v970, 96
        %v2136 = vpop.permute.xlu0 %2135
        %2137 = vrot.lane.b32.xlu0 %v976, 96
        %v2138 = vpop.permute.xlu0 %2137
        %2139 = vrot.lane.b32.xlu0 %v982, 96
        %v2140 = vpop.permute.xlu0 %2139
        %2141 = vrot.lane.b32.xlu0 %v988, 96
        %v2142 = vpop.permute.xlu0 %2141
        %2143 = vrot.lane.b32.xlu0 %v994, 96
        %v2144 = vpop.permute.xlu0 %2143
        %2145 = vrot.lane.b32.xlu0 %v1000, 96
        %v2146 = vpop.permute.xlu0 %2145
        %2147 = vrot.lane.b32.xlu0 %v1006, 96
        %v2148 = vpop.permute.xlu0 %2147
        %2149 = vrot.lane.b32.xlu0 %v966, 96
        %v2150 = vpop.permute.xlu0 %2149
        %2151 = vrot.lane.b32.xlu0 %v972, 96
        %v2152 = vpop.permute.xlu0 %2151
        %2153 = vrot.lane.b32.xlu0 %v978, 96
        %v2154 = vpop.permute.xlu0 %2153
        %2155 = vrot.lane.b32.xlu0 %v984, 96
        %v2156 = vpop.permute.xlu0 %2155
        %2157 = vrot.lane.b32.xlu0 %v990, 96
        %v2158 = vpop.permute.xlu0 %2157
        %2159 = vrot.lane.b32.xlu0 %v996, 96
        %v2160 = vpop.permute.xlu0 %2159
        %2161 = vrot.lane.b32.xlu0 %v1002, 96
        %v2162 = vpop.permute.xlu0 %2161
        %2163 = vrot.lane.b32.xlu0 %v1008, 96
        %v2164 = vpop.permute.xlu0 %2163
        %v2165 = vsel %vm1174, %v2134, 0
        %v2167 = vsel %vm1174, %v2136, 0
        %v2169 = vsel %vm1174, %v2138, 0
        %v2171 = vsel %vm1174, %v2140, 0
        %v2173 = vsel %vm1174, %v2142, 0
        %v2175 = vsel %vm1174, %v2144, 0
        %v2177 = vsel %vm1174, %v2146, 0
        %v2179 = vsel %vm1174, %v2148, 0
        %v2181 = vsel %vm1174, %v2150, 0
        %v2183 = vsel %vm1174, %v2152, 0
        %v2185 = vsel %vm1174, %v2154, 0
        %v2187 = vsel %vm1174, %v2156, 0
        %v2189 = vsel %vm1174, %v2158, 0
        %v2191 = vsel %vm1174, %v2160, 0
        %v2193 = vsel %vm1174, %v2162, 0
        %v2195 = vsel %vm1174, %v2164, 0
        %2197 = vmatprep.subr.mxu0 0.0
        %2198 = vmatpush1.xpose.msra.mxu0 %v2181
        %2199 = vmatprep.subr.mxu0 0.0
        %2200 = vmatpush1.xpose.msra.mxu0 %v2183
        %2201 = vmatprep.subr.mxu0 0.0
        %2202 = vmatpush1.xpose.msra.mxu0 %v2185
        %2203 = vmatprep.subr.mxu0 0.0
        %2204 = vmatpush1.xpose.msra.mxu0 %v2187
        %2205 = vmatprep.subr.mxu0 0.0
        %2206 = vmatpush1.xpose.msra.mxu0 %v2189
        %2207 = vmatprep.subr.mxu0 0.0
        %2208 = vmatpush1.xpose.msra.mxu0 %v2191
        %2209 = vmatprep.subr.mxu0 0.0
        %2210 = vmatpush1.xpose.msra.mxu0 %v2193
        %2211 = vmatprep.subr.mxu0 0.0
        %2212 = vmatpush1.xpose.msra.mxu0 %v2195
        %2213 = vmatprep.subr.mxu0 0.0
        %2214 = vmatpush1.xpose.msra.mxu0 0.0
        %2215 = vmatprep.subr.mxu0 0.0
        %2216 = vmatpush1.xpose.msra.mxu0 0.0
        %2217 = vmatprep.subr.mxu0 0.0
        %2218 = vmatpush1.xpose.msra.mxu0 0.0
        %2219 = vmatprep.subr.mxu0 0.0
        %2220 = vmatpush1.xpose.msra.mxu0 0.0
        %2221 = vmatprep.subr.mxu0 0.0
        %2222 = vmatpush1.xpose.msra.mxu0 0.0
        %2223 = vmatprep.subr.mxu0 0.0
        %2224 = vmatpush1.xpose.msra.mxu0 0.0
        %2225 = vmatprep.subr.mxu0 0.0
        %2226 = vmatpush1.xpose.msra.mxu0 0.0
        %2227 = vmatprep.subr.mxu0 0.0
        %2228 = vmatpush1.xpose.msra.mxu0 0.0
        %2229 = vmatprep.subr.mxu0 0.0
        %2230 = vmatpush1.xpose.msra.mxu0 0.0
        %2231 = vmatprep.subr.mxu0 0.0
        %2232 = vmatpush1.xpose.msra.mxu0 0.0
        %2233 = vmatprep.subr.mxu0 0.0
        %2234 = vmatpush1.xpose.msra.mxu0 0.0
        %2235 = vmatprep.subr.mxu0 0.0
        %2236 = vmatpush1.xpose.msra.mxu0 0.0
        %2237 = vmatprep.subr.mxu0 0.0
        %2238 = vmatpush1.xpose.msra.mxu0 0.0
        %2239 = vmatprep.subr.mxu0 0.0
        %2240 = vmatpush1.xpose.msra.mxu0 0.0
        %2241 = vmatprep.subr.mxu0 0.0
        %2242 = vmatpush1.xpose.msra.mxu0 0.0
        %2243 = vmatprep.subr.mxu0 0.0
        %2244 = vmatpush1.xpose.msra.mxu0 0.0
        %2245 = vmatprep.subr.mxu0 0.0
        %2246 = vmatpush1.xpose.msra.mxu0 0.0
        %2247 = vmatprep.subr.mxu0 0.0
        %2248 = vmatpush1.xpose.msra.mxu0 0.0
        %2249 = vmatprep.subr.mxu0 0.0
        %2250 = vmatpush1.xpose.msra.mxu0 0.0
        %2251 = vmatprep.subr.mxu0 0.0
        %2252 = vmatpush1.xpose.msra.mxu0 0.0
        %2253 = vmatprep.subr.mxu0 0.0
        %2254 = vmatpush1.xpose.msra.mxu0 0.0
        %2255 = vmatprep.subr.mxu0 0.0
        %2256 = vmatpush1.xpose.msra.mxu0 0.0
        %2257 = vmatprep.subr.mxu0 0.0
        %2258 = vmatpush1.xpose.msra.mxu0 0.0
        %2259 = vmatprep.subr.mxu0 0.0
        %2260 = vmatpush1.xpose.msra.mxu0 0.0
        %2261 = vmatprep.mubr.f32.mxu0 0.0
        %2262 = vmatmul.mubr.f32.gmra.mrb[0].mxu0 %v2165
        %v2263 = vpop.f32.mrb[0].mxu0
        %v2264 = vadd.f32 0.0, %v2263
        %v2265 = vpop.f32.mrb[0].mxu0
        %2266 = vmatprep.mubr.f32.mxu0 0.0
        %2267 = vmatmul.mubr.f32.gmra.mrb[0].mxu0 %v2167
        %v2268 = vpop.f32.mrb[0].mxu0
        %v2269 = vadd.f32 0.0, %v2268
        %v2270 = vpop.f32.mrb[0].mxu0
        %2271 = vmatprep.mubr.f32.mxu0 0.0
        %2272 = vmatmul.mubr.f32.gmra.mrb[0].mxu0 %v2169
        %v2273 = vpop.f32.mrb[0].mxu0
        %v2274 = vadd.f32 0.0, %v2273
        %v2275 = vpop.f32.mrb[0].mxu0
        %2276 = vmatprep.mubr.f32.mxu0 0.0
        %2277 = vmatmul.mubr.f32.gmra.mrb[0].mxu0 %v2171
        %v2278 = vpop.f32.mrb[0].mxu0
        %v2279 = vadd.f32 0.0, %v2278
        %v2280 = vpop.f32.mrb[0].mxu0
        %2281 = vmatprep.mubr.f32.mxu0 0.0
        %2282 = vmatmul.mubr.f32.gmra.mrb[0].mxu0 %v2173
        %v2283 = vpop.f32.mrb[0].mxu0
        %v2284 = vadd.f32 0.0, %v2283
        %v2285 = vpop.f32.mrb[0].mxu0
        %2286 = vmatprep.mubr.f32.mxu0 0.0
        %2287 = vmatmul.mubr.f32.gmra.mrb[0].mxu0 %v2175
        %v2288 = vpop.f32.mrb[0].mxu0
        %v2289 = vadd.f32 0.0, %v2288
        %v2290 = vpop.f32.mrb[0].mxu0
        %2291 = vmatprep.mubr.f32.mxu0 0.0
        %2292 = vmatmul.mubr.f32.gmra.mrb[0].mxu0 %v2177
        %v2293 = vpop.f32.mrb[0].mxu0
        %v2294 = vadd.f32 0.0, %v2293
        %v2295 = vpop.f32.mrb[0].mxu0
        %2296 = vmatprep.mubr.f32.mxu0 0.0
        %2297 = vmatmul.mubr.f32.gmra.mrb[0].mxu0 %v2179
        %v2298 = vpop.f32.mrb[0].mxu0
        %v2299 = vadd.f32 0.0, %v2298
        %v2300 = vpop.f32.mrb[0].mxu0
        %2301 = vdwg.mxu0
        %v2302 = vsel %vm1489, %v2095, -3.4028235e+38
        %v2303 = vsel %vm1490, %v2100, -3.4028235e+38
        %v2304 = vsel %vm1491, %v2105, -3.4028235e+38
        %v2305 = vsel %vm1492, %v2110, -3.4028235e+38
        %v2306 = vsel %vm1493, %v2115, -3.4028235e+38
        %v2307 = vsel %vm1494, %v2120, -3.4028235e+38
        %v2308 = vsel %vm1495, %v2125, -3.4028235e+38
        %v2309 = vsel %vm1496, %v2130, -3.4028235e+38
        %v2310 = vsel %vm1489, %v2264, -3.4028235e+38
        %v2311 = vsel %vm1490, %v2269, -3.4028235e+38
        %v2312 = vsel %vm1491, %v2274, -3.4028235e+38
        %v2313 = vsel %vm1492, %v2279, -3.4028235e+38
        %v2314 = vsel %vm1493, %v2284, -3.4028235e+38
        %v2315 = vsel %vm1494, %v2289, -3.4028235e+38
        %v2316 = vsel %vm1495, %v2294, -3.4028235e+38
        %v2317 = vsel %vm1496, %v2299, -3.4028235e+38
        %v2318 = vsel %vm1513, %v2302, -inf
        %2319 = vmax.xlane.f32.xlu0 %v2318
        %v2320 = vpop.xlane.xlu0 %2319
        %v2321 = vsel %vm1513, %v2303, -inf
        %2322 = vmax.xlane.f32.xlu0 %v2321
        %v2323 = vpop.xlane.xlu0 %2322
        %v2324 = vsel %vm1513, %v2304, -inf
        %2325 = vmax.xlane.f32.xlu0 %v2324
        %v2326 = vpop.xlane.xlu0 %2325
        %v2327 = vsel %vm1513, %v2305, -inf
        %2328 = vmax.xlane.f32.xlu0 %v2327
        %v2329 = vpop.xlane.xlu0 %2328
        %v2330 = vsel %vm1513, %v2306, -inf
        %2331 = vmax.xlane.f32.xlu0 %v2330
        %v2332 = vpop.xlane.xlu0 %2331
        %v2333 = vsel %vm1513, %v2307, -inf
        %2334 = vmax.xlane.f32.xlu0 %v2333
        %v2335 = vpop.xlane.xlu0 %2334
        %v2336 = vsel %vm1513, %v2308, -inf
        %2337 = vmax.xlane.f32.xlu0 %v2336
        %v2338 = vpop.xlane.xlu0 %2337
        %v2339 = vsel %vm1513, %v2309, -inf
        %2340 = vmax.xlane.f32.xlu0 %v2339
        %v2341 = vpop.xlane.xlu0 %2340
        %v2342 = vsel %vm1513, %v2310, -inf
        %2343 = vmax.xlane.f32.xlu0 %v2342
        %v2344 = vpop.xlane.xlu0 %2343
        %v2345 = vsel %vm1513, %v2311, -inf
        %2346 = vmax.xlane.f32.xlu0 %v2345
        %v2347 = vpop.xlane.xlu0 %2346
        %v2348 = vsel %vm1513, %v2312, -inf
        %2349 = vmax.xlane.f32.xlu0 %v2348
        %v2350 = vpop.xlane.xlu0 %2349
        %v2351 = vsel %vm1513, %v2313, -inf
        %2352 = vmax.xlane.f32.xlu0 %v2351
        %v2353 = vpop.xlane.xlu0 %2352
        %v2354 = vsel %vm1513, %v2314, -inf
        %2355 = vmax.xlane.f32.xlu0 %v2354
        %v2356 = vpop.xlane.xlu0 %2355
        %v2357 = vsel %vm1513, %v2315, -inf
        %2358 = vmax.xlane.f32.xlu0 %v2357
        %v2359 = vpop.xlane.xlu0 %2358
        %v2360 = vsel %vm1513, %v2316, -inf
        %2361 = vmax.xlane.f32.xlu0 %v2360
        %v2362 = vpop.xlane.xlu0 %2361
        %v2363 = vsel %vm1513, %v2317, -inf
        %2364 = vmax.xlane.f32.xlu0 %v2363
        %v2365 = vpop.xlane.xlu0 %2364
        %v2366 = vsub.f32 %v2302, %v2320
        %v2367 = vsub.f32 %v2303, %v2323
        %v2368 = vsub.f32 %v2304, %v2326
        %v2369 = vsub.f32 %v2305, %v2329
        %v2370 = vsub.f32 %v2306, %v2332
        %v2371 = vsub.f32 %v2307, %v2335
        %v2372 = vsub.f32 %v2308, %v2338
        %v2373 = vsub.f32 %v2309, %v2341
        %v2374 = vsub.f32 %v2310, %v2344
        %v2375 = vsub.f32 %v2311, %v2347
        %v2376 = vsub.f32 %v2312, %v2350
        %v2377 = vsub.f32 %v2313, %v2353
        %v2378 = vsub.f32 %v2314, %v2356
        %v2379 = vsub.f32 %v2315, %v2359
        %v2380 = vsub.f32 %v2316, %v2362
        %v2381 = vsub.f32 %v2317, %v2365
        %v2382 = vmul.f32 %v2366, 1.442695
        %v2383 = vpow.pop %v2382
        %v2384 = vmul.f32 %v2367, 1.442695
        %v2385 = vpow.pop %v2384
        %v2386 = vmul.f32 %v2368, 1.442695
        %v2387 = vpow.pop %v2386
        %v2388 = vmul.f32 %v2369, 1.442695
        %v2389 = vpow.pop %v2388
        %v2390 = vmul.f32 %v2370, 1.442695
        %v2391 = vpow.pop %v2390
        %v2392 = vmul.f32 %v2371, 1.442695
        %v2393 = vpow.pop %v2392
        %v2394 = vmul.f32 %v2372, 1.442695
        %v2395 = vpow.pop %v2394
        %v2396 = vmul.f32 %v2373, 1.442695
        %v2397 = vpow.pop %v2396
        %v2398 = vmul.f32 %v2374, 1.442695
        %v2399 = vpow.pop %v2398
        %v2400 = vmul.f32 %v2375, 1.442695
        %v2401 = vpow.pop %v2400
        %v2402 = vmul.f32 %v2376, 1.442695
        %v2403 = vpow.pop %v2402
        %v2404 = vmul.f32 %v2377, 1.442695
        %v2405 = vpow.pop %v2404
        %v2406 = vmul.f32 %v2378, 1.442695
        %v2407 = vpow.pop %v2406
        %v2408 = vmul.f32 %v2379, 1.442695
        %v2409 = vpow.pop %v2408
        %v2410 = vmul.f32 %v2380, 1.442695
        %v2411 = vpow.pop %v2410
        %v2412 = vmul.f32 %v2381, 1.442695
        %v2413 = vpow.pop %v2412
        %v2414 = vsel %vm1513, %v2383, 0.0
        %2415 = vadd.xlane.f32.xlu0 %v2414
        %v2416 = vpop.xlane.xlu0 %2415
        %v2417 = vsel %vm1513, %v2385, 0.0
        %2418 = vadd.xlane.f32.xlu0 %v2417
        %v2419 = vpop.xlane.xlu0 %2418
        %v2420 = vsel %vm1513, %v2387, 0.0
        %2421 = vadd.xlane.f32.xlu0 %v2420
        %v2422 = vpop.xlane.xlu0 %2421
        %v2423 = vsel %vm1513, %v2389, 0.0
        %2424 = vadd.xlane.f32.xlu0 %v2423
        %v2425 = vpop.xlane.xlu0 %2424
        %v2426 = vsel %vm1513, %v2391, 0.0
        %2427 = vadd.xlane.f32.xlu0 %v2426
        %v2428 = vpop.xlane.xlu0 %2427
        %v2429 = vsel %vm1513, %v2393, 0.0
        %2430 = vadd.xlane.f32.xlu0 %v2429
        %v2431 = vpop.xlane.xlu0 %2430
        %v2432 = vsel %vm1513, %v2395, 0.0
        %2433 = vadd.xlane.f32.xlu0 %v2432
        %v2434 = vpop.xlane.xlu0 %2433
        %v2435 = vsel %vm1513, %v2397, 0.0
        %2436 = vadd.xlane.f32.xlu0 %v2435
        %v2437 = vpop.xlane.xlu0 %2436
        %v2438 = vsel %vm1513, %v2399, 0.0
        %2439 = vadd.xlane.f32.xlu0 %v2438
        %v2440 = vpop.xlane.xlu0 %2439
        %v2441 = vsel %vm1513, %v2401, 0.0
        %2442 = vadd.xlane.f32.xlu0 %v2441
        %v2443 = vpop.xlane.xlu0 %2442
        %v2444 = vsel %vm1513, %v2403, 0.0
        %2445 = vadd.xlane.f32.xlu0 %v2444
        %v2446 = vpop.xlane.xlu0 %2445
        %v2447 = vsel %vm1513, %v2405, 0.0
        %2448 = vadd.xlane.f32.xlu0 %v2447
        %v2449 = vpop.xlane.xlu0 %2448
        %v2450 = vsel %vm1513, %v2407, 0.0
        %2451 = vadd.xlane.f32.xlu0 %v2450
        %v2452 = vpop.xlane.xlu0 %2451
        %v2453 = vsel %vm1513, %v2409, 0.0
        %2454 = vadd.xlane.f32.xlu0 %v2453
        %v2455 = vpop.xlane.xlu0 %2454
        %v2456 = vsel %vm1513, %v2411, 0.0
        %2457 = vadd.xlane.f32.xlu0 %v2456
        %v2458 = vpop.xlane.xlu0 %2457
        %v2459 = vsel %vm1513, %v2413, 0.0
        %2460 = vadd.xlane.f32.xlu0 %v2459
        %v2461 = vpop.xlane.xlu0 %2460
        %v2462 = vrcp.pop %v2416
        %v2463 = vrcp.pop %v2419
        %v2464 = vrcp.pop %v2422
        %v2465 = vrcp.pop %v2425
        %v2466 = vrcp.pop %v2428
        %v2467 = vrcp.pop %v2431
        %v2468 = vrcp.pop %v2434
        %v2469 = vrcp.pop %v2437
        %v2470 = vrcp.pop %v2440
        %v2471 = vrcp.pop %v2443
        %v2472 = vrcp.pop %v2446
        %v2473 = vrcp.pop %v2449
        %v2474 = vrcp.pop %v2452
        %v2475 = vrcp.pop %v2455
        %v2476 = vrcp.pop %v2458
        %v2477 = vrcp.pop %v2461
        %v2478 = vmul.f32 %v2383, %v2462
        %v2479 = vmul.f32 %v2385, %v2463
        %v2480 = vmul.f32 %v2387, %v2464
        %v2481 = vmul.f32 %v2389, %v2465
        %v2482 = vmul.f32 %v2391, %v2466
        %v2483 = vmul.f32 %v2393, %v2467
        %v2484 = vmul.f32 %v2395, %v2468
        %v2485 = vmul.f32 %v2397, %v2469
        %v2486 = vmul.f32 %v2399, %v2470
        %v2487 = vmul.f32 %v2401, %v2471
        %v2488 = vmul.f32 %v2403, %v2472
        %v2489 = vmul.f32 %v2405, %v2473
        %v2490 = vmul.f32 %v2407, %v2474
        %v2491 = vmul.f32 %v2409, %v2475
        %v2492 = vmul.f32 %v2411, %v2476
        %v2493 = vmul.f32 %v2413, %v2477
        %2502 = vrot.lane.b32.xlu0 %v1077, 96
        %v2503 = vpop.permute.xlu0 %2502
        %2504 = vrot.lane.b32.xlu0 %v1082, 96
        %v2505 = vpop.permute.xlu0 %2504
        %2506 = vrot.lane.b32.xlu0 %v1087, 96
        %v2507 = vpop.permute.xlu0 %2506
        %2508 = vrot.lane.b32.xlu0 %v1092, 96
        %v2509 = vpop.permute.xlu0 %2508
        %2510 = vrot.lane.b32.xlu0 %v1097, 96
        %v2511 = vpop.permute.xlu0 %2510
        %2512 = vrot.lane.b32.xlu0 %v1102, 96
        %v2513 = vpop.permute.xlu0 %2512
        %2514 = vrot.lane.b32.xlu0 %v1107, 96
        %v2515 = vpop.permute.xlu0 %2514
        %2516 = vrot.lane.b32.xlu0 %v1112, 96
        %v2517 = vpop.permute.xlu0 %2516
        %v2527 = vsel %vm1513, %v2478, 0
        %v2530 = vsel %vm1513, %v2479, 0
        %v2533 = vsel %vm1513, %v2480, 0
        %v2536 = vsel %vm1513, %v2481, 0
        %v2539 = vsel %vm1513, %v2482, 0
        %v2542 = vsel %vm1513, %v2483, 0
        %v2545 = vsel %vm1513, %v2484, 0
        %v2548 = vsel %vm1513, %v2485, 0
        %2550 = vmatprep.subr.mxu0 0.0
        %2551 = vmatpush1.msra.mxu0 %v2503
        %2552 = vmatprep.subr.mxu0 0.0
        %2553 = vmatpush1.msra.mxu0 %v2505
        %2554 = vmatprep.subr.mxu0 0.0
        %2555 = vmatpush1.msra.mxu0 %v2507
        %2556 = vmatprep.subr.mxu0 0.0
        %2557 = vmatpush1.msra.mxu0 %v2509
        %2558 = vmatprep.subr.mxu0 0.0
        %2559 = vmatpush1.msra.mxu0 %v2511
        %2560 = vmatprep.subr.mxu0 0.0
        %2561 = vmatpush1.msra.mxu0 %v2513
        %2562 = vmatprep.subr.mxu0 0.0
        %2563 = vmatpush1.msra.mxu0 %v2515
        %2564 = vmatprep.subr.mxu0 0.0
        %2565 = vmatpush1.msra.mxu0 %v2517
        %2566 = vmatprep.subr.mxu0 0.0
        %2567 = vmatpush1.msra.mxu0 0.0
        %2568 = vmatprep.subr.mxu0 0.0
        %2569 = vmatpush1.msra.mxu0 0.0
        %2570 = vmatprep.subr.mxu0 0.0
        %2571 = vmatpush1.msra.mxu0 0.0
        %2572 = vmatprep.subr.mxu0 0.0
        %2573 = vmatpush1.msra.mxu0 0.0
        %2574 = vmatprep.subr.mxu0 0.0
        %2575 = vmatpush1.msra.mxu0 0.0
        %2576 = vmatprep.subr.mxu0 0.0
        %2577 = vmatpush1.msra.mxu0 0.0
        %2578 = vmatprep.subr.mxu0 0.0
        %2579 = vmatpush1.msra.mxu0 0.0
        %2580 = vmatprep.subr.mxu0 0.0
        %2581 = vmatpush1.msra.mxu0 0.0
        %2582 = vmatprep.subr.mxu0 0.0
        %2583 = vmatpush1.msra.mxu0 0.0
        %2584 = vmatprep.subr.mxu0 0.0
        %2585 = vmatpush1.msra.mxu0 0.0
        %2586 = vmatprep.subr.mxu0 0.0
        %2587 = vmatpush1.msra.mxu0 0.0
        %2588 = vmatprep.subr.mxu0 0.0
        %2589 = vmatpush1.msra.mxu0 0.0
        %2590 = vmatprep.subr.mxu0 0.0
        %2591 = vmatpush1.msra.mxu0 0.0
        %2592 = vmatprep.subr.mxu0 0.0
        %2593 = vmatpush1.msra.mxu0 0.0
        %2594 = vmatprep.subr.mxu0 0.0
        %2595 = vmatpush1.msra.mxu0 0.0
        %2596 = vmatprep.subr.mxu0 0.0
        %2597 = vmatpush1.msra.mxu0 0.0
        %2598 = vmatprep.subr.mxu0 0.0
        %2599 = vmatpush1.msra.mxu0 0.0
        %2600 = vmatprep.subr.mxu0 0.0
        %2601 = vmatpush1.msra.mxu0 0.0
        %2602 = vmatprep.subr.mxu0 0.0
        %2603 = vmatpush1.msra.mxu0 0.0
        %2604 = vmatprep.subr.mxu0 0.0
        %2605 = vmatpush1.msra.mxu0 0.0
        %2606 = vmatprep.subr.mxu0 0.0
        %2607 = vmatpush1.msra.mxu0 0.0
        %2608 = vmatprep.subr.mxu0 0.0
        %2609 = vmatpush1.msra.mxu0 0.0
        %2610 = vmatprep.subr.mxu0 0.0
        %2611 = vmatpush1.msra.mxu0 0.0
        %2612 = vmatprep.subr.mxu0 0.0
        %2613 = vmatpush1.msra.mxu0 0.0
        %2614 = vmatprep.mubr.f32.mxu0 0.0
        %2615 = vmatmul.mubr.f32.gmra.mrb[0].mxu0 %v2527
        %v2616 = vpop.f32.mrb[0].mxu0
        %v2617 = vadd.f32 0.0, %v2616
        %v2618 = vpop.f32.mrb[0].mxu0
        %2619 = vmatprep.mubr.f32.mxu0 0.0
        %2620 = vmatmul.mubr.f32.gmra.mrb[0].mxu0 %v2530
        %v2621 = vpop.f32.mrb[0].mxu0
        %v2622 = vadd.f32 0.0, %v2621
        %v2623 = vpop.f32.mrb[0].mxu0
        %2624 = vmatprep.mubr.f32.mxu0 0.0
        %2625 = vmatmul.mubr.f32.gmra.mrb[0].mxu0 %v2533
        %v2626 = vpop.f32.mrb[0].mxu0
        %v2627 = vadd.f32 0.0, %v2626
        %v2628 = vpop.f32.mrb[0].mxu0
        %2629 = vmatprep.mubr.f32.mxu0 0.0
        %2630 = vmatmul.mubr.f32.gmra.mrb[0].mxu0 %v2536
        %v2631 = vpop.f32.mrb[0].mxu0
        %v2632 = vadd.f32 0.0, %v2631
        %v2633 = vpop.f32.mrb[0].mxu0
        %2634 = vmatprep.mubr.f32.mxu0 0.0
        %2635 = vmatmul.mubr.f32.gmra.mrb[0].mxu0 %v2539
        %v2636 = vpop.f32.mrb[0].mxu0
        %v2637 = vadd.f32 0.0, %v2636
        %v2638 = vpop.f32.mrb[0].mxu0
        %2639 = vmatprep.mubr.f32.mxu0 0.0
        %2640 = vmatmul.mubr.f32.gmra.mrb[0].mxu0 %v2542
        %v2641 = vpop.f32.mrb[0].mxu0
        %v2642 = vadd.f32 0.0, %v2641
        %v2643 = vpop.f32.mrb[0].mxu0
        %2644 = vmatprep.mubr.f32.mxu0 0.0
        %2645 = vmatmul.mubr.f32.gmra.mrb[0].mxu0 %v2545
        %v2646 = vpop.f32.mrb[0].mxu0
        %v2647 = vadd.f32 0.0, %v2646
        %v2648 = vpop.f32.mrb[0].mxu0
        %2649 = vmatprep.mubr.f32.mxu0 0.0
        %2650 = vmatmul.mubr.f32.gmra.mrb[0].mxu0 %v2548
        %v2651 = vpop.f32.mrb[0].mxu0
        %v2652 = vadd.f32 0.0, %v2651
        %v2653 = vpop.f32.mrb[0].mxu0
        %2654 = vdwg.mxu0
        %2663 = vrot.lane.b32.xlu0 %v1117, 96
        %v2664 = vpop.permute.xlu0 %2663
        %2665 = vrot.lane.b32.xlu0 %v1122, 96
        %v2666 = vpop.permute.xlu0 %2665
        %2667 = vrot.lane.b32.xlu0 %v1127, 96
        %v2668 = vpop.permute.xlu0 %2667
        %2669 = vrot.lane.b32.xlu0 %v1132, 96
        %v2670 = vpop.permute.xlu0 %2669
        %2671 = vrot.lane.b32.xlu0 %v1137, 96
        %v2672 = vpop.permute.xlu0 %2671
        %2673 = vrot.lane.b32.xlu0 %v1142, 96
        %v2674 = vpop.permute.xlu0 %2673
        %2675 = vrot.lane.b32.xlu0 %v1147, 96
        %v2676 = vpop.permute.xlu0 %2675
        %2677 = vrot.lane.b32.xlu0 %v1152, 96
        %v2678 = vpop.permute.xlu0 %2677
        %v2688 = vsel %vm1513, %v2486, 0
        %v2691 = vsel %vm1513, %v2487, 0
        %v2694 = vsel %vm1513, %v2488, 0
        %v2697 = vsel %vm1513, %v2489, 0
        %v2700 = vsel %vm1513, %v2490, 0
        %v2703 = vsel %vm1513, %v2491, 0
        %v2706 = vsel %vm1513, %v2492, 0
        %v2709 = vsel %vm1513, %v2493, 0
        %2711 = vmatprep.subr.mxu0 0.0
        %2712 = vmatpush1.msra.mxu0 %v2664
        %2713 = vmatprep.subr.mxu0 0.0
        %2714 = vmatpush1.msra.mxu0 %v2666
        %2715 = vmatprep.subr.mxu0 0.0
        %2716 = vmatpush1.msra.mxu0 %v2668
        %2717 = vmatprep.subr.mxu0 0.0
        %2718 = vmatpush1.msra.mxu0 %v2670
        %2719 = vmatprep.subr.mxu0 0.0
        %2720 = vmatpush1.msra.mxu0 %v2672
        %2721 = vmatprep.subr.mxu0 0.0
        %2722 = vmatpush1.msra.mxu0 %v2674
        %2723 = vmatprep.subr.mxu0 0.0
        %2724 = vmatpush1.msra.mxu0 %v2676
        %2725 = vmatprep.subr.mxu0 0.0
        %2726 = vmatpush1.msra.mxu0 %v2678
        %2727 = vmatprep.subr.mxu0 0.0
        %2728 = vmatpush1.msra.mxu0 0.0
        %2729 = vmatprep.subr.mxu0 0.0
        %2730 = vmatpush1.msra.mxu0 0.0
        %2731 = vmatprep.subr.mxu0 0.0
        %2732 = vmatpush1.msra.mxu0 0.0
        %2733 = vmatprep.subr.mxu0 0.0
        %2734 = vmatpush1.msra.mxu0 0.0
        %2735 = vmatprep.subr.mxu0 0.0
        %2736 = vmatpush1.msra.mxu0 0.0
        %2737 = vmatprep.subr.mxu0 0.0
        %2738 = vmatpush1.msra.mxu0 0.0
        %2739 = vmatprep.subr.mxu0 0.0
        %2740 = vmatpush1.msra.mxu0 0.0
        %2741 = vmatprep.subr.mxu0 0.0
        %2742 = vmatpush1.msra.mxu0 0.0
        %2743 = vmatprep.subr.mxu0 0.0
        %2744 = vmatpush1.msra.mxu0 0.0
        %2745 = vmatprep.subr.mxu0 0.0
        %2746 = vmatpush1.msra.mxu0 0.0
        %2747 = vmatprep.subr.mxu0 0.0
        %2748 = vmatpush1.msra.mxu0 0.0
        %2749 = vmatprep.subr.mxu0 0.0
        %2750 = vmatpush1.msra.mxu0 0.0
        %2751 = vmatprep.subr.mxu0 0.0
        %2752 = vmatpush1.msra.mxu0 0.0
        %2753 = vmatprep.subr.mxu0 0.0
        %2754 = vmatpush1.msra.mxu0 0.0
        %2755 = vmatprep.subr.mxu0 0.0
        %2756 = vmatpush1.msra.mxu0 0.0
        %2757 = vmatprep.subr.mxu0 0.0
        %2758 = vmatpush1.msra.mxu0 0.0
        %2759 = vmatprep.subr.mxu0 0.0
        %2760 = vmatpush1.msra.mxu0 0.0
        %2761 = vmatprep.subr.mxu0 0.0
        %2762 = vmatpush1.msra.mxu0 0.0
        %2763 = vmatprep.subr.mxu0 0.0
        %2764 = vmatpush1.msra.mxu0 0.0
        %2765 = vmatprep.subr.mxu0 0.0
        %2766 = vmatpush1.msra.mxu0 0.0
        %2767 = vmatprep.subr.mxu0 0.0
        %2768 = vmatpush1.msra.mxu0 0.0
        %2769 = vmatprep.subr.mxu0 0.0
        %2770 = vmatpush1.msra.mxu0 0.0
        %2771 = vmatprep.subr.mxu0 0.0
        %2772 = vmatpush1.msra.mxu0 0.0
        %2773 = vmatprep.subr.mxu0 0.0
        %2774 = vmatpush1.msra.mxu0 0.0
        %2775 = vmatprep.mubr.f32.mxu0 0.0
        %2776 = vmatmul.mubr.f32.gmra.mrb[0].mxu0 %v2688
        %v2777 = vpop.f32.mrb[0].mxu0
        %v2778 = vadd.f32 0.0, %v2777
        %v2779 = vpop.f32.mrb[0].mxu0
        %2780 = vmatprep.mubr.f32.mxu0 0.0
        %2781 = vmatmul.mubr.f32.gmra.mrb[0].mxu0 %v2691
        %v2782 = vpop.f32.mrb[0].mxu0
        %v2783 = vadd.f32 0.0, %v2782
        %v2784 = vpop.f32.mrb[0].mxu0
        %2785 = vmatprep.mubr.f32.mxu0 0.0
        %2786 = vmatmul.mubr.f32.gmra.mrb[0].mxu0 %v2694
        %v2787 = vpop.f32.mrb[0].mxu0
        %v2788 = vadd.f32 0.0, %v2787
        %v2789 = vpop.f32.mrb[0].mxu0
        %2790 = vmatprep.mubr.f32.mxu0 0.0
        %2791 = vmatmul.mubr.f32.gmra.mrb[0].mxu0 %v2697
        %v2792 = vpop.f32.mrb[0].mxu0
        %v2793 = vadd.f32 0.0, %v2792
        %v2794 = vpop.f32.mrb[0].mxu0
        %2795 = vmatprep.mubr.f32.mxu0 0.0
        %2796 = vmatmul.mubr.f32.gmra.mrb[0].mxu0 %v2700
        %v2797 = vpop.f32.mrb[0].mxu0
        %v2798 = vadd.f32 0.0, %v2797
        %v2799 = vpop.f32.mrb[0].mxu0
        %2800 = vmatprep.mubr.f32.mxu0 0.0
        %2801 = vmatmul.mubr.f32.gmra.mrb[0].mxu0 %v2703
        %v2802 = vpop.f32.mrb[0].mxu0
        %v2803 = vadd.f32 0.0, %v2802
        %v2804 = vpop.f32.mrb[0].mxu0
        %2805 = vmatprep.mubr.f32.mxu0 0.0
        %2806 = vmatmul.mubr.f32.gmra.mrb[0].mxu0 %v2706
        %v2807 = vpop.f32.mrb[0].mxu0
        %v2808 = vadd.f32 0.0, %v2807
        %v2809 = vpop.f32.mrb[0].mxu0
        %2810 = vmatprep.mubr.f32.mxu0 0.0
        %2811 = vmatmul.mubr.f32.gmra.mrb[0].mxu0 %v2709
        %v2812 = vpop.f32.mrb[0].mxu0
        %v2813 = vadd.f32 0.0, %v2812
        %v2814 = vpop.f32.mrb[0].mxu0
        %2815 = vdwg.mxu0
        %2832 = vrot.lane.b32.xlu0 %v2617, 32
        %v2833 = vpop.permute.xlu0 %2832
        %2834 = vrot.lane.b32.xlu0 %v2622, 32
        %v2835 = vpop.permute.xlu0 %2834
        %2836 = vrot.lane.b32.xlu0 %v2627, 32
        %v2837 = vpop.permute.xlu0 %2836
        %2838 = vrot.lane.b32.xlu0 %v2632, 32
        %v2839 = vpop.permute.xlu0 %2838
        %2840 = vrot.lane.b32.xlu0 %v2637, 32
        %v2841 = vpop.permute.xlu0 %2840
        %2842 = vrot.lane.b32.xlu0 %v2642, 32
        %v2843 = vpop.permute.xlu0 %2842
        %2844 = vrot.lane.b32.xlu0 %v2647, 32
        %v2845 = vpop.permute.xlu0 %2844
        %2846 = vrot.lane.b32.xlu0 %v2652, 32
        %v2847 = vpop.permute.xlu0 %2846
        %2848 = vrot.lane.b32.xlu0 %v2778, 32
        %v2849 = vpop.permute.xlu0 %2848
        %2850 = vrot.lane.b32.xlu0 %v2783, 32
        %v2851 = vpop.permute.xlu0 %2850
        %2852 = vrot.lane.b32.xlu0 %v2788, 32
        %v2853 = vpop.permute.xlu0 %2852
        %2854 = vrot.lane.b32.xlu0 %v2793, 32
        %v2855 = vpop.permute.xlu0 %2854
        %2856 = vrot.lane.b32.xlu0 %v2798, 32
        %v2857 = vpop.permute.xlu0 %2856
        %2858 = vrot.lane.b32.xlu0 %v2803, 32
        %v2859 = vpop.permute.xlu0 %2858
        %2860 = vrot.lane.b32.xlu0 %v2808, 32
        %v2861 = vpop.permute.xlu0 %2860
        %2862 = vrot.lane.b32.xlu0 %v2813, 32
        %v2863 = vpop.permute.xlu0 %2862
        %vm2880 = vcmask 523520
        %2881 = vst.msk [vmem:[#allocation2] sm:$0xff] %vm2880, %v2833
        %2882 = vst.msk [vmem:[#allocation2 + $0x8] sm:$0xff] %vm2880, %v2835
        %2883 = vst.msk [vmem:[#allocation2 + $0x10] sm:$0xff] %vm2880, %v2837
        %2884 = vst.msk [vmem:[#allocation2 + $0x18] sm:$0xff] %vm2880, %v2839
        %2885 = vst.msk [vmem:[#allocation2 + $0x20] sm:$0xff] %vm2880, %v2841
        %2886 = vst.msk [vmem:[#allocation2 + $0x28] sm:$0xff] %vm2880, %v2843
        %2887 = vst.msk [vmem:[#allocation2 + $0x30] sm:$0xff] %vm2880, %v2845
        %2888 = vst.msk [vmem:[#allocation2 + $0x38] sm:$0xff] %vm2880, %v2847
        %2889 = vst.msk [vmem:[#allocation2 + $0x40] sm:$0xff] %vm2880, %v2849
        %2890 = vst.msk [vmem:[#allocation2 + $0x48] sm:$0xff] %vm2880, %v2851
        %2891 = vst.msk [vmem:[#allocation2 + $0x50] sm:$0xff] %vm2880, %v2853
        %2892 = vst.msk [vmem:[#allocation2 + $0x58] sm:$0xff] %vm2880, %v2855
        %2893 = vst.msk [vmem:[#allocation2 + $0x60] sm:$0xff] %vm2880, %v2857
        %2894 = vst.msk [vmem:[#allocation2 + $0x68] sm:$0xff] %vm2880, %v2859
        %2895 = vst.msk [vmem:[#allocation2 + $0x70] sm:$0xff] %vm2880, %v2861
        %2896 = vst.msk [vmem:[#allocation2 + $0x78] sm:$0xff] %vm2880, %v2863
        %2897 = vrot.lane.b32.xlu0 %v916, 64
        %v2898 = vpop.permute.xlu0 %2897
        %2899 = vrot.lane.b32.xlu0 %v922, 64
        %v2900 = vpop.permute.xlu0 %2899
        %2901 = vrot.lane.b32.xlu0 %v928, 64
        %v2902 = vpop.permute.xlu0 %2901
        %2903 = vrot.lane.b32.xlu0 %v934, 64
        %v2904 = vpop.permute.xlu0 %2903
        %2905 = vrot.lane.b32.xlu0 %v940, 64
        %v2906 = vpop.permute.xlu0 %2905
        %2907 = vrot.lane.b32.xlu0 %v946, 64
        %v2908 = vpop.permute.xlu0 %2907
        %2909 = vrot.lane.b32.xlu0 %v952, 64
        %v2910 = vpop.permute.xlu0 %2909
        %2911 = vrot.lane.b32.xlu0 %v958, 64
        %v2912 = vpop.permute.xlu0 %2911
        %2913 = vrot.lane.b32.xlu0 %v918, 64
        %v2914 = vpop.permute.xlu0 %2913
        %2915 = vrot.lane.b32.xlu0 %v924, 64
        %v2916 = vpop.permute.xlu0 %2915
        %2917 = vrot.lane.b32.xlu0 %v930, 64
        %v2918 = vpop.permute.xlu0 %2917
        %2919 = vrot.lane.b32.xlu0 %v936, 64
        %v2920 = vpop.permute.xlu0 %2919
        %2921 = vrot.lane.b32.xlu0 %v942, 64
        %v2922 = vpop.permute.xlu0 %2921
        %2923 = vrot.lane.b32.xlu0 %v948, 64
        %v2924 = vpop.permute.xlu0 %2923
        %2925 = vrot.lane.b32.xlu0 %v954, 64
        %v2926 = vpop.permute.xlu0 %2925
        %2927 = vrot.lane.b32.xlu0 %v960, 64
        %v2928 = vpop.permute.xlu0 %2927
        %v2929 = vsel %vm1174, %v2898, 0
        %v2931 = vsel %vm1174, %v2900, 0
        %v2933 = vsel %vm1174, %v2902, 0
        %v2935 = vsel %vm1174, %v2904, 0
        %v2937 = vsel %vm1174, %v2906, 0
        %v2939 = vsel %vm1174, %v2908, 0
        %v2941 = vsel %vm1174, %v2910, 0
        %v2943 = vsel %vm1174, %v2912, 0
        %v2945 = vsel %vm1174, %v2914, 0
        %v2947 = vsel %vm1174, %v2916, 0
        %v2949 = vsel %vm1174, %v2918, 0
        %v2951 = vsel %vm1174, %v2920, 0
        %v2953 = vsel %vm1174, %v2922, 0
        %v2955 = vsel %vm1174, %v2924, 0
        %v2957 = vsel %vm1174, %v2926, 0
        %v2959 = vsel %vm1174, %v2928, 0
        %2961 = vmatprep.subr.mxu0 0.0
        %2962 = vmatpush1.xpose.msra.mxu0 %v2945
        %2963 = vmatprep.subr.mxu0 0.0
        %2964 = vmatpush1.xpose.msra.mxu0 %v2947
        %2965 = vmatprep.subr.mxu0 0.0
        %2966 = vmatpush1.xpose.msra.mxu0 %v2949
        %2967 = vmatprep.subr.mxu0 0.0
        %2968 = vmatpush1.xpose.msra.mxu0 %v2951
        %2969 = vmatprep.subr.mxu0 0.0
        %2970 = vmatpush1.xpose.msra.mxu0 %v2953
        %2971 = vmatprep.subr.mxu0 0.0
        %2972 = vmatpush1.xpose.msra.mxu0 %v2955
        %2973 = vmatprep.subr.mxu0 0.0
        %2974 = vmatpush1.xpose.msra.mxu0 %v2957
        %2975 = vmatprep.subr.mxu0 0.0
        %2976 = vmatpush1.xpose.msra.mxu0 %v2959
        %2977 = vmatprep.subr.mxu0 0.0
        %2978 = vmatpush1.xpose.msra.mxu0 0.0
        %2979 = vmatprep.subr.mxu0 0.0
        %2980 = vmatpush1.xpose.msra.mxu0 0.0
        %2981 = vmatprep.subr.mxu0 0.0
        %2982 = vmatpush1.xpose.msra.mxu0 0.0
        %2983 = vmatprep.subr.mxu0 0.0
        %2984 = vmatpush1.xpose.msra.mxu0 0.0
        %2985 = vmatprep.subr.mxu0 0.0
        %2986 = vmatpush1.xpose.msra.mxu0 0.0
        %2987 = vmatprep.subr.mxu0 0.0
        %2988 = vmatpush1.xpose.msra.mxu0 0.0
        %2989 = vmatprep.subr.mxu0 0.0
        %2990 = vmatpush1.xpose.msra.mxu0 0.0
        %2991 = vmatprep.subr.mxu0 0.0
        %2992 = vmatpush1.xpose.msra.mxu0 0.0
        %2993 = vmatprep.subr.mxu0 0.0
        %2994 = vmatpush1.xpose.msra.mxu0 0.0
        %2995 = vmatprep.subr.mxu0 0.0
        %2996 = vmatpush1.xpose.msra.mxu0 0.0
        %2997 = vmatprep.subr.mxu0 0.0
        %2998 = vmatpush1.xpose.msra.mxu0 0.0
        %2999 = vmatprep.subr.mxu0 0.0
        %3000 = vmatpush1.xpose.msra.mxu0 0.0
        %3001 = vmatprep.subr.mxu0 0.0
        %3002 = vmatpush1.xpose.msra.mxu0 0.0
        %3003 = vmatprep.subr.mxu0 0.0
        %3004 = vmatpush1.xpose.msra.mxu0 0.0
        %3005 = vmatprep.subr.mxu0 0.0
        %3006 = vmatpush1.xpose.msra.mxu0 0.0
        %3007 = vmatprep.subr.mxu0 0.0
        %3008 = vmatpush1.xpose.msra.mxu0 0.0
        %3009 = vmatprep.subr.mxu0 0.0
        %3010 = vmatpush1.xpose.msra.mxu0 0.0
        %3011 = vmatprep.subr.mxu0 0.0
        %3012 = vmatpush1.xpose.msra.mxu0 0.0
        %3013 = vmatprep.subr.mxu0 0.0
        %3014 = vmatpush1.xpose.msra.mxu0 0.0
        %3015 = vmatprep.subr.mxu0 0.0
        %3016 = vmatpush1.xpose.msra.mxu0 0.0
        %3017 = vmatprep.subr.mxu0 0.0
        %3018 = vmatpush1.xpose.msra.mxu0 0.0
        %3019 = vmatprep.subr.mxu0 0.0
        %3020 = vmatpush1.xpose.msra.mxu0 0.0
        %3021 = vmatprep.subr.mxu0 0.0
        %3022 = vmatpush1.xpose.msra.mxu0 0.0
        %3023 = vmatprep.subr.mxu0 0.0
        %3024 = vmatpush1.xpose.msra.mxu0 0.0
        %3025 = vmatprep.mubr.f32.mxu0 0.0
        %3026 = vmatmul.mubr.f32.gmra.mrb[0].mxu0 %v2929
        %v3027 = vpop.f32.mrb[0].mxu0
        %v3028 = vadd.f32 0.0, %v3027
        %v3029 = vpop.f32.mrb[0].mxu0
        %3030 = vmatprep.mubr.f32.mxu0 0.0
        %3031 = vmatmul.mubr.f32.gmra.mrb[0].mxu0 %v2931
        %v3032 = vpop.f32.mrb[0].mxu0
        %v3033 = vadd.f32 0.0, %v3032
        %v3034 = vpop.f32.mrb[0].mxu0
        %3035 = vmatprep.mubr.f32.mxu0 0.0
        %3036 = vmatmul.mubr.f32.gmra.mrb[0].mxu0 %v2933
        %v3037 = vpop.f32.mrb[0].mxu0
        %v3038 = vadd.f32 0.0, %v3037
        %v3039 = vpop.f32.mrb[0].mxu0
        %3040 = vmatprep.mubr.f32.mxu0 0.0
        %3041 = vmatmul.mubr.f32.gmra.mrb[0].mxu0 %v2935
        %v3042 = vpop.f32.mrb[0].mxu0
        %v3043 = vadd.f32 0.0, %v3042
        %v3044 = vpop.f32.mrb[0].mxu0
        %3045 = vmatprep.mubr.f32.mxu0 0.0
        %3046 = vmatmul.mubr.f32.gmra.mrb[0].mxu0 %v2937
        %v3047 = vpop.f32.mrb[0].mxu0
        %v3048 = vadd.f32 0.0, %v3047
        %v3049 = vpop.f32.mrb[0].mxu0
        %3050 = vmatprep.mubr.f32.mxu0 0.0
        %3051 = vmatmul.mubr.f32.gmra.mrb[0].mxu0 %v2939
        %v3052 = vpop.f32.mrb[0].mxu0
        %v3053 = vadd.f32 0.0, %v3052
        %v3054 = vpop.f32.mrb[0].mxu0
        %3055 = vmatprep.mubr.f32.mxu0 0.0
        %3056 = vmatmul.mubr.f32.gmra.mrb[0].mxu0 %v2941
        %v3057 = vpop.f32.mrb[0].mxu0
        %v3058 = vadd.f32 0.0, %v3057
        %v3059 = vpop.f32.mrb[0].mxu0
        %3060 = vmatprep.mubr.f32.mxu0 0.0
        %3061 = vmatmul.mubr.f32.gmra.mrb[0].mxu0 %v2943
        %v3062 = vpop.f32.mrb[0].mxu0
        %v3063 = vadd.f32 0.0, %v3062
        %v3064 = vpop.f32.mrb[0].mxu0
        %3065 = vdwg.mxu0
        %3066 = vrot.lane.b32.xlu0 %v964, 64
        %v3067 = vpop.permute.xlu0 %3066
        %3068 = vrot.lane.b32.xlu0 %v970, 64
        %v3069 = vpop.permute.xlu0 %3068
        %3070 = vrot.lane.b32.xlu0 %v976, 64
        %v3071 = vpop.permute.xlu0 %3070
        %3072 = vrot.lane.b32.xlu0 %v982, 64
        %v3073 = vpop.permute.xlu0 %3072
        %3074 = vrot.lane.b32.xlu0 %v988, 64
        %v3075 = vpop.permute.xlu0 %3074
        %3076 = vrot.lane.b32.xlu0 %v994, 64
        %v3077 = vpop.permute.xlu0 %3076
        %3078 = vrot.lane.b32.xlu0 %v1000, 64
        %v3079 = vpop.permute.xlu0 %3078
        %3080 = vrot.lane.b32.xlu0 %v1006, 64
        %v3081 = vpop.permute.xlu0 %3080
        %3082 = vrot.lane.b32.xlu0 %v966, 64
        %v3083 = vpop.permute.xlu0 %3082
        %3084 = vrot.lane.b32.xlu0 %v972, 64
        %v3085 = vpop.permute.xlu0 %3084
        %3086 = vrot.lane.b32.xlu0 %v978, 64
        %v3087 = vpop.permute.xlu0 %3086
        %3088 = vrot.lane.b32.xlu0 %v984, 64
        %v3089 = vpop.permute.xlu0 %3088
        %3090 = vrot.lane.b32.xlu0 %v990, 64
        %v3091 = vpop.permute.xlu0 %3090
        %3092 = vrot.lane.b32.xlu0 %v996, 64
        %v3093 = vpop.permute.xlu0 %3092
        %3094 = vrot.lane.b32.xlu0 %v1002, 64
        %v3095 = vpop.permute.xlu0 %3094
        %3096 = vrot.lane.b32.xlu0 %v1008, 64
        %v3097 = vpop.permute.xlu0 %3096
        %v3098 = vsel %vm1174, %v3067, 0
        %v3100 = vsel %vm1174, %v3069, 0
        %v3102 = vsel %vm1174, %v3071, 0
        %v3104 = vsel %vm1174, %v3073, 0
        %v3106 = vsel %vm1174, %v3075, 0
        %v3108 = vsel %vm1174, %v3077, 0
        %v3110 = vsel %vm1174, %v3079, 0
        %v3112 = vsel %vm1174, %v3081, 0
        %v3114 = vsel %vm1174, %v3083, 0
        %v3116 = vsel %vm1174, %v3085, 0
        %v3118 = vsel %vm1174, %v3087, 0
        %v3120 = vsel %vm1174, %v3089, 0
        %v3122 = vsel %vm1174, %v3091, 0
        %v3124 = vsel %vm1174, %v3093, 0
        %v3126 = vsel %vm1174, %v3095, 0
        %v3128 = vsel %vm1174, %v3097, 0
        %3130 = vmatprep.subr.mxu0 0.0
        %3131 = vmatpush1.xpose.msra.mxu0 %v3114
        %3132 = vmatprep.subr.mxu0 0.0
        %3133 = vmatpush1.xpose.msra.mxu0 %v3116
        %3134 = vmatprep.subr.mxu0 0.0
        %3135 = vmatpush1.xpose.msra.mxu0 %v3118
        %3136 = vmatprep.subr.mxu0 0.0
        %3137 = vmatpush1.xpose.msra.mxu0 %v3120
        %3138 = vmatprep.subr.mxu0 0.0
        %3139 = vmatpush1.xpose.msra.mxu0 %v3122
        %3140 = vmatprep.subr.mxu0 0.0
        %3141 = vmatpush1.xpose.msra.mxu0 %v3124
        %3142 = vmatprep.subr.mxu0 0.0
        %3143 = vmatpush1.xpose.msra.mxu0 %v3126
        %3144 = vmatprep.subr.mxu0 0.0
        %3145 = vmatpush1.xpose.msra.mxu0 %v3128
        %3146 = vmatprep.subr.mxu0 0.0
        %3147 = vmatpush1.xpose.msra.mxu0 0.0
        %3148 = vmatprep.subr.mxu0 0.0
        %3149 = vmatpush1.xpose.msra.mxu0 0.0
        %3150 = vmatprep.subr.mxu0 0.0
        %3151 = vmatpush1.xpose.msra.mxu0 0.0
        %3152 = vmatprep.subr.mxu0 0.0
        %3153 = vmatpush1.xpose.msra.mxu0 0.0
        %3154 = vmatprep.subr.mxu0 0.0
        %3155 = vmatpush1.xpose.msra.mxu0 0.0
        %3156 = vmatprep.subr.mxu0 0.0
        %3157 = vmatpush1.xpose.msra.mxu0 0.0
        %3158 = vmatprep.subr.mxu0 0.0
        %3159 = vmatpush1.xpose.msra.mxu0 0.0
        %3160 = vmatprep.subr.mxu0 0.0
        %3161 = vmatpush1.xpose.msra.mxu0 0.0
        %3162 = vmatprep.subr.mxu0 0.0
        %3163 = vmatpush1.xpose.msra.mxu0 0.0
        %3164 = vmatprep.subr.mxu0 0.0
        %3165 = vmatpush1.xpose.msra.mxu0 0.0
        %3166 = vmatprep.subr.mxu0 0.0
        %3167 = vmatpush1.xpose.msra.mxu0 0.0
        %3168 = vmatprep.subr.mxu0 0.0
        %3169 = vmatpush1.xpose.msra.mxu0 0.0
        %3170 = vmatprep.subr.mxu0 0.0
        %3171 = vmatpush1.xpose.msra.mxu0 0.0
        %3172 = vmatprep.subr.mxu0 0.0
        %3173 = vmatpush1.xpose.msra.mxu0 0.0
        %3174 = vmatprep.subr.mxu0 0.0
        %3175 = vmatpush1.xpose.msra.mxu0 0.0
        %3176 = vmatprep.subr.mxu0 0.0
        %3177 = vmatpush1.xpose.msra.mxu0 0.0
        %3178 = vmatprep.subr.mxu0 0.0
        %3179 = vmatpush1.xpose.msra.mxu0 0.0
        %3180 = vmatprep.subr.mxu0 0.0
        %3181 = vmatpush1.xpose.msra.mxu0 0.0
        %3182 = vmatprep.subr.mxu0 0.0
        %3183 = vmatpush1.xpose.msra.mxu0 0.0
        %3184 = vmatprep.subr.mxu0 0.0
        %3185 = vmatpush1.xpose.msra.mxu0 0.0
        %3186 = vmatprep.subr.mxu0 0.0
        %3187 = vmatpush1.xpose.msra.mxu0 0.0
        %3188 = vmatprep.subr.mxu0 0.0
        %3189 = vmatpush1.xpose.msra.mxu0 0.0
        %3190 = vmatprep.subr.mxu0 0.0
        %3191 = vmatpush1.xpose.msra.mxu0 0.0
        %3192 = vmatprep.subr.mxu0 0.0
        %3193 = vmatpush1.xpose.msra.mxu0 0.0
        %3194 = vmatprep.mubr.f32.mxu0 0.0
        %3195 = vmatmul.mubr.f32.gmra.mrb[0].mxu0 %v3098
        %v3196 = vpop.f32.mrb[0].mxu0
        %v3197 = vadd.f32 0.0, %v3196
        %v3198 = vpop.f32.mrb[0].mxu0
        %3199 = vmatprep.mubr.f32.mxu0 0.0
        %3200 = vmatmul.mubr.f32.gmra.mrb[0].mxu0 %v3100
        %v3201 = vpop.f32.mrb[0].mxu0
        %v3202 = vadd.f32 0.0, %v3201
        %v3203 = vpop.f32.mrb[0].mxu0
        %3204 = vmatprep.mubr.f32.mxu0 0.0
        %3205 = vmatmul.mubr.f32.gmra.mrb[0].mxu0 %v3102
        %v3206 = vpop.f32.mrb[0].mxu0
        %v3207 = vadd.f32 0.0, %v3206
        %v3208 = vpop.f32.mrb[0].mxu0
        %3209 = vmatprep.mubr.f32.mxu0 0.0
        %3210 = vmatmul.mubr.f32.gmra.mrb[0].mxu0 %v3104
        %v3211 = vpop.f32.mrb[0].mxu0
        %v3212 = vadd.f32 0.0, %v3211
        %v3213 = vpop.f32.mrb[0].mxu0
        %3214 = vmatprep.mubr.f32.mxu0 0.0
        %3215 = vmatmul.mubr.f32.gmra.mrb[0].mxu0 %v3106
        %v3216 = vpop.f32.mrb[0].mxu0
        %v3217 = vadd.f32 0.0, %v3216
        %v3218 = vpop.f32.mrb[0].mxu0
        %3219 = vmatprep.mubr.f32.mxu0 0.0
        %3220 = vmatmul.mubr.f32.gmra.mrb[0].mxu0 %v3108
        %v3221 = vpop.f32.mrb[0].mxu0
        %v3222 = vadd.f32 0.0, %v3221
        %v3223 = vpop.f32.mrb[0].mxu0
        %3224 = vmatprep.mubr.f32.mxu0 0.0
        %3225 = vmatmul.mubr.f32.gmra.mrb[0].mxu0 %v3110
        %v3226 = vpop.f32.mrb[0].mxu0
        %v3227 = vadd.f32 0.0, %v3226
        %v3228 = vpop.f32.mrb[0].mxu0
        %3229 = vmatprep.mubr.f32.mxu0 0.0
        %3230 = vmatmul.mubr.f32.gmra.mrb[0].mxu0 %v3112
        %v3231 = vpop.f32.mrb[0].mxu0
        %v3232 = vadd.f32 0.0, %v3231
        %v3233 = vpop.f32.mrb[0].mxu0
        %3234 = vdwg.mxu0
        %v3235 = vsel %vm1489, %v3028, -3.4028235e+38
        %v3236 = vsel %vm1490, %v3033, -3.4028235e+38
        %v3237 = vsel %vm1491, %v3038, -3.4028235e+38
        %v3238 = vsel %vm1492, %v3043, -3.4028235e+38
        %v3239 = vsel %vm1493, %v3048, -3.4028235e+38
        %v3240 = vsel %vm1494, %v3053, -3.4028235e+38
        %v3241 = vsel %vm1495, %v3058, -3.4028235e+38
        %v3242 = vsel %vm1496, %v3063, -3.4028235e+38
        %v3243 = vsel %vm1489, %v3197, -3.4028235e+38
        %v3244 = vsel %vm1490, %v3202, -3.4028235e+38
        %v3245 = vsel %vm1491, %v3207, -3.4028235e+38
        %v3246 = vsel %vm1492, %v3212, -3.4028235e+38
        %v3247 = vsel %vm1493, %v3217, -3.4028235e+38
        %v3248 = vsel %vm1494, %v3222, -3.4028235e+38
        %v3249 = vsel %vm1495, %v3227, -3.4028235e+38
        %v3250 = vsel %vm1496, %v3232, -3.4028235e+38
        %v3251 = vsel %vm1513, %v3235, -inf
        %3252 = vmax.xlane.f32.xlu0 %v3251
        %v3253 = vpop.xlane.xlu0 %3252
        %v3254 = vsel %vm1513, %v3236, -inf
        %3255 = vmax.xlane.f32.xlu0 %v3254
        %v3256 = vpop.xlane.xlu0 %3255
        %v3257 = vsel %vm1513, %v3237, -inf
        %3258 = vmax.xlane.f32.xlu0 %v3257
        %v3259 = vpop.xlane.xlu0 %3258
        %v3260 = vsel %vm1513, %v3238, -inf
        %3261 = vmax.xlane.f32.xlu0 %v3260
        %v3262 = vpop.xlane.xlu0 %3261
        %v3263 = vsel %vm1513, %v3239, -inf
        %3264 = vmax.xlane.f32.xlu0 %v3263
        %v3265 = vpop.xlane.xlu0 %3264
        %v3266 = vsel %vm1513, %v3240, -inf
        %3267 = vmax.xlane.f32.xlu0 %v3266
        %v3268 = vpop.xlane.xlu0 %3267
        %v3269 = vsel %vm1513, %v3241, -inf
        %3270 = vmax.xlane.f32.xlu0 %v3269
        %v3271 = vpop.xlane.xlu0 %3270
        %v3272 = vsel %vm1513, %v3242, -inf
        %3273 = vmax.xlane.f32.xlu0 %v3272
        %v3274 = vpop.xlane.xlu0 %3273
        %v3275 = vsel %vm1513, %v3243, -inf
        %3276 = vmax.xlane.f32.xlu0 %v3275
        %v3277 = vpop.xlane.xlu0 %3276
        %v3278 = vsel %vm1513, %v3244, -inf
        %3279 = vmax.xlane.f32.xlu0 %v3278
        %v3280 = vpop.xlane.xlu0 %3279
        %v3281 = vsel %vm1513, %v3245, -inf
        %3282 = vmax.xlane.f32.xlu0 %v3281
        %v3283 = vpop.xlane.xlu0 %3282
        %v3284 = vsel %vm1513, %v3246, -inf
        %3285 = vmax.xlane.f32.xlu0 %v3284
        %v3286 = vpop.xlane.xlu0 %3285
        %v3287 = vsel %vm1513, %v3247, -inf
        %3288 = vmax.xlane.f32.xlu0 %v3287
        %v3289 = vpop.xlane.xlu0 %3288
        %v3290 = vsel %vm1513, %v3248, -inf
        %3291 = vmax.xlane.f32.xlu0 %v3290
        %v3292 = vpop.xlane.xlu0 %3291
        %v3293 = vsel %vm1513, %v3249, -inf
        %3294 = vmax.xlane.f32.xlu0 %v3293
        %v3295 = vpop.xlane.xlu0 %3294
        %v3296 = vsel %vm1513, %v3250, -inf
        %3297 = vmax.xlane.f32.xlu0 %v3296
        %v3298 = vpop.xlane.xlu0 %3297
        %v3299 = vsub.f32 %v3235, %v3253
        %v3300 = vsub.f32 %v3236, %v3256
        %v3301 = vsub.f32 %v3237, %v3259
        %v3302 = vsub.f32 %v3238, %v3262
        %v3303 = vsub.f32 %v3239, %v3265
        %v3304 = vsub.f32 %v3240, %v3268
        %v3305 = vsub.f32 %v3241, %v3271
        %v3306 = vsub.f32 %v3242, %v3274
        %v3307 = vsub.f32 %v3243, %v3277
        %v3308 = vsub.f32 %v3244, %v3280
        %v3309 = vsub.f32 %v3245, %v3283
        %v3310 = vsub.f32 %v3246, %v3286
        %v3311 = vsub.f32 %v3247, %v3289
        %v3312 = vsub.f32 %v3248, %v3292
        %v3313 = vsub.f32 %v3249, %v3295
        %v3314 = vsub.f32 %v3250, %v3298
        %v3315 = vmul.f32 %v3299, 1.442695
        %v3316 = vpow.pop %v3315
        %v3317 = vmul.f32 %v3300, 1.442695
        %v3318 = vpow.pop %v3317
        %v3319 = vmul.f32 %v3301, 1.442695
        %v3320 = vpow.pop %v3319
        %v3321 = vmul.f32 %v3302, 1.442695
        %v3322 = vpow.pop %v3321
        %v3323 = vmul.f32 %v3303, 1.442695
        %v3324 = vpow.pop %v3323
        %v3325 = vmul.f32 %v3304, 1.442695
        %v3326 = vpow.pop %v3325
        %v3327 = vmul.f32 %v3305, 1.442695
        %v3328 = vpow.pop %v3327
        %v3329 = vmul.f32 %v3306, 1.442695
        %v3330 = vpow.pop %v3329
        %v3331 = vmul.f32 %v3307, 1.442695
        %v3332 = vpow.pop %v3331
        %v3333 = vmul.f32 %v3308, 1.442695
        %v3334 = vpow.pop %v3333
        %v3335 = vmul.f32 %v3309, 1.442695
        %v3336 = vpow.pop %v3335
        %v3337 = vmul.f32 %v3310, 1.442695
        %v3338 = vpow.pop %v3337
        %v3339 = vmul.f32 %v3311, 1.442695
        %v3340 = vpow.pop %v3339
        %v3341 = vmul.f32 %v3312, 1.442695
        %v3342 = vpow.pop %v3341
        %v3343 = vmul.f32 %v3313, 1.442695
        %v3344 = vpow.pop %v3343
        %v3345 = vmul.f32 %v3314, 1.442695
        %v3346 = vpow.pop %v3345
        %v3347 = vsel %vm1513, %v3316, 0.0
        %3348 = vadd.xlane.f32.xlu0 %v3347
        %v3349 = vpop.xlane.xlu0 %3348
        %v3350 = vsel %vm1513, %v3318, 0.0
        %3351 = vadd.xlane.f32.xlu0 %v3350
        %v3352 = vpop.xlane.xlu0 %3351
        %v3353 = vsel %vm1513, %v3320, 0.0
        %3354 = vadd.xlane.f32.xlu0 %v3353
        %v3355 = vpop.xlane.xlu0 %3354
        %v3356 = vsel %vm1513, %v3322, 0.0
        %3357 = vadd.xlane.f32.xlu0 %v3356
        %v3358 = vpop.xlane.xlu0 %3357
        %v3359 = vsel %vm1513, %v3324, 0.0
        %3360 = vadd.xlane.f32.xlu0 %v3359
        %v3361 = vpop.xlane.xlu0 %3360
        %v3362 = vsel %vm1513, %v3326, 0.0
        %3363 = vadd.xlane.f32.xlu0 %v3362
        %v3364 = vpop.xlane.xlu0 %3363
        %v3365 = vsel %vm1513, %v3328, 0.0
        %3366 = vadd.xlane.f32.xlu0 %v3365
        %v3367 = vpop.xlane.xlu0 %3366
        %v3368 = vsel %vm1513, %v3330, 0.0
        %3369 = vadd.xlane.f32.xlu0 %v3368
        %v3370 = vpop.xlane.xlu0 %3369
        %v3371 = vsel %vm1513, %v3332, 0.0
        %3372 = vadd.xlane.f32.xlu0 %v3371
        %v3373 = vpop.xlane.xlu0 %3372
        %v3374 = vsel %vm1513, %v3334, 0.0
        %3375 = vadd.xlane.f32.xlu0 %v3374
        %v3376 = vpop.xlane.xlu0 %3375
        %v3377 = vsel %vm1513, %v3336, 0.0
        %3378 = vadd.xlane.f32.xlu0 %v3377
        %v3379 = vpop.xlane.xlu0 %3378
        %v3380 = vsel %vm1513, %v3338, 0.0
        %3381 = vadd.xlane.f32.xlu0 %v3380
        %v3382 = vpop.xlane.xlu0 %3381
        %v3383 = vsel %vm1513, %v3340, 0.0
        %3384 = vadd.xlane.f32.xlu0 %v3383
        %v3385 = vpop.xlane.xlu0 %3384
        %v3386 = vsel %vm1513, %v3342, 0.0
        %3387 = vadd.xlane.f32.xlu0 %v3386
        %v3388 = vpop.xlane.xlu0 %3387
        %v3389 = vsel %vm1513, %v3344, 0.0
        %3390 = vadd.xlane.f32.xlu0 %v3389
        %v3391 = vpop.xlane.xlu0 %3390
        %v3392 = vsel %vm1513, %v3346, 0.0
        %3393 = vadd.xlane.f32.xlu0 %v3392
        %v3394 = vpop.xlane.xlu0 %3393
        %v3395 = vrcp.pop %v3349
        %v3396 = vrcp.pop %v3352
        %v3397 = vrcp.pop %v3355
        %v3398 = vrcp.pop %v3358
        %v3399 = vrcp.pop %v3361
        %v3400 = vrcp.pop %v3364
        %v3401 = vrcp.pop %v3367
        %v3402 = vrcp.pop %v3370
        %v3403 = vrcp.pop %v3373
        %v3404 = vrcp.pop %v3376
        %v3405 = vrcp.pop %v3379
        %v3406 = vrcp.pop %v3382
        %v3407 = vrcp.pop %v3385
        %v3408 = vrcp.pop %v3388
        %v3409 = vrcp.pop %v3391
        %v3410 = vrcp.pop %v3394
        %v3411 = vmul.f32 %v3316, %v3395
        %v3412 = vmul.f32 %v3318, %v3396
        %v3413 = vmul.f32 %v3320, %v3397
        %v3414 = vmul.f32 %v3322, %v3398
        %v3415 = vmul.f32 %v3324, %v3399
        %v3416 = vmul.f32 %v3326, %v3400
        %v3417 = vmul.f32 %v3328, %v3401
        %v3418 = vmul.f32 %v3330, %v3402
        %v3419 = vmul.f32 %v3332, %v3403
        %v3420 = vmul.f32 %v3334, %v3404
        %v3421 = vmul.f32 %v3336, %v3405
        %v3422 = vmul.f32 %v3338, %v3406
        %v3423 = vmul.f32 %v3340, %v3407
        %v3424 = vmul.f32 %v3342, %v3408
        %v3425 = vmul.f32 %v3344, %v3409
        %v3426 = vmul.f32 %v3346, %v3410
        %3427 = vrot.lane.b32.xlu0 %v1077, 64
        %v3428 = vpop.permute.xlu0 %3427
        %3429 = vrot.lane.b32.xlu0 %v1082, 64
        %v3430 = vpop.permute.xlu0 %3429
        %3431 = vrot.lane.b32.xlu0 %v1087, 64
        %v3432 = vpop.permute.xlu0 %3431
        %3433 = vrot.lane.b32.xlu0 %v1092, 64
        %v3434 = vpop.permute.xlu0 %3433
        %3435 = vrot.lane.b32.xlu0 %v1097, 64
        %v3436 = vpop.permute.xlu0 %3435
        %3437 = vrot.lane.b32.xlu0 %v1102, 64
        %v3438 = vpop.permute.xlu0 %3437
        %3439 = vrot.lane.b32.xlu0 %v1107, 64
        %v3440 = vpop.permute.xlu0 %3439
        %3441 = vrot.lane.b32.xlu0 %v1112, 64
        %v3442 = vpop.permute.xlu0 %3441
        %v3452 = vsel %vm1513, %v3411, 0
        %v3455 = vsel %vm1513, %v3412, 0
        %v3458 = vsel %vm1513, %v3413, 0
        %v3461 = vsel %vm1513, %v3414, 0
        %v3464 = vsel %vm1513, %v3415, 0
        %v3467 = vsel %vm1513, %v3416, 0
        %v3470 = vsel %vm1513, %v3417, 0
        %v3473 = vsel %vm1513, %v3418, 0
        %3475 = vmatprep.subr.mxu0 0.0
        %3476 = vmatpush1.msra.mxu0 %v3428
        %3477 = vmatprep.subr.mxu0 0.0
        %3478 = vmatpush1.msra.mxu0 %v3430
        %3479 = vmatprep.subr.mxu0 0.0
        %3480 = vmatpush1.msra.mxu0 %v3432
        %3481 = vmatprep.subr.mxu0 0.0
        %3482 = vmatpush1.msra.mxu0 %v3434
        %3483 = vmatprep.subr.mxu0 0.0
        %3484 = vmatpush1.msra.mxu0 %v3436
        %3485 = vmatprep.subr.mxu0 0.0
        %3486 = vmatpush1.msra.mxu0 %v3438
        %3487 = vmatprep.subr.mxu0 0.0
        %3488 = vmatpush1.msra.mxu0 %v3440
        %3489 = vmatprep.subr.mxu0 0.0
        %3490 = vmatpush1.msra.mxu0 %v3442
        %3491 = vmatprep.subr.mxu0 0.0
        %3492 = vmatpush1.msra.mxu0 0.0
        %3493 = vmatprep.subr.mxu0 0.0
        %3494 = vmatpush1.msra.mxu0 0.0
        %3495 = vmatprep.subr.mxu0 0.0
        %3496 = vmatpush1.msra.mxu0 0.0
        %3497 = vmatprep.subr.mxu0 0.0
        %3498 = vmatpush1.msra.mxu0 0.0
        %3499 = vmatprep.subr.mxu0 0.0
        %3500 = vmatpush1.msra.mxu0 0.0
        %3501 = vmatprep.subr.mxu0 0.0
        %3502 = vmatpush1.msra.mxu0 0.0
        %3503 = vmatprep.subr.mxu0 0.0
        %3504 = vmatpush1.msra.mxu0 0.0
        %3505 = vmatprep.subr.mxu0 0.0
        %3506 = vmatpush1.msra.mxu0 0.0
        %3507 = vmatprep.subr.mxu0 0.0
        %3508 = vmatpush1.msra.mxu0 0.0
        %3509 = vmatprep.subr.mxu0 0.0
        %3510 = vmatpush1.msra.mxu0 0.0
        %3511 = vmatprep.subr.mxu0 0.0
        %3512 = vmatpush1.msra.mxu0 0.0
        %3513 = vmatprep.subr.mxu0 0.0
        %3514 = vmatpush1.msra.mxu0 0.0
        %3515 = vmatprep.subr.mxu0 0.0
        %3516 = vmatpush1.msra.mxu0 0.0
        %3517 = vmatprep.subr.mxu0 0.0
        %3518 = vmatpush1.msra.mxu0 0.0
        %3519 = vmatprep.subr.mxu0 0.0
        %3520 = vmatpush1.msra.mxu0 0.0
        %3521 = vmatprep.subr.mxu0 0.0
        %3522 = vmatpush1.msra.mxu0 0.0
        %3523 = vmatprep.subr.mxu0 0.0
        %3524 = vmatpush1.msra.mxu0 0.0
        %3525 = vmatprep.subr.mxu0 0.0
        %3526 = vmatpush1.msra.mxu0 0.0
        %3527 = vmatprep.subr.mxu0 0.0
        %3528 = vmatpush1.msra.mxu0 0.0
        %3529 = vmatprep.subr.mxu0 0.0
        %3530 = vmatpush1.msra.mxu0 0.0
        %3531 = vmatprep.subr.mxu0 0.0
        %3532 = vmatpush1.msra.mxu0 0.0
        %3533 = vmatprep.subr.mxu0 0.0
        %3534 = vmatpush1.msra.mxu0 0.0
        %3535 = vmatprep.subr.mxu0 0.0
        %3536 = vmatpush1.msra.mxu0 0.0
        %3537 = vmatprep.subr.mxu0 0.0
        %3538 = vmatpush1.msra.mxu0 0.0
        %3539 = vmatprep.mubr.f32.mxu0 0.0
        %3540 = vmatmul.mubr.f32.gmra.mrb[0].mxu0 %v3452
        %v3541 = vpop.f32.mrb[0].mxu0
        %v3542 = vadd.f32 0.0, %v3541
        %v3543 = vpop.f32.mrb[0].mxu0
        %3544 = vmatprep.mubr.f32.mxu0 0.0
        %3545 = vmatmul.mubr.f32.gmra.mrb[0].mxu0 %v3455
        %v3546 = vpop.f32.mrb[0].mxu0
        %v3547 = vadd.f32 0.0, %v3546
        %v3548 = vpop.f32.mrb[0].mxu0
        %3549 = vmatprep.mubr.f32.mxu0 0.0
        %3550 = vmatmul.mubr.f32.gmra.mrb[0].mxu0 %v3458
        %v3551 = vpop.f32.mrb[0].mxu0
        %v3552 = vadd.f32 0.0, %v3551
        %v3553 = vpop.f32.mrb[0].mxu0
        %3554 = vmatprep.mubr.f32.mxu0 0.0
        %3555 = vmatmul.mubr.f32.gmra.mrb[0].mxu0 %v3461
        %v3556 = vpop.f32.mrb[0].mxu0
        %v3557 = vadd.f32 0.0, %v3556
        %v3558 = vpop.f32.mrb[0].mxu0
        %3559 = vmatprep.mubr.f32.mxu0 0.0
        %3560 = vmatmul.mubr.f32.gmra.mrb[0].mxu0 %v3464
        %v3561 = vpop.f32.mrb[0].mxu0
        %v3562 = vadd.f32 0.0, %v3561
        %v3563 = vpop.f32.mrb[0].mxu0
        %3564 = vmatprep.mubr.f32.mxu0 0.0
        %3565 = vmatmul.mubr.f32.gmra.mrb[0].mxu0 %v3467
        %v3566 = vpop.f32.mrb[0].mxu0
        %v3567 = vadd.f32 0.0, %v3566
        %v3568 = vpop.f32.mrb[0].mxu0
        %3569 = vmatprep.mubr.f32.mxu0 0.0
        %3570 = vmatmul.mubr.f32.gmra.mrb[0].mxu0 %v3470
        %v3571 = vpop.f32.mrb[0].mxu0
        %v3572 = vadd.f32 0.0, %v3571
        %v3573 = vpop.f32.mrb[0].mxu0
        %3574 = vmatprep.mubr.f32.mxu0 0.0
        %3575 = vmatmul.mubr.f32.gmra.mrb[0].mxu0 %v3473
        %v3576 = vpop.f32.mrb[0].mxu0
        %v3577 = vadd.f32 0.0, %v3576
        %v3578 = vpop.f32.mrb[0].mxu0
        %3579 = vdwg.mxu0
        %3580 = vrot.lane.b32.xlu0 %v1117, 64
        %v3581 = vpop.permute.xlu0 %3580
        %3582 = vrot.lane.b32.xlu0 %v1122, 64
        %v3583 = vpop.permute.xlu0 %3582
        %3584 = vrot.lane.b32.xlu0 %v1127, 64
        %v3585 = vpop.permute.xlu0 %3584
        %3586 = vrot.lane.b32.xlu0 %v1132, 64
        %v3587 = vpop.permute.xlu0 %3586
        %3588 = vrot.lane.b32.xlu0 %v1137, 64
        %v3589 = vpop.permute.xlu0 %3588
        %3590 = vrot.lane.b32.xlu0 %v1142, 64
        %v3591 = vpop.permute.xlu0 %3590
        %3592 = vrot.lane.b32.xlu0 %v1147, 64
        %v3593 = vpop.permute.xlu0 %3592
        %3594 = vrot.lane.b32.xlu0 %v1152, 64
        %v3595 = vpop.permute.xlu0 %3594
        %v3605 = vsel %vm1513, %v3419, 0
        %v3608 = vsel %vm1513, %v3420, 0
        %v3611 = vsel %vm1513, %v3421, 0
        %v3614 = vsel %vm1513, %v3422, 0
        %v3617 = vsel %vm1513, %v3423, 0
        %v3620 = vsel %vm1513, %v3424, 0
        %v3623 = vsel %vm1513, %v3425, 0
        %v3626 = vsel %vm1513, %v3426, 0
        %3628 = vmatprep.subr.mxu0 0.0
        %3629 = vmatpush1.msra.mxu0 %v3581
        %3630 = vmatprep.subr.mxu0 0.0
        %3631 = vmatpush1.msra.mxu0 %v3583
        %3632 = vmatprep.subr.mxu0 0.0
        %3633 = vmatpush1.msra.mxu0 %v3585
        %3634 = vmatprep.subr.mxu0 0.0
        %3635 = vmatpush1.msra.mxu0 %v3587
        %3636 = vmatprep.subr.mxu0 0.0
        %3637 = vmatpush1.msra.mxu0 %v3589
        %3638 = vmatprep.subr.mxu0 0.0
        %3639 = vmatpush1.msra.mxu0 %v3591
        %3640 = vmatprep.subr.mxu0 0.0
        %3641 = vmatpush1.msra.mxu0 %v3593
        %3642 = vmatprep.subr.mxu0 0.0
        %3643 = vmatpush1.msra.mxu0 %v3595
        %3644 = vmatprep.subr.mxu0 0.0
        %3645 = vmatpush1.msra.mxu0 0.0
        %3646 = vmatprep.subr.mxu0 0.0
        %3647 = vmatpush1.msra.mxu0 0.0
        %3648 = vmatprep.subr.mxu0 0.0
        %3649 = vmatpush1.msra.mxu0 0.0
        %3650 = vmatprep.subr.mxu0 0.0
        %3651 = vmatpush1.msra.mxu0 0.0
        %3652 = vmatprep.subr.mxu0 0.0
        %3653 = vmatpush1.msra.mxu0 0.0
        %3654 = vmatprep.subr.mxu0 0.0
        %3655 = vmatpush1.msra.mxu0 0.0
        %3656 = vmatprep.subr.mxu0 0.0
        %3657 = vmatpush1.msra.mxu0 0.0
        %3658 = vmatprep.subr.mxu0 0.0
        %3659 = vmatpush1.msra.mxu0 0.0
        %3660 = vmatprep.subr.mxu0 0.0
        %3661 = vmatpush1.msra.mxu0 0.0
        %3662 = vmatprep.subr.mxu0 0.0
        %3663 = vmatpush1.msra.mxu0 0.0
        %3664 = vmatprep.subr.mxu0 0.0
        %3665 = vmatpush1.msra.mxu0 0.0
        %3666 = vmatprep.subr.mxu0 0.0
        %3667 = vmatpush1.msra.mxu0 0.0
        %3668 = vmatprep.subr.mxu0 0.0
        %3669 = vmatpush1.msra.mxu0 0.0
        %3670 = vmatprep.subr.mxu0 0.0
        %3671 = vmatpush1.msra.mxu0 0.0
        %3672 = vmatprep.subr.mxu0 0.0
        %3673 = vmatpush1.msra.mxu0 0.0
        %3674 = vmatprep.subr.mxu0 0.0
        %3675 = vmatpush1.msra.mxu0 0.0
        %3676 = vmatprep.subr.mxu0 0.0
        %3677 = vmatpush1.msra.mxu0 0.0
        %3678 = vmatprep.subr.mxu0 0.0
        %3679 = vmatpush1.msra.mxu0 0.0
        %3680 = vmatprep.subr.mxu0 0.0
        %3681 = vmatpush1.msra.mxu0 0.0
        %3682 = vmatprep.subr.mxu0 0.0
        %3683 = vmatpush1.msra.mxu0 0.0
        %3684 = vmatprep.subr.mxu0 0.0
        %3685 = vmatpush1.msra.mxu0 0.0
        %3686 = vmatprep.subr.mxu0 0.0
        %3687 = vmatpush1.msra.mxu0 0.0
        %3688 = vmatprep.subr.mxu0 0.0
        %3689 = vmatpush1.msra.mxu0 0.0
        %3690 = vmatprep.subr.mxu0 0.0
        %3691 = vmatpush1.msra.mxu0 0.0
        %3692 = vmatprep.mubr.f32.mxu0 0.0
        %3693 = vmatmul.mubr.f32.gmra.mrb[0].mxu0 %v3605
        %v3694 = vpop.f32.mrb[0].mxu0
        %v3695 = vadd.f32 0.0, %v3694
        %v3696 = vpop.f32.mrb[0].mxu0
        %3697 = vmatprep.mubr.f32.mxu0 0.0
        %3698 = vmatmul.mubr.f32.gmra.mrb[0].mxu0 %v3608
        %v3699 = vpop.f32.mrb[0].mxu0
        %v3700 = vadd.f32 0.0, %v3699
        %v3701 = vpop.f32.mrb[0].mxu0
        %3702 = vmatprep.mubr.f32.mxu0 0.0
        %3703 = vmatmul.mubr.f32.gmra.mrb[0].mxu0 %v3611
        %v3704 = vpop.f32.mrb[0].mxu0
        %v3705 = vadd.f32 0.0, %v3704
        %v3706 = vpop.f32.mrb[0].mxu0
        %3707 = vmatprep.mubr.f32.mxu0 0.0
        %3708 = vmatmul.mubr.f32.gmra.mrb[0].mxu0 %v3614
        %v3709 = vpop.f32.mrb[0].mxu0
        %v3710 = vadd.f32 0.0, %v3709
        %v3711 = vpop.f32.mrb[0].mxu0
        %3712 = vmatprep.mubr.f32.mxu0 0.0
        %3713 = vmatmul.mubr.f32.gmra.mrb[0].mxu0 %v3617
        %v3714 = vpop.f32.mrb[0].mxu0
        %v3715 = vadd.f32 0.0, %v3714
        %v3716 = vpop.f32.mrb[0].mxu0
        %3717 = vmatprep.mubr.f32.mxu0 0.0
        %3718 = vmatmul.mubr.f32.gmra.mrb[0].mxu0 %v3620
        %v3719 = vpop.f32.mrb[0].mxu0
        %v3720 = vadd.f32 0.0, %v3719
        %v3721 = vpop.f32.mrb[0].mxu0
        %3722 = vmatprep.mubr.f32.mxu0 0.0
        %3723 = vmatmul.mubr.f32.gmra.mrb[0].mxu0 %v3623
        %v3724 = vpop.f32.mrb[0].mxu0
        %v3725 = vadd.f32 0.0, %v3724
        %v3726 = vpop.f32.mrb[0].mxu0
        %3727 = vmatprep.mubr.f32.mxu0 0.0
        %3728 = vmatmul.mubr.f32.gmra.mrb[0].mxu0 %v3626
        %v3729 = vpop.f32.mrb[0].mxu0
        %v3730 = vadd.f32 0.0, %v3729
        %v3731 = vpop.f32.mrb[0].mxu0
        %3732 = vdwg.mxu0
        %3749 = vrot.lane.b32.xlu0 %v3542, 64
        %v3750 = vpop.permute.xlu0 %3749
        %3751 = vrot.lane.b32.xlu0 %v3547, 64
        %v3752 = vpop.permute.xlu0 %3751
        %3753 = vrot.lane.b32.xlu0 %v3552, 64
        %v3754 = vpop.permute.xlu0 %3753
        %3755 = vrot.lane.b32.xlu0 %v3557, 64
        %v3756 = vpop.permute.xlu0 %3755
        %3757 = vrot.lane.b32.xlu0 %v3562, 64
        %v3758 = vpop.permute.xlu0 %3757
        %3759 = vrot.lane.b32.xlu0 %v3567, 64
        %v3760 = vpop.permute.xlu0 %3759
        %3761 = vrot.lane.b32.xlu0 %v3572, 64
        %v3762 = vpop.permute.xlu0 %3761
        %3763 = vrot.lane.b32.xlu0 %v3577, 64
        %v3764 = vpop.permute.xlu0 %3763
        %3765 = vrot.lane.b32.xlu0 %v3695, 64
        %v3766 = vpop.permute.xlu0 %3765
        %3767 = vrot.lane.b32.xlu0 %v3700, 64
        %v3768 = vpop.permute.xlu0 %3767
        %3769 = vrot.lane.b32.xlu0 %v3705, 64
        %v3770 = vpop.permute.xlu0 %3769
        %3771 = vrot.lane.b32.xlu0 %v3710, 64
        %v3772 = vpop.permute.xlu0 %3771
        %3773 = vrot.lane.b32.xlu0 %v3715, 64
        %v3774 = vpop.permute.xlu0 %3773
        %3775 = vrot.lane.b32.xlu0 %v3720, 64
        %v3776 = vpop.permute.xlu0 %3775
        %3777 = vrot.lane.b32.xlu0 %v3725, 64
        %v3778 = vpop.permute.xlu0 %3777
        %3779 = vrot.lane.b32.xlu0 %v3730, 64
        %v3780 = vpop.permute.xlu0 %3779
        %vm3797 = vcmask 785920
        %3798 = vst.msk [vmem:[#allocation2] sm:$0xff] %vm3797, %v3750
        %3799 = vst.msk [vmem:[#allocation2 + $0x8] sm:$0xff] %vm3797, %v3752
        %3800 = vst.msk [vmem:[#allocation2 + $0x10] sm:$0xff] %vm3797, %v3754
        %3801 = vst.msk [vmem:[#allocation2 + $0x18] sm:$0xff] %vm3797, %v3756
        %3802 = vst.msk [vmem:[#allocation2 + $0x20] sm:$0xff] %vm3797, %v3758
        %3803 = vst.msk [vmem:[#allocation2 + $0x28] sm:$0xff] %vm3797, %v3760
        %3804 = vst.msk [vmem:[#allocation2 + $0x30] sm:$0xff] %vm3797, %v3762
        %3805 = vst.msk [vmem:[#allocation2 + $0x38] sm:$0xff] %vm3797, %v3764
        %3806 = vst.msk [vmem:[#allocation2 + $0x40] sm:$0xff] %vm3797, %v3766
        %3807 = vst.msk [vmem:[#allocation2 + $0x48] sm:$0xff] %vm3797, %v3768
        %3808 = vst.msk [vmem:[#allocation2 + $0x50] sm:$0xff] %vm3797, %v3770
        %3809 = vst.msk [vmem:[#allocation2 + $0x58] sm:$0xff] %vm3797, %v3772
        %3810 = vst.msk [vmem:[#allocation2 + $0x60] sm:$0xff] %vm3797, %v3774
        %3811 = vst.msk [vmem:[#allocation2 + $0x68] sm:$0xff] %vm3797, %v3776
        %3812 = vst.msk [vmem:[#allocation2 + $0x70] sm:$0xff] %vm3797, %v3778
        %3813 = vst.msk [vmem:[#allocation2 + $0x78] sm:$0xff] %vm3797, %v3780
        %3814 = vrot.lane.b32.xlu0 %v916, 32
        %v3815 = vpop.permute.xlu0 %3814
        %3816 = vrot.lane.b32.xlu0 %v922, 32
        %v3817 = vpop.permute.xlu0 %3816
        %3818 = vrot.lane.b32.xlu0 %v928, 32
        %v3819 = vpop.permute.xlu0 %3818
        %3820 = vrot.lane.b32.xlu0 %v934, 32
        %v3821 = vpop.permute.xlu0 %3820
        %3822 = vrot.lane.b32.xlu0 %v940, 32
        %v3823 = vpop.permute.xlu0 %3822
        %3824 = vrot.lane.b32.xlu0 %v946, 32
        %v3825 = vpop.permute.xlu0 %3824
        %3826 = vrot.lane.b32.xlu0 %v952, 32
        %v3827 = vpop.permute.xlu0 %3826
        %3828 = vrot.lane.b32.xlu0 %v958, 32
        %v3829 = vpop.permute.xlu0 %3828
        %3830 = vrot.lane.b32.xlu0 %v918, 32
        %v3831 = vpop.permute.xlu0 %3830
        %3832 = vrot.lane.b32.xlu0 %v924, 32
        %v3833 = vpop.permute.xlu0 %3832
        %3834 = vrot.lane.b32.xlu0 %v930, 32
        %v3835 = vpop.permute.xlu0 %3834
        %3836 = vrot.lane.b32.xlu0 %v936, 32
        %v3837 = vpop.permute.xlu0 %3836
        %3838 = vrot.lane.b32.xlu0 %v942, 32
        %v3839 = vpop.permute.xlu0 %3838
        %3840 = vrot.lane.b32.xlu0 %v948, 32
        %v3841 = vpop.permute.xlu0 %3840
        %3842 = vrot.lane.b32.xlu0 %v954, 32
        %v3843 = vpop.permute.xlu0 %3842
        %3844 = vrot.lane.b32.xlu0 %v960, 32
        %v3845 = vpop.permute.xlu0 %3844
        %v3846 = vsel %vm1174, %v3815, 0
        %v3848 = vsel %vm1174, %v3817, 0
        %v3850 = vsel %vm1174, %v3819, 0
        %v3852 = vsel %vm1174, %v3821, 0
        %v3854 = vsel %vm1174, %v3823, 0
        %v3856 = vsel %vm1174, %v3825, 0
        %v3858 = vsel %vm1174, %v3827, 0
        %v3860 = vsel %vm1174, %v3829, 0
        %v3862 = vsel %vm1174, %v3831, 0
        %v3864 = vsel %vm1174, %v3833, 0
        %v3866 = vsel %vm1174, %v3835, 0
        %v3868 = vsel %vm1174, %v3837, 0
        %v3870 = vsel %vm1174, %v3839, 0
        %v3872 = vsel %vm1174, %v3841, 0
        %v3874 = vsel %vm1174, %v3843, 0
        %v3876 = vsel %vm1174, %v3845, 0
        %3878 = vmatprep.subr.mxu0 0.0
        %3879 = vmatpush1.xpose.msra.mxu0 %v3862
        %3880 = vmatprep.subr.mxu0 0.0
        %3881 = vmatpush1.xpose.msra.mxu0 %v3864
        %3882 = vmatprep.subr.mxu0 0.0
        %3883 = vmatpush1.xpose.msra.mxu0 %v3866
        %3884 = vmatprep.subr.mxu0 0.0
        %3885 = vmatpush1.xpose.msra.mxu0 %v3868
        %3886 = vmatprep.subr.mxu0 0.0
        %3887 = vmatpush1.xpose.msra.mxu0 %v3870
        %3888 = vmatprep.subr.mxu0 0.0
        %3889 = vmatpush1.xpose.msra.mxu0 %v3872
        %3890 = vmatprep.subr.mxu0 0.0
        %3891 = vmatpush1.xpose.msra.mxu0 %v3874
        %3892 = vmatprep.subr.mxu0 0.0
        %3893 = vmatpush1.xpose.msra.mxu0 %v3876
        %3894 = vmatprep.subr.mxu0 0.0
        %3895 = vmatpush1.xpose.msra.mxu0 0.0
        %3896 = vmatprep.subr.mxu0 0.0
        %3897 = vmatpush1.xpose.msra.mxu0 0.0
        %3898 = vmatprep.subr.mxu0 0.0
        %3899 = vmatpush1.xpose.msra.mxu0 0.0
        %3900 = vmatprep.subr.mxu0 0.0
        %3901 = vmatpush1.xpose.msra.mxu0 0.0
        %3902 = vmatprep.subr.mxu0 0.0
        %3903 = vmatpush1.xpose.msra.mxu0 0.0
        %3904 = vmatprep.subr.mxu0 0.0
        %3905 = vmatpush1.xpose.msra.mxu0 0.0
        %3906 = vmatprep.subr.mxu0 0.0
        %3907 = vmatpush1.xpose.msra.mxu0 0.0
        %3908 = vmatprep.subr.mxu0 0.0
        %3909 = vmatpush1.xpose.msra.mxu0 0.0
        %3910 = vmatprep.subr.mxu0 0.0
        %3911 = vmatpush1.xpose.msra.mxu0 0.0
        %3912 = vmatprep.subr.mxu0 0.0
        %3913 = vmatpush1.xpose.msra.mxu0 0.0
        %3914 = vmatprep.subr.mxu0 0.0
        %3915 = vmatpush1.xpose.msra.mxu0 0.0
        %3916 = vmatprep.subr.mxu0 0.0
        %3917 = vmatpush1.xpose.msra.mxu0 0.0
        %3918 = vmatprep.subr.mxu0 0.0
        %3919 = vmatpush1.xpose.msra.mxu0 0.0
        %3920 = vmatprep.subr.mxu0 0.0
        %3921 = vmatpush1.xpose.msra.mxu0 0.0
        %3922 = vmatprep.subr.mxu0 0.0
        %3923 = vmatpush1.xpose.msra.mxu0 0.0
        %3924 = vmatprep.subr.mxu0 0.0
        %3925 = vmatpush1.xpose.msra.mxu0 0.0
        %3926 = vmatprep.subr.mxu0 0.0
        %3927 = vmatpush1.xpose.msra.mxu0 0.0
        %3928 = vmatprep.subr.mxu0 0.0
        %3929 = vmatpush1.xpose.msra.mxu0 0.0
        %3930 = vmatprep.subr.mxu0 0.0
        %3931 = vmatpush1.xpose.msra.mxu0 0.0
        %3932 = vmatprep.subr.mxu0 0.0
        %3933 = vmatpush1.xpose.msra.mxu0 0.0
        %3934 = vmatprep.subr.mxu0 0.0
        %3935 = vmatpush1.xpose.msra.mxu0 0.0
        %3936 = vmatprep.subr.mxu0 0.0
        %3937 = vmatpush1.xpose.msra.mxu0 0.0
        %3938 = vmatprep.subr.mxu0 0.0
        %3939 = vmatpush1.xpose.msra.mxu0 0.0
        %3940 = vmatprep.subr.mxu0 0.0
        %3941 = vmatpush1.xpose.msra.mxu0 0.0
        %3942 = vmatprep.mubr.f32.mxu0 0.0
        %3943 = vmatmul.mubr.f32.gmra.mrb[0].mxu0 %v3846
        %v3944 = vpop.f32.mrb[0].mxu0
        %v3945 = vadd.f32 0.0, %v3944
        %v3946 = vpop.f32.mrb[0].mxu0
        %3947 = vmatprep.mubr.f32.mxu0 0.0
        %3948 = vmatmul.mubr.f32.gmra.mrb[0].mxu0 %v3848
        %v3949 = vpop.f32.mrb[0].mxu0
        %v3950 = vadd.f32 0.0, %v3949
        %v3951 = vpop.f32.mrb[0].mxu0
        %3952 = vmatprep.mubr.f32.mxu0 0.0
        %3953 = vmatmul.mubr.f32.gmra.mrb[0].mxu0 %v3850
        %v3954 = vpop.f32.mrb[0].mxu0
        %v3955 = vadd.f32 0.0, %v3954
        %v3956 = vpop.f32.mrb[0].mxu0
        %3957 = vmatprep.mubr.f32.mxu0 0.0
        %3958 = vmatmul.mubr.f32.gmra.mrb[0].mxu0 %v3852
        %v3959 = vpop.f32.mrb[0].mxu0
        %v3960 = vadd.f32 0.0, %v3959
        %v3961 = vpop.f32.mrb[0].mxu0
        %3962 = vmatprep.mubr.f32.mxu0 0.0
        %3963 = vmatmul.mubr.f32.gmra.mrb[0].mxu0 %v3854
        %v3964 = vpop.f32.mrb[0].mxu0
        %v3965 = vadd.f32 0.0, %v3964
        %v3966 = vpop.f32.mrb[0].mxu0
        %3967 = vmatprep.mubr.f32.mxu0 0.0
        %3968 = vmatmul.mubr.f32.gmra.mrb[0].mxu0 %v3856
        %v3969 = vpop.f32.mrb[0].mxu0
        %v3970 = vadd.f32 0.0, %v3969
        %v3971 = vpop.f32.mrb[0].mxu0
        %3972 = vmatprep.mubr.f32.mxu0 0.0
        %3973 = vmatmul.mubr.f32.gmra.mrb[0].mxu0 %v3858
        %v3974 = vpop.f32.mrb[0].mxu0
        %v3975 = vadd.f32 0.0, %v3974
        %v3976 = vpop.f32.mrb[0].mxu0
        %3977 = vmatprep.mubr.f32.mxu0 0.0
        %3978 = vmatmul.mubr.f32.gmra.mrb[0].mxu0 %v3860
        %v3979 = vpop.f32.mrb[0].mxu0
        %v3980 = vadd.f32 0.0, %v3979
        %v3981 = vpop.f32.mrb[0].mxu0
        %3982 = vdwg.mxu0
        %3983 = vrot.lane.b32.xlu0 %v964, 32
        %v3984 = vpop.permute.xlu0 %3983
        %3985 = vrot.lane.b32.xlu0 %v970, 32
        %v3986 = vpop.permute.xlu0 %3985
        %3987 = vrot.lane.b32.xlu0 %v976, 32
        %v3988 = vpop.permute.xlu0 %3987
        %3989 = vrot.lane.b32.xlu0 %v982, 32
        %v3990 = vpop.permute.xlu0 %3989
        %3991 = vrot.lane.b32.xlu0 %v988, 32
        %v3992 = vpop.permute.xlu0 %3991
        %3993 = vrot.lane.b32.xlu0 %v994, 32
        %v3994 = vpop.permute.xlu0 %3993
        %3995 = vrot.lane.b32.xlu0 %v1000, 32
        %v3996 = vpop.permute.xlu0 %3995
        %3997 = vrot.lane.b32.xlu0 %v1006, 32
        %v3998 = vpop.permute.xlu0 %3997
        %3999 = vrot.lane.b32.xlu0 %v966, 32
        %v4000 = vpop.permute.xlu0 %3999
        %4001 = vrot.lane.b32.xlu0 %v972, 32
        %v4002 = vpop.permute.xlu0 %4001
        %4003 = vrot.lane.b32.xlu0 %v978, 32
        %v4004 = vpop.permute.xlu0 %4003
        %4005 = vrot.lane.b32.xlu0 %v984, 32
        %v4006 = vpop.permute.xlu0 %4005
        %4007 = vrot.lane.b32.xlu0 %v990, 32
        %v4008 = vpop.permute.xlu0 %4007
        %4009 = vrot.lane.b32.xlu0 %v996, 32
        %v4010 = vpop.permute.xlu0 %4009
        %4011 = vrot.lane.b32.xlu0 %v1002, 32
        %v4012 = vpop.permute.xlu0 %4011
        %4013 = vrot.lane.b32.xlu0 %v1008, 32
        %v4014 = vpop.permute.xlu0 %4013
        %v4015 = vsel %vm1174, %v3984, 0
        %v4017 = vsel %vm1174, %v3986, 0
        %v4019 = vsel %vm1174, %v3988, 0
        %v4021 = vsel %vm1174, %v3990, 0
        %v4023 = vsel %vm1174, %v3992, 0
        %v4025 = vsel %vm1174, %v3994, 0
        %v4027 = vsel %vm1174, %v3996, 0
        %v4029 = vsel %vm1174, %v3998, 0
        %v4031 = vsel %vm1174, %v4000, 0
        %v4033 = vsel %vm1174, %v4002, 0
        %v4035 = vsel %vm1174, %v4004, 0
        %v4037 = vsel %vm1174, %v4006, 0
        %v4039 = vsel %vm1174, %v4008, 0
        %v4041 = vsel %vm1174, %v4010, 0
        %v4043 = vsel %vm1174, %v4012, 0
        %v4045 = vsel %vm1174, %v4014, 0
        %4047 = vmatprep.subr.mxu0 0.0
        %4048 = vmatpush1.xpose.msra.mxu0 %v4031
        %4049 = vmatprep.subr.mxu0 0.0
        %4050 = vmatpush1.xpose.msra.mxu0 %v4033
        %4051 = vmatprep.subr.mxu0 0.0
        %4052 = vmatpush1.xpose.msra.mxu0 %v4035
        %4053 = vmatprep.subr.mxu0 0.0
        %4054 = vmatpush1.xpose.msra.mxu0 %v4037
        %4055 = vmatprep.subr.mxu0 0.0
        %4056 = vmatpush1.xpose.msra.mxu0 %v4039
        %4057 = vmatprep.subr.mxu0 0.0
        %4058 = vmatpush1.xpose.msra.mxu0 %v4041
        %4059 = vmatprep.subr.mxu0 0.0
        %4060 = vmatpush1.xpose.msra.mxu0 %v4043
        %4061 = vmatprep.subr.mxu0 0.0
        %4062 = vmatpush1.xpose.msra.mxu0 %v4045
        %4063 = vmatprep.subr.mxu0 0.0
        %4064 = vmatpush1.xpose.msra.mxu0 0.0
        %4065 = vmatprep.subr.mxu0 0.0
        %4066 = vmatpush1.xpose.msra.mxu0 0.0
        %4067 = vmatprep.subr.mxu0 0.0
        %4068 = vmatpush1.xpose.msra.mxu0 0.0
        %4069 = vmatprep.subr.mxu0 0.0
        %4070 = vmatpush1.xpose.msra.mxu0 0.0
        %4071 = vmatprep.subr.mxu0 0.0
        %4072 = vmatpush1.xpose.msra.mxu0 0.0
        %4073 = vmatprep.subr.mxu0 0.0
        %4074 = vmatpush1.xpose.msra.mxu0 0.0
        %4075 = vmatprep.subr.mxu0 0.0
        %4076 = vmatpush1.xpose.msra.mxu0 0.0
        %4077 = vmatprep.subr.mxu0 0.0
        %4078 = vmatpush1.xpose.msra.mxu0 0.0
        %4079 = vmatprep.subr.mxu0 0.0
        %4080 = vmatpush1.xpose.msra.mxu0 0.0
        %4081 = vmatprep.subr.mxu0 0.0
        %4082 = vmatpush1.xpose.msra.mxu0 0.0
        %4083 = vmatprep.subr.mxu0 0.0
        %4084 = vmatpush1.xpose.msra.mxu0 0.0
        %4085 = vmatprep.subr.mxu0 0.0
        %4086 = vmatpush1.xpose.msra.mxu0 0.0
        %4087 = vmatprep.subr.mxu0 0.0
        %4088 = vmatpush1.xpose.msra.mxu0 0.0
        %4089 = vmatprep.subr.mxu0 0.0
        %4090 = vmatpush1.xpose.msra.mxu0 0.0
        %4091 = vmatprep.subr.mxu0 0.0
        %4092 = vmatpush1.xpose.msra.mxu0 0.0
        %4093 = vmatprep.subr.mxu0 0.0
        %4094 = vmatpush1.xpose.msra.mxu0 0.0
        %4095 = vmatprep.subr.mxu0 0.0
        %4096 = vmatpush1.xpose.msra.mxu0 0.0
        %4097 = vmatprep.subr.mxu0 0.0
        %4098 = vmatpush1.xpose.msra.mxu0 0.0
        %4099 = vmatprep.subr.mxu0 0.0
        %4100 = vmatpush1.xpose.msra.mxu0 0.0
        %4101 = vmatprep.subr.mxu0 0.0
        %4102 = vmatpush1.xpose.msra.mxu0 0.0
        %4103 = vmatprep.subr.mxu0 0.0
        %4104 = vmatpush1.xpose.msra.mxu0 0.0
        %4105 = vmatprep.subr.mxu0 0.0
        %4106 = vmatpush1.xpose.msra.mxu0 0.0
        %4107 = vmatprep.subr.mxu0 0.0
        %4108 = vmatpush1.xpose.msra.mxu0 0.0
        %4109 = vmatprep.subr.mxu0 0.0
        %4110 = vmatpush1.xpose.msra.mxu0 0.0
        %4111 = vmatprep.mubr.f32.mxu0 0.0
        %4112 = vmatmul.mubr.f32.gmra.mrb[0].mxu0 %v4015
        %v4113 = vpop.f32.mrb[0].mxu0
        %v4114 = vadd.f32 0.0, %v4113
        %v4115 = vpop.f32.mrb[0].mxu0
        %4116 = vmatprep.mubr.f32.mxu0 0.0
        %4117 = vmatmul.mubr.f32.gmra.mrb[0].mxu0 %v4017
        %v4118 = vpop.f32.mrb[0].mxu0
        %v4119 = vadd.f32 0.0, %v4118
        %v4120 = vpop.f32.mrb[0].mxu0
        %4121 = vmatprep.mubr.f32.mxu0 0.0
        %4122 = vmatmul.mubr.f32.gmra.mrb[0].mxu0 %v4019
        %v4123 = vpop.f32.mrb[0].mxu0
        %v4124 = vadd.f32 0.0, %v4123
        %v4125 = vpop.f32.mrb[0].mxu0
        %4126 = vmatprep.mubr.f32.mxu0 0.0
        %4127 = vmatmul.mubr.f32.gmra.mrb[0].mxu0 %v4021
        %v4128 = vpop.f32.mrb[0].mxu0
        %v4129 = vadd.f32 0.0, %v4128
        %v4130 = vpop.f32.mrb[0].mxu0
        %4131 = vmatprep.mubr.f32.mxu0 0.0
        %4132 = vmatmul.mubr.f32.gmra.mrb[0].mxu0 %v4023
        %v4133 = vpop.f32.mrb[0].mxu0
        %v4134 = vadd.f32 0.0, %v4133
        %v4135 = vpop.f32.mrb[0].mxu0
        %4136 = vmatprep.mubr.f32.mxu0 0.0
        %4137 = vmatmul.mubr.f32.gmra.mrb[0].mxu0 %v4025
        %v4138 = vpop.f32.mrb[0].mxu0
        %v4139 = vadd.f32 0.0, %v4138
        %v4140 = vpop.f32.mrb[0].mxu0
        %4141 = vmatprep.mubr.f32.mxu0 0.0
        %4142 = vmatmul.mubr.f32.gmra.mrb[0].mxu0 %v4027
        %v4143 = vpop.f32.mrb[0].mxu0
        %v4144 = vadd.f32 0.0, %v4143
        %v4145 = vpop.f32.mrb[0].mxu0
        %4146 = vmatprep.mubr.f32.mxu0 0.0
        %4147 = vmatmul.mubr.f32.gmra.mrb[0].mxu0 %v4029
        %v4148 = vpop.f32.mrb[0].mxu0
        %v4149 = vadd.f32 0.0, %v4148
        %v4150 = vpop.f32.mrb[0].mxu0
        %4151 = vdwg.mxu0
        %v4152 = vsel %vm1489, %v3945, -3.4028235e+38
        %v4153 = vsel %vm1490, %v3950, -3.4028235e+38
        %v4154 = vsel %vm1491, %v3955, -3.4028235e+38
        %v4155 = vsel %vm1492, %v3960, -3.4028235e+38
        %v4156 = vsel %vm1493, %v3965, -3.4028235e+38
        %v4157 = vsel %vm1494, %v3970, -3.4028235e+38
        %v4158 = vsel %vm1495, %v3975, -3.4028235e+38
        %v4159 = vsel %vm1496, %v3980, -3.4028235e+38
        %v4160 = vsel %vm1489, %v4114, -3.4028235e+38
        %v4161 = vsel %vm1490, %v4119, -3.4028235e+38
        %v4162 = vsel %vm1491, %v4124, -3.4028235e+38
        %v4163 = vsel %vm1492, %v4129, -3.4028235e+38
        %v4164 = vsel %vm1493, %v4134, -3.4028235e+38
        %v4165 = vsel %vm1494, %v4139, -3.4028235e+38
        %v4166 = vsel %vm1495, %v4144, -3.4028235e+38
        %v4167 = vsel %vm1496, %v4149, -3.4028235e+38
        %v4168 = vsel %vm1513, %v4152, -inf
        %4169 = vmax.xlane.f32.xlu0 %v4168
        %v4170 = vpop.xlane.xlu0 %4169
        %v4171 = vsel %vm1513, %v4153, -inf
        %4172 = vmax.xlane.f32.xlu0 %v4171
        %v4173 = vpop.xlane.xlu0 %4172
        %v4174 = vsel %vm1513, %v4154, -inf
        %4175 = vmax.xlane.f32.xlu0 %v4174
        %v4176 = vpop.xlane.xlu0 %4175
        %v4177 = vsel %vm1513, %v4155, -inf
        %4178 = vmax.xlane.f32.xlu0 %v4177
        %v4179 = vpop.xlane.xlu0 %4178
        %v4180 = vsel %vm1513, %v4156, -inf
        %4181 = vmax.xlane.f32.xlu0 %v4180
        %v4182 = vpop.xlane.xlu0 %4181
        %v4183 = vsel %vm1513, %v4157, -inf
        %4184 = vmax.xlane.f32.xlu0 %v4183
        %v4185 = vpop.xlane.xlu0 %4184
        %v4186 = vsel %vm1513, %v4158, -inf
        %4187 = vmax.xlane.f32.xlu0 %v4186
        %v4188 = vpop.xlane.xlu0 %4187
        %v4189 = vsel %vm1513, %v4159, -inf
        %4190 = vmax.xlane.f32.xlu0 %v4189
        %v4191 = vpop.xlane.xlu0 %4190
        %v4192 = vsel %vm1513, %v4160, -inf
        %4193 = vmax.xlane.f32.xlu0 %v4192
        %v4194 = vpop.xlane.xlu0 %4193
        %v4195 = vsel %vm1513, %v4161, -inf
        %4196 = vmax.xlane.f32.xlu0 %v4195
        %v4197 = vpop.xlane.xlu0 %4196
        %v4198 = vsel %vm1513, %v4162, -inf
        %4199 = vmax.xlane.f32.xlu0 %v4198
        %v4200 = vpop.xlane.xlu0 %4199
        %v4201 = vsel %vm1513, %v4163, -inf
        %4202 = vmax.xlane.f32.xlu0 %v4201
        %v4203 = vpop.xlane.xlu0 %4202
        %v4204 = vsel %vm1513, %v4164, -inf
        %4205 = vmax.xlane.f32.xlu0 %v4204
        %v4206 = vpop.xlane.xlu0 %4205
        %v4207 = vsel %vm1513, %v4165, -inf
        %4208 = vmax.xlane.f32.xlu0 %v4207
        %v4209 = vpop.xlane.xlu0 %4208
        %v4210 = vsel %vm1513, %v4166, -inf
        %4211 = vmax.xlane.f32.xlu0 %v4210
        %v4212 = vpop.xlane.xlu0 %4211
        %v4213 = vsel %vm1513, %v4167, -inf
        %4214 = vmax.xlane.f32.xlu0 %v4213
        %v4215 = vpop.xlane.xlu0 %4214
        %v4216 = vsub.f32 %v4152, %v4170
        %v4217 = vsub.f32 %v4153, %v4173
        %v4218 = vsub.f32 %v4154, %v4176
        %v4219 = vsub.f32 %v4155, %v4179
        %v4220 = vsub.f32 %v4156, %v4182
        %v4221 = vsub.f32 %v4157, %v4185
        %v4222 = vsub.f32 %v4158, %v4188
        %v4223 = vsub.f32 %v4159, %v4191
        %v4224 = vsub.f32 %v4160, %v4194
        %v4225 = vsub.f32 %v4161, %v4197
        %v4226 = vsub.f32 %v4162, %v4200
        %v4227 = vsub.f32 %v4163, %v4203
        %v4228 = vsub.f32 %v4164, %v4206
        %v4229 = vsub.f32 %v4165, %v4209
        %v4230 = vsub.f32 %v4166, %v4212
        %v4231 = vsub.f32 %v4167, %v4215
        %v4232 = vmul.f32 %v4216, 1.442695
        %v4233 = vpow.pop %v4232
        %v4234 = vmul.f32 %v4217, 1.442695
        %v4235 = vpow.pop %v4234
        %v4236 = vmul.f32 %v4218, 1.442695
        %v4237 = vpow.pop %v4236
        %v4238 = vmul.f32 %v4219, 1.442695
        %v4239 = vpow.pop %v4238
        %v4240 = vmul.f32 %v4220, 1.442695
        %v4241 = vpow.pop %v4240
        %v4242 = vmul.f32 %v4221, 1.442695
        %v4243 = vpow.pop %v4242
        %v4244 = vmul.f32 %v4222, 1.442695
        %v4245 = vpow.pop %v4244
        %v4246 = vmul.f32 %v4223, 1.442695
        %v4247 = vpow.pop %v4246
        %v4248 = vmul.f32 %v4224, 1.442695
        %v4249 = vpow.pop %v4248
        %v4250 = vmul.f32 %v4225, 1.442695
        %v4251 = vpow.pop %v4250
        %v4252 = vmul.f32 %v4226, 1.442695
        %v4253 = vpow.pop %v4252
        %v4254 = vmul.f32 %v4227, 1.442695
        %v4255 = vpow.pop %v4254
        %v4256 = vmul.f32 %v4228, 1.442695
        %v4257 = vpow.pop %v4256
        %v4258 = vmul.f32 %v4229, 1.442695
        %v4259 = vpow.pop %v4258
        %v4260 = vmul.f32 %v4230, 1.442695
        %v4261 = vpow.pop %v4260
        %v4262 = vmul.f32 %v4231, 1.442695
        %v4263 = vpow.pop %v4262
        %v4264 = vsel %vm1513, %v4233, 0.0
        %4265 = vadd.xlane.f32.xlu0 %v4264
        %v4266 = vpop.xlane.xlu0 %4265
        %v4267 = vsel %vm1513, %v4235, 0.0
        %4268 = vadd.xlane.f32.xlu0 %v4267
        %v4269 = vpop.xlane.xlu0 %4268
        %v4270 = vsel %vm1513, %v4237, 0.0
        %4271 = vadd.xlane.f32.xlu0 %v4270
        %v4272 = vpop.xlane.xlu0 %4271
        %v4273 = vsel %vm1513, %v4239, 0.0
        %4274 = vadd.xlane.f32.xlu0 %v4273
        %v4275 = vpop.xlane.xlu0 %4274
        %v4276 = vsel %vm1513, %v4241, 0.0
        %4277 = vadd.xlane.f32.xlu0 %v4276
        %v4278 = vpop.xlane.xlu0 %4277
        %v4279 = vsel %vm1513, %v4243, 0.0
        %4280 = vadd.xlane.f32.xlu0 %v4279
        %v4281 = vpop.xlane.xlu0 %4280
        %v4282 = vsel %vm1513, %v4245, 0.0
        %4283 = vadd.xlane.f32.xlu0 %v4282
        %v4284 = vpop.xlane.xlu0 %4283
        %v4285 = vsel %vm1513, %v4247, 0.0
        %4286 = vadd.xlane.f32.xlu0 %v4285
        %v4287 = vpop.xlane.xlu0 %4286
        %v4288 = vsel %vm1513, %v4249, 0.0
        %4289 = vadd.xlane.f32.xlu0 %v4288
        %v4290 = vpop.xlane.xlu0 %4289
        %v4291 = vsel %vm1513, %v4251, 0.0
        %4292 = vadd.xlane.f32.xlu0 %v4291
        %v4293 = vpop.xlane.xlu0 %4292
        %v4294 = vsel %vm1513, %v4253, 0.0
        %4295 = vadd.xlane.f32.xlu0 %v4294
        %v4296 = vpop.xlane.xlu0 %4295
        %v4297 = vsel %vm1513, %v4255, 0.0
        %4298 = vadd.xlane.f32.xlu0 %v4297
        %v4299 = vpop.xlane.xlu0 %4298
        %v4300 = vsel %vm1513, %v4257, 0.0
        %4301 = vadd.xlane.f32.xlu0 %v4300
        %v4302 = vpop.xlane.xlu0 %4301
        %v4303 = vsel %vm1513, %v4259, 0.0
        %4304 = vadd.xlane.f32.xlu0 %v4303
        %v4305 = vpop.xlane.xlu0 %4304
        %v4306 = vsel %vm1513, %v4261, 0.0
        %4307 = vadd.xlane.f32.xlu0 %v4306
        %v4308 = vpop.xlane.xlu0 %4307
        %v4309 = vsel %vm1513, %v4263, 0.0
        %4310 = vadd.xlane.f32.xlu0 %v4309
        %v4311 = vpop.xlane.xlu0 %4310
        %v4312 = vrcp.pop %v4266
        %v4313 = vrcp.pop %v4269
        %v4314 = vrcp.pop %v4272
        %v4315 = vrcp.pop %v4275
        %v4316 = vrcp.pop %v4278
        %v4317 = vrcp.pop %v4281
        %v4318 = vrcp.pop %v4284
        %v4319 = vrcp.pop %v4287
        %v4320 = vrcp.pop %v4290
        %v4321 = vrcp.pop %v4293
        %v4322 = vrcp.pop %v4296
        %v4323 = vrcp.pop %v4299
        %v4324 = vrcp.pop %v4302
        %v4325 = vrcp.pop %v4305
        %v4326 = vrcp.pop %v4308
        %v4327 = vrcp.pop %v4311
        %v4328 = vmul.f32 %v4233, %v4312
        %v4329 = vmul.f32 %v4235, %v4313
        %v4330 = vmul.f32 %v4237, %v4314
        %v4331 = vmul.f32 %v4239, %v4315
        %v4332 = vmul.f32 %v4241, %v4316
        %v4333 = vmul.f32 %v4243, %v4317
        %v4334 = vmul.f32 %v4245, %v4318
        %v4335 = vmul.f32 %v4247, %v4319
        %v4336 = vmul.f32 %v4249, %v4320
        %v4337 = vmul.f32 %v4251, %v4321
        %v4338 = vmul.f32 %v4253, %v4322
        %v4339 = vmul.f32 %v4255, %v4323
        %v4340 = vmul.f32 %v4257, %v4324
        %v4341 = vmul.f32 %v4259, %v4325
        %v4342 = vmul.f32 %v4261, %v4326
        %v4343 = vmul.f32 %v4263, %v4327
        %4344 = vrot.lane.b32.xlu0 %v1077, 32
        %v4345 = vpop.permute.xlu0 %4344
        %4346 = vrot.lane.b32.xlu0 %v1082, 32
        %v4347 = vpop.permute.xlu0 %4346
        %4348 = vrot.lane.b32.xlu0 %v1087, 32
        %v4349 = vpop.permute.xlu0 %4348
        %4350 = vrot.lane.b32.xlu0 %v1092, 32
        %v4351 = vpop.permute.xlu0 %4350
        %4352 = vrot.lane.b32.xlu0 %v1097, 32
        %v4353 = vpop.permute.xlu0 %4352
        %4354 = vrot.lane.b32.xlu0 %v1102, 32
        %v4355 = vpop.permute.xlu0 %4354
        %4356 = vrot.lane.b32.xlu0 %v1107, 32
        %v4357 = vpop.permute.xlu0 %4356
        %4358 = vrot.lane.b32.xlu0 %v1112, 32
        %v4359 = vpop.permute.xlu0 %4358
        %v4369 = vsel %vm1513, %v4328, 0
        %v4372 = vsel %vm1513, %v4329, 0
        %v4375 = vsel %vm1513, %v4330, 0
        %v4378 = vsel %vm1513, %v4331, 0
        %v4381 = vsel %vm1513, %v4332, 0
        %v4384 = vsel %vm1513, %v4333, 0
        %v4387 = vsel %vm1513, %v4334, 0
        %v4390 = vsel %vm1513, %v4335, 0
        %4392 = vmatprep.subr.mxu0 0.0
        %4393 = vmatpush1.msra.mxu0 %v4345
        %4394 = vmatprep.subr.mxu0 0.0
        %4395 = vmatpush1.msra.mxu0 %v4347
        %4396 = vmatprep.subr.mxu0 0.0
        %4397 = vmatpush1.msra.mxu0 %v4349
        %4398 = vmatprep.subr.mxu0 0.0
        %4399 = vmatpush1.msra.mxu0 %v4351
        %4400 = vmatprep.subr.mxu0 0.0
        %4401 = vmatpush1.msra.mxu0 %v4353
        %4402 = vmatprep.subr.mxu0 0.0
        %4403 = vmatpush1.msra.mxu0 %v4355
        %4404 = vmatprep.subr.mxu0 0.0
        %4405 = vmatpush1.msra.mxu0 %v4357
        %4406 = vmatprep.subr.mxu0 0.0
        %4407 = vmatpush1.msra.mxu0 %v4359
        %4408 = vmatprep.subr.mxu0 0.0
        %4409 = vmatpush1.msra.mxu0 0.0
        %4410 = vmatprep.subr.mxu0 0.0
        %4411 = vmatpush1.msra.mxu0 0.0
        %4412 = vmatprep.subr.mxu0 0.0
        %4413 = vmatpush1.msra.mxu0 0.0
        %4414 = vmatprep.subr.mxu0 0.0
        %4415 = vmatpush1.msra.mxu0 0.0
        %4416 = vmatprep.subr.mxu0 0.0
        %4417 = vmatpush1.msra.mxu0 0.0
        %4418 = vmatprep.subr.mxu0 0.0
        %4419 = vmatpush1.msra.mxu0 0.0
        %4420 = vmatprep.subr.mxu0 0.0
        %4421 = vmatpush1.msra.mxu0 0.0
        %4422 = vmatprep.subr.mxu0 0.0
        %4423 = vmatpush1.msra.mxu0 0.0
        %4424 = vmatprep.subr.mxu0 0.0
        %4425 = vmatpush1.msra.mxu0 0.0
        %4426 = vmatprep.subr.mxu0 0.0
        %4427 = vmatpush1.msra.mxu0 0.0
        %4428 = vmatprep.subr.mxu0 0.0
        %4429 = vmatpush1.msra.mxu0 0.0
        %4430 = vmatprep.subr.mxu0 0.0
        %4431 = vmatpush1.msra.mxu0 0.0
        %4432 = vmatprep.subr.mxu0 0.0
        %4433 = vmatpush1.msra.mxu0 0.0
        %4434 = vmatprep.subr.mxu0 0.0
        %4435 = vmatpush1.msra.mxu0 0.0
        %4436 = vmatprep.subr.mxu0 0.0
        %4437 = vmatpush1.msra.mxu0 0.0
        %4438 = vmatprep.subr.mxu0 0.0
        %4439 = vmatpush1.msra.mxu0 0.0
        %4440 = vmatprep.subr.mxu0 0.0
        %4441 = vmatpush1.msra.mxu0 0.0
        %4442 = vmatprep.subr.mxu0 0.0
        %4443 = vmatpush1.msra.mxu0 0.0
        %4444 = vmatprep.subr.mxu0 0.0
        %4445 = vmatpush1.msra.mxu0 0.0
        %4446 = vmatprep.subr.mxu0 0.0
        %4447 = vmatpush1.msra.mxu0 0.0
        %4448 = vmatprep.subr.mxu0 0.0
        %4449 = vmatpush1.msra.mxu0 0.0
        %4450 = vmatprep.subr.mxu0 0.0
        %4451 = vmatpush1.msra.mxu0 0.0
        %4452 = vmatprep.subr.mxu0 0.0
        %4453 = vmatpush1.msra.mxu0 0.0
        %4454 = vmatprep.subr.mxu0 0.0
        %4455 = vmatpush1.msra.mxu0 0.0
        %4456 = vmatprep.mubr.f32.mxu0 0.0
        %4457 = vmatmul.mubr.f32.gmra.mrb[0].mxu0 %v4369
        %v4458 = vpop.f32.mrb[0].mxu0
        %v4459 = vadd.f32 0.0, %v4458
        %v4460 = vpop.f32.mrb[0].mxu0
        %4461 = vmatprep.mubr.f32.mxu0 0.0
        %4462 = vmatmul.mubr.f32.gmra.mrb[0].mxu0 %v4372
        %v4463 = vpop.f32.mrb[0].mxu0
        %v4464 = vadd.f32 0.0, %v4463
        %v4465 = vpop.f32.mrb[0].mxu0
        %4466 = vmatprep.mubr.f32.mxu0 0.0
        %4467 = vmatmul.mubr.f32.gmra.mrb[0].mxu0 %v4375
        %v4468 = vpop.f32.mrb[0].mxu0
        %v4469 = vadd.f32 0.0, %v4468
        %v4470 = vpop.f32.mrb[0].mxu0
        %4471 = vmatprep.mubr.f32.mxu0 0.0
        %4472 = vmatmul.mubr.f32.gmra.mrb[0].mxu0 %v4378
        %v4473 = vpop.f32.mrb[0].mxu0
        %v4474 = vadd.f32 0.0, %v4473
        %v4475 = vpop.f32.mrb[0].mxu0
        %4476 = vmatprep.mubr.f32.mxu0 0.0
        %4477 = vmatmul.mubr.f32.gmra.mrb[0].mxu0 %v4381
        %v4478 = vpop.f32.mrb[0].mxu0
        %v4479 = vadd.f32 0.0, %v4478
        %v4480 = vpop.f32.mrb[0].mxu0
        %4481 = vmatprep.mubr.f32.mxu0 0.0
        %4482 = vmatmul.mubr.f32.gmra.mrb[0].mxu0 %v4384
        %v4483 = vpop.f32.mrb[0].mxu0
        %v4484 = vadd.f32 0.0, %v4483
        %v4485 = vpop.f32.mrb[0].mxu0
        %4486 = vmatprep.mubr.f32.mxu0 0.0
        %4487 = vmatmul.mubr.f32.gmra.mrb[0].mxu0 %v4387
        %v4488 = vpop.f32.mrb[0].mxu0
        %v4489 = vadd.f32 0.0, %v4488
        %v4490 = vpop.f32.mrb[0].mxu0
        %4491 = vmatprep.mubr.f32.mxu0 0.0
        %4492 = vmatmul.mubr.f32.gmra.mrb[0].mxu0 %v4390
        %v4493 = vpop.f32.mrb[0].mxu0
        %v4494 = vadd.f32 0.0, %v4493
        %v4495 = vpop.f32.mrb[0].mxu0
        %4496 = vdwg.mxu0
        %4497 = vrot.lane.b32.xlu0 %v1117, 32
        %v4498 = vpop.permute.xlu0 %4497
        %4499 = vrot.lane.b32.xlu0 %v1122, 32
        %v4500 = vpop.permute.xlu0 %4499
        %4501 = vrot.lane.b32.xlu0 %v1127, 32
        %v4502 = vpop.permute.xlu0 %4501
        %4503 = vrot.lane.b32.xlu0 %v1132, 32
        %v4504 = vpop.permute.xlu0 %4503
        %4505 = vrot.lane.b32.xlu0 %v1137, 32
        %v4506 = vpop.permute.xlu0 %4505
        %4507 = vrot.lane.b32.xlu0 %v1142, 32
        %v4508 = vpop.permute.xlu0 %4507
        %4509 = vrot.lane.b32.xlu0 %v1147, 32
        %v4510 = vpop.permute.xlu0 %4509
        %4511 = vrot.lane.b32.xlu0 %v1152, 32
        %v4512 = vpop.permute.xlu0 %4511
        %v4522 = vsel %vm1513, %v4336, 0
        %v4525 = vsel %vm1513, %v4337, 0
        %v4528 = vsel %vm1513, %v4338, 0
        %v4531 = vsel %vm1513, %v4339, 0
        %v4534 = vsel %vm1513, %v4340, 0
        %v4537 = vsel %vm1513, %v4341, 0
        %v4540 = vsel %vm1513, %v4342, 0
        %v4543 = vsel %vm1513, %v4343, 0
        %4545 = vmatprep.subr.mxu0 0.0
        %4546 = vmatpush1.msra.mxu0 %v4498
        %4547 = vmatprep.subr.mxu0 0.0
        %4548 = vmatpush1.msra.mxu0 %v4500
        %4549 = vmatprep.subr.mxu0 0.0
        %4550 = vmatpush1.msra.mxu0 %v4502
        %4551 = vmatprep.subr.mxu0 0.0
        %4552 = vmatpush1.msra.mxu0 %v4504
        %4553 = vmatprep.subr.mxu0 0.0
        %4554 = vmatpush1.msra.mxu0 %v4506
        %4555 = vmatprep.subr.mxu0 0.0
        %4556 = vmatpush1.msra.mxu0 %v4508
        %4557 = vmatprep.subr.mxu0 0.0
        %4558 = vmatpush1.msra.mxu0 %v4510
        %4559 = vmatprep.subr.mxu0 0.0
        %4560 = vmatpush1.msra.mxu0 %v4512
        %4561 = vmatprep.subr.mxu0 0.0
        %4562 = vmatpush1.msra.mxu0 0.0
        %4563 = vmatprep.subr.mxu0 0.0
        %4564 = vmatpush1.msra.mxu0 0.0
        %4565 = vmatprep.subr.mxu0 0.0
        %4566 = vmatpush1.msra.mxu0 0.0
        %4567 = vmatprep.subr.mxu0 0.0
        %4568 = vmatpush1.msra.mxu0 0.0
        %4569 = vmatprep.subr.mxu0 0.0
        %4570 = vmatpush1.msra.mxu0 0.0
        %4571 = vmatprep.subr.mxu0 0.0
        %4572 = vmatpush1.msra.mxu0 0.0
        %4573 = vmatprep.subr.mxu0 0.0
        %4574 = vmatpush1.msra.mxu0 0.0
        %4575 = vmatprep.subr.mxu0 0.0
        %4576 = vmatpush1.msra.mxu0 0.0
        %4577 = vmatprep.subr.mxu0 0.0
        %4578 = vmatpush1.msra.mxu0 0.0
        %4579 = vmatprep.subr.mxu0 0.0
        %4580 = vmatpush1.msra.mxu0 0.0
        %4581 = vmatprep.subr.mxu0 0.0
        %4582 = vmatpush1.msra.mxu0 0.0
        %4583 = vmatprep.subr.mxu0 0.0
        %4584 = vmatpush1.msra.mxu0 0.0
        %4585 = vmatprep.subr.mxu0 0.0
        %4586 = vmatpush1.msra.mxu0 0.0
        %4587 = vmatprep.subr.mxu0 0.0
        %4588 = vmatpush1.msra.mxu0 0.0
        %4589 = vmatprep.subr.mxu0 0.0
        %4590 = vmatpush1.msra.mxu0 0.0
        %4591 = vmatprep.subr.mxu0 0.0
        %4592 = vmatpush1.msra.mxu0 0.0
        %4593 = vmatprep.subr.mxu0 0.0
        %4594 = vmatpush1.msra.mxu0 0.0
        %4595 = vmatprep.subr.mxu0 0.0
        %4596 = vmatpush1.msra.mxu0 0.0
        %4597 = vmatprep.subr.mxu0 0.0
        %4598 = vmatpush1.msra.mxu0 0.0
        %4599 = vmatprep.subr.mxu0 0.0
        %4600 = vmatpush1.msra.mxu0 0.0
        %4601 = vmatprep.subr.mxu0 0.0
        %4602 = vmatpush1.msra.mxu0 0.0
        %4603 = vmatprep.subr.mxu0 0.0
        %4604 = vmatpush1.msra.mxu0 0.0
        %4605 = vmatprep.subr.mxu0 0.0
        %4606 = vmatpush1.msra.mxu0 0.0
        %4607 = vmatprep.subr.mxu0 0.0
        %4608 = vmatpush1.msra.mxu0 0.0
        %4609 = vmatprep.mubr.f32.mxu0 0.0
        %4610 = vmatmul.mubr.f32.gmra.mrb[0].mxu0 %v4522
        %v4611 = vpop.f32.mrb[0].mxu0
        %v4612 = vadd.f32 0.0, %v4611
        %v4613 = vpop.f32.mrb[0].mxu0
        %4614 = vmatprep.mubr.f32.mxu0 0.0
        %4615 = vmatmul.mubr.f32.gmra.mrb[0].mxu0 %v4525
        %v4616 = vpop.f32.mrb[0].mxu0
        %v4617 = vadd.f32 0.0, %v4616
        %v4618 = vpop.f32.mrb[0].mxu0
        %4619 = vmatprep.mubr.f32.mxu0 0.0
        %4620 = vmatmul.mubr.f32.gmra.mrb[0].mxu0 %v4528
        %v4621 = vpop.f32.mrb[0].mxu0
        %v4622 = vadd.f32 0.0, %v4621
        %v4623 = vpop.f32.mrb[0].mxu0
        %4624 = vmatprep.mubr.f32.mxu0 0.0
        %4625 = vmatmul.mubr.f32.gmra.mrb[0].mxu0 %v4531
        %v4626 = vpop.f32.mrb[0].mxu0
        %v4627 = vadd.f32 0.0, %v4626
        %v4628 = vpop.f32.mrb[0].mxu0
        %4629 = vmatprep.mubr.f32.mxu0 0.0
        %4630 = vmatmul.mubr.f32.gmra.mrb[0].mxu0 %v4534
        %v4631 = vpop.f32.mrb[0].mxu0
        %v4632 = vadd.f32 0.0, %v4631
        %v4633 = vpop.f32.mrb[0].mxu0
        %4634 = vmatprep.mubr.f32.mxu0 0.0
        %4635 = vmatmul.mubr.f32.gmra.mrb[0].mxu0 %v4537
        %v4636 = vpop.f32.mrb[0].mxu0
        %v4637 = vadd.f32 0.0, %v4636
        %v4638 = vpop.f32.mrb[0].mxu0
        %4639 = vmatprep.mubr.f32.mxu0 0.0
        %4640 = vmatmul.mubr.f32.gmra.mrb[0].mxu0 %v4540
        %v4641 = vpop.f32.mrb[0].mxu0
        %v4642 = vadd.f32 0.0, %v4641
        %v4643 = vpop.f32.mrb[0].mxu0
        %4644 = vmatprep.mubr.f32.mxu0 0.0
        %4645 = vmatmul.mubr.f32.gmra.mrb[0].mxu0 %v4543
        %v4646 = vpop.f32.mrb[0].mxu0
        %v4647 = vadd.f32 0.0, %v4646
        %v4648 = vpop.f32.mrb[0].mxu0
        %4649 = vdwg.mxu0
        %4666 = vrot.lane.b32.xlu0 %v4459, 96
        %v4667 = vpop.permute.xlu0 %4666
        %4668 = vrot.lane.b32.xlu0 %v4464, 96
        %v4669 = vpop.permute.xlu0 %4668
        %4670 = vrot.lane.b32.xlu0 %v4469, 96
        %v4671 = vpop.permute.xlu0 %4670
        %4672 = vrot.lane.b32.xlu0 %v4474, 96
        %v4673 = vpop.permute.xlu0 %4672
        %4674 = vrot.lane.b32.xlu0 %v4479, 96
        %v4675 = vpop.permute.xlu0 %4674
        %4676 = vrot.lane.b32.xlu0 %v4484, 96
        %v4677 = vpop.permute.xlu0 %4676
        %4678 = vrot.lane.b32.xlu0 %v4489, 96
        %v4679 = vpop.permute.xlu0 %4678
        %4680 = vrot.lane.b32.xlu0 %v4494, 96
        %v4681 = vpop.permute.xlu0 %4680
        %4682 = vrot.lane.b32.xlu0 %v4612, 96
        %v4683 = vpop.permute.xlu0 %4682
        %4684 = vrot.lane.b32.xlu0 %v4617, 96
        %v4685 = vpop.permute.xlu0 %4684
        %4686 = vrot.lane.b32.xlu0 %v4622, 96
        %v4687 = vpop.permute.xlu0 %4686
        %4688 = vrot.lane.b32.xlu0 %v4627, 96
        %v4689 = vpop.permute.xlu0 %4688
        %4690 = vrot.lane.b32.xlu0 %v4632, 96
        %v4691 = vpop.permute.xlu0 %4690
        %4692 = vrot.lane.b32.xlu0 %v4637, 96
        %v4693 = vpop.permute.xlu0 %4692
        %4694 = vrot.lane.b32.xlu0 %v4642, 96
        %v4695 = vpop.permute.xlu0 %4694
        %4696 = vrot.lane.b32.xlu0 %v4647, 96
        %v4697 = vpop.permute.xlu0 %4696
        %vm4714 = vcmask 1048320
        %4715 = vst.msk [vmem:[#allocation2] sm:$0xff] %vm4714, %v4667
        %4716 = vst.msk [vmem:[#allocation2 + $0x8] sm:$0xff] %vm4714, %v4669
        %4717 = vst.msk [vmem:[#allocation2 + $0x10] sm:$0xff] %vm4714, %v4671
        %4718 = vst.msk [vmem:[#allocation2 + $0x18] sm:$0xff] %vm4714, %v4673
        %4719 = vst.msk [vmem:[#allocation2 + $0x20] sm:$0xff] %vm4714, %v4675
        %4720 = vst.msk [vmem:[#allocation2 + $0x28] sm:$0xff] %vm4714, %v4677
        %4721 = vst.msk [vmem:[#allocation2 + $0x30] sm:$0xff] %vm4714, %v4679
        %4722 = vst.msk [vmem:[#allocation2 + $0x38] sm:$0xff] %vm4714, %v4681
        %4723 = vst.msk [vmem:[#allocation2 + $0x40] sm:$0xff] %vm4714, %v4683
        %4724 = vst.msk [vmem:[#allocation2 + $0x48] sm:$0xff] %vm4714, %v4685
        %4725 = vst.msk [vmem:[#allocation2 + $0x50] sm:$0xff] %vm4714, %v4687
        %4726 = vst.msk [vmem:[#allocation2 + $0x58] sm:$0xff] %vm4714, %v4689
        %4727 = vst.msk [vmem:[#allocation2 + $0x60] sm:$0xff] %vm4714, %v4691
        %4728 = vst.msk [vmem:[#allocation2 + $0x68] sm:$0xff] %vm4714, %v4693
        %4729 = vst.msk [vmem:[#allocation2 + $0x70] sm:$0xff] %vm4714, %v4695
        %4730 = vst.msk [vmem:[#allocation2 + $0x78] sm:$0xff] %vm4714, %v4697
        %v4731 = vld [vmem:[#allocation2] sm:$0xff]
        %v4732 = vld [vmem:[#allocation2 + $0x8] sm:$0xff]
        %v4733 = vld [vmem:[#allocation2 + $0x10] sm:$0xff]
        %v4734 = vld [vmem:[#allocation2 + $0x18] sm:$0xff]
        %v4735 = vld [vmem:[#allocation2 + $0x20] sm:$0xff]
        %v4736 = vld [vmem:[#allocation2 + $0x28] sm:$0xff]
        %v4737 = vld [vmem:[#allocation2 + $0x30] sm:$0xff]
        %v4738 = vld [vmem:[#allocation2 + $0x38] sm:$0xff]
        %v4739 = vld [vmem:[#allocation2 + $0x40] sm:$0xff]
        %v4740 = vld [vmem:[#allocation2 + $0x48] sm:$0xff]
        %v4741 = vld [vmem:[#allocation2 + $0x50] sm:$0xff]
        %v4742 = vld [vmem:[#allocation2 + $0x58] sm:$0xff]
        %v4743 = vld [vmem:[#allocation2 + $0x60] sm:$0xff]
        %v4744 = vld [vmem:[#allocation2 + $0x68] sm:$0xff]
        %v4745 = vld [vmem:[#allocation2 + $0x70] sm:$0xff]
        %v4746 = vld [vmem:[#allocation2 + $0x78] sm:$0xff]
        %v4747 = vld [vmem:[#allocation11] sm:$0xff]
        %v4748 = vld [vmem:[#allocation11 + $0x8] sm:$0xff]
        %v4749 = vld [vmem:[#allocation11 + $0x10] sm:$0xff]
        %v4750 = vld [vmem:[#allocation11 + $0x18] sm:$0xff]
        %v4751 = vld [vmem:[#allocation11 + $0x20] sm:$0xff]
        %v4752 = vld [vmem:[#allocation11 + $0x28] sm:$0xff]
        %v4753 = vld [vmem:[#allocation11 + $0x30] sm:$0xff]
        %v4754 = vld [vmem:[#allocation11 + $0x38] sm:$0xff]
        %v4755 = vld [vmem:[#allocation11 + $0x40] sm:$0xff]
        %v4756 = vld [vmem:[#allocation11 + $0x48] sm:$0xff]
        %v4757 = vld [vmem:[#allocation11 + $0x50] sm:$0xff]
        %v4758 = vld [vmem:[#allocation11 + $0x58] sm:$0xff]
        %v4759 = vld [vmem:[#allocation11 + $0x60] sm:$0xff]
        %v4760 = vld [vmem:[#allocation11 + $0x68] sm:$0xff]
        %v4761 = vld [vmem:[#allocation11 + $0x70] sm:$0xff]
        %v4762 = vld [vmem:[#allocation11 + $0x78] sm:$0xff]
        %v4763 = vld [vmem:[%s6] sm:$0x1]
        %v4765 = vlaneseq
        %v4766 = vshrl.u32 %v4765, 7
        %v4767 = vsub.s32 0, %v4766
        %v4768 = vrot.slane %v4763, %v4767
        %4770 = vmatprep.subr.mxu0 0.0
        %4771 = vmatpush1.msra.mxu0 %v4747
        %4772 = vmatprep.subr.mxu0 0.0
        %4773 = vmatpush1.msra.mxu0 %v4748
        %4774 = vmatprep.subr.mxu0 0.0
        %4775 = vmatpush1.msra.mxu0 %v4749
        %4776 = vmatprep.subr.mxu0 0.0
        %4777 = vmatpush1.msra.mxu0 %v4750
        %4778 = vmatprep.subr.mxu0 0.0
        %4779 = vmatpush1.msra.mxu0 %v4751
        %4780 = vmatprep.subr.mxu0 0.0
        %4781 = vmatpush1.msra.mxu0 %v4752
        %4782 = vmatprep.subr.mxu0 0.0
        %4783 = vmatpush1.msra.mxu0 %v4753
        %4784 = vmatprep.subr.mxu0 0.0
        %4785 = vmatpush1.msra.mxu0 %v4754
        %4786 = vmatprep.subr.mxu0 0.0
        %4787 = vmatpush1.msra.mxu0 %v4755
        %4788 = vmatprep.subr.mxu0 0.0
        %4789 = vmatpush1.msra.mxu0 %v4756
        %4790 = vmatprep.subr.mxu0 0.0
        %4791 = vmatpush1.msra.mxu0 %v4757
        %4792 = vmatprep.subr.mxu0 0.0
        %4793 = vmatpush1.msra.mxu0 %v4758
        %4794 = vmatprep.subr.mxu0 0.0
        %4795 = vmatpush1.msra.mxu0 %v4759
        %4796 = vmatprep.subr.mxu0 0.0
        %4797 = vmatpush1.msra.mxu0 %v4760
        %4798 = vmatprep.subr.mxu0 0.0
        %4799 = vmatpush1.msra.mxu0 %v4761
        %4800 = vmatprep.subr.mxu0 0.0
        %4801 = vmatpush1.msra.mxu0 %v4762
        %4802 = vmatprep.subr.mxu0 0.0
        %4803 = vmatpush1.msra.mxu0 0.0
        %4804 = vmatprep.subr.mxu0 0.0
        %4805 = vmatpush1.msra.mxu0 0.0
        %4806 = vmatprep.subr.mxu0 0.0
        %4807 = vmatpush1.msra.mxu0 0.0
        %4808 = vmatprep.subr.mxu0 0.0
        %4809 = vmatpush1.msra.mxu0 0.0
        %4810 = vmatprep.subr.mxu0 0.0
        %4811 = vmatpush1.msra.mxu0 0.0
        %4812 = vmatprep.subr.mxu0 0.0
        %4813 = vmatpush1.msra.mxu0 0.0
        %4814 = vmatprep.subr.mxu0 0.0
        %4815 = vmatpush1.msra.mxu0 0.0
        %4816 = vmatprep.subr.mxu0 0.0
        %4817 = vmatpush1.msra.mxu0 0.0
        %4818 = vmatprep.subr.mxu0 0.0
        %4819 = vmatpush1.msra.mxu0 0.0
        %4820 = vmatprep.subr.mxu0 0.0
        %4821 = vmatpush1.msra.mxu0 0.0
        %4822 = vmatprep.subr.mxu0 0.0
        %4823 = vmatpush1.msra.mxu0 0.0
        %4824 = vmatprep.subr.mxu0 0.0
        %4825 = vmatpush1.msra.mxu0 0.0
        %4826 = vmatprep.subr.mxu0 0.0
        %4827 = vmatpush1.msra.mxu0 0.0
        %4828 = vmatprep.subr.mxu0 0.0
        %4829 = vmatpush1.msra.mxu0 0.0
        %4830 = vmatprep.subr.mxu0 0.0
        %4831 = vmatpush1.msra.mxu0 0.0
        %4832 = vmatprep.subr.mxu0 0.0
        %4833 = vmatpush1.msra.mxu0 0.0
        %4834 = vmatprep.mubr.f32.mxu0 0.0
        %4835 = vmatmul.mubr.f32.gmra.mrb[0].mxu0 %v4731
        %v4836 = vpop.f32.mrb[0].mxu0
        %v4837 = vadd.f32 %v4768, %v4836
        %v4838 = vpop.f32.mrb[0].mxu0
        %4839 = vmatprep.mubr.f32.mxu0 0.0
        %4840 = vmatmul.mubr.f32.gmra.mrb[0].mxu0 %v4732
        %v4841 = vpop.f32.mrb[0].mxu0
        %v4842 = vadd.f32 %v4768, %v4841
        %v4843 = vpop.f32.mrb[0].mxu0
        %4844 = vmatprep.mubr.f32.mxu0 0.0
        %4845 = vmatmul.mubr.f32.gmra.mrb[0].mxu0 %v4733
        %v4846 = vpop.f32.mrb[0].mxu0
        %v4847 = vadd.f32 %v4768, %v4846
        %v4848 = vpop.f32.mrb[0].mxu0
        %4849 = vmatprep.mubr.f32.mxu0 0.0
        %4850 = vmatmul.mubr.f32.gmra.mrb[0].mxu0 %v4734
        %v4851 = vpop.f32.mrb[0].mxu0
        %v4852 = vadd.f32 %v4768, %v4851
        %v4853 = vpop.f32.mrb[0].mxu0
        %4854 = vmatprep.mubr.f32.mxu0 0.0
        %4855 = vmatmul.mubr.f32.gmra.mrb[0].mxu0 %v4735
        %v4856 = vpop.f32.mrb[0].mxu0
        %v4857 = vadd.f32 %v4768, %v4856
        %v4858 = vpop.f32.mrb[0].mxu0
        %4859 = vmatprep.mubr.f32.mxu0 0.0
        %4860 = vmatmul.mubr.f32.gmra.mrb[0].mxu0 %v4736
        %v4861 = vpop.f32.mrb[0].mxu0
        %v4862 = vadd.f32 %v4768, %v4861
        %v4863 = vpop.f32.mrb[0].mxu0
        %4864 = vmatprep.mubr.f32.mxu0 0.0
        %4865 = vmatmul.mubr.f32.gmra.mrb[0].mxu0 %v4737
        %v4866 = vpop.f32.mrb[0].mxu0
        %v4867 = vadd.f32 %v4768, %v4866
        %v4868 = vpop.f32.mrb[0].mxu0
        %4869 = vmatprep.mubr.f32.mxu0 0.0
        %4870 = vmatmul.mubr.f32.gmra.mrb[0].mxu0 %v4738
        %v4871 = vpop.f32.mrb[0].mxu0
        %v4872 = vadd.f32 %v4768, %v4871
        %v4873 = vpop.f32.mrb[0].mxu0
        %4874 = vmatprep.mubr.f32.mxu0 0.0
        %4875 = vmatmul.mubr.f32.gmra.mrb[0].mxu0 %v4739
        %v4876 = vpop.f32.mrb[0].mxu0
        %v4877 = vadd.f32 %v4768, %v4876
        %v4878 = vpop.f32.mrb[0].mxu0
        %4879 = vmatprep.mubr.f32.mxu0 0.0
        %4880 = vmatmul.mubr.f32.gmra.mrb[0].mxu0 %v4740
        %v4881 = vpop.f32.mrb[0].mxu0
        %v4882 = vadd.f32 %v4768, %v4881
        %v4883 = vpop.f32.mrb[0].mxu0
        %4884 = vmatprep.mubr.f32.mxu0 0.0
        %4885 = vmatmul.mubr.f32.gmra.mrb[0].mxu0 %v4741
        %v4886 = vpop.f32.mrb[0].mxu0
        %v4887 = vadd.f32 %v4768, %v4886
        %v4888 = vpop.f32.mrb[0].mxu0
        %4889 = vmatprep.mubr.f32.mxu0 0.0
        %4890 = vmatmul.mubr.f32.gmra.mrb[0].mxu0 %v4742
        %v4891 = vpop.f32.mrb[0].mxu0
        %v4892 = vadd.f32 %v4768, %v4891
        %v4893 = vpop.f32.mrb[0].mxu0
        %4894 = vmatprep.mubr.f32.mxu0 0.0
        %4895 = vmatmul.mubr.f32.gmra.mrb[0].mxu0 %v4743
        %v4896 = vpop.f32.mrb[0].mxu0
        %v4897 = vadd.f32 %v4768, %v4896
        %v4898 = vpop.f32.mrb[0].mxu0
        %4899 = vmatprep.mubr.f32.mxu0 0.0
        %4900 = vmatmul.mubr.f32.gmra.mrb[0].mxu0 %v4744
        %v4901 = vpop.f32.mrb[0].mxu0
        %v4902 = vadd.f32 %v4768, %v4901
        %v4903 = vpop.f32.mrb[0].mxu0
        %4904 = vmatprep.mubr.f32.mxu0 0.0
        %4905 = vmatmul.mubr.f32.gmra.mrb[0].mxu0 %v4745
        %v4906 = vpop.f32.mrb[0].mxu0
        %v4907 = vadd.f32 %v4768, %v4906
        %v4908 = vpop.f32.mrb[0].mxu0
        %4909 = vmatprep.mubr.f32.mxu0 0.0
        %4910 = vmatmul.mubr.f32.gmra.mrb[0].mxu0 %v4746
        %v4911 = vpop.f32.mrb[0].mxu0
        %v4912 = vadd.f32 %v4768, %v4911
        %v4913 = vpop.f32.mrb[0].mxu0
        %4914 = vdwg.mxu0
        %v4915 = vadd.f32 %v545, %v4837
        %v4916 = vadd.f32 %v546, %v4842
        %v4917 = vadd.f32 %v547, %v4847
        %v4918 = vadd.f32 %v548, %v4852
        %v4919 = vadd.f32 %v549, %v4857
        %v4920 = vadd.f32 %v550, %v4862
        %v4921 = vadd.f32 %v551, %v4867
        %v4922 = vadd.f32 %v552, %v4872
        %v4923 = vadd.f32 %v553, %v4877
        %v4924 = vadd.f32 %v554, %v4882
        %v4925 = vadd.f32 %v555, %v4887
        %v4926 = vadd.f32 %v556, %v4892
        %v4927 = vadd.f32 %v557, %v4897
        %v4928 = vadd.f32 %v558, %v4902
        %v4929 = vadd.f32 %v559, %v4907
        %v4930 = vadd.f32 %v560, %v4912
        %v4931 = vld [vmem:[%s7] sm:$0x1]
        %v4932 = vld [vmem:[%s8] sm:$0x1]
        %4933 = vadd.xlane.f32.xlu0 %v4915
        %v4934 = vpop.xlane.xlu0 %4933
        %4935 = vadd.xlane.f32.xlu0 %v4916
        %v4936 = vpop.xlane.xlu0 %4935
        %4937 = vadd.xlane.f32.xlu0 %v4917
        %v4938 = vpop.xlane.xlu0 %4937
        %4939 = vadd.xlane.f32.xlu0 %v4918
        %v4940 = vpop.xlane.xlu0 %4939
        %4941 = vadd.xlane.f32.xlu0 %v4919
        %v4942 = vpop.xlane.xlu0 %4941
        %4943 = vadd.xlane.f32.xlu0 %v4920
        %v4944 = vpop.xlane.xlu0 %4943
        %4945 = vadd.xlane.f32.xlu0 %v4921
        %v4946 = vpop.xlane.xlu0 %4945
        %4947 = vadd.xlane.f32.xlu0 %v4922
        %v4948 = vpop.xlane.xlu0 %4947
        %4949 = vadd.xlane.f32.xlu0 %v4923
        %v4950 = vpop.xlane.xlu0 %4949
        %4951 = vadd.xlane.f32.xlu0 %v4924
        %v4952 = vpop.xlane.xlu0 %4951
        %4953 = vadd.xlane.f32.xlu0 %v4925
        %v4954 = vpop.xlane.xlu0 %4953
        %4955 = vadd.xlane.f32.xlu0 %v4926
        %v4956 = vpop.xlane.xlu0 %4955
        %4957 = vadd.xlane.f32.xlu0 %v4927
        %v4958 = vpop.xlane.xlu0 %4957
        %4959 = vadd.xlane.f32.xlu0 %v4928
        %v4960 = vpop.xlane.xlu0 %4959
        %4961 = vadd.xlane.f32.xlu0 %v4929
        %v4962 = vpop.xlane.xlu0 %4961
        %4963 = vadd.xlane.f32.xlu0 %v4930
        %v4964 = vpop.xlane.xlu0 %4963
        %v4965 = vmul.f32 %v4934, %v595
        %v4966 = vmul.f32 %v4936, %v595
        %v4967 = vmul.f32 %v4938, %v595
        %v4968 = vmul.f32 %v4940, %v595
        %v4969 = vmul.f32 %v4942, %v595
        %v4970 = vmul.f32 %v4944, %v595
        %v4971 = vmul.f32 %v4946, %v595
        %v4972 = vmul.f32 %v4948, %v595
        %v4973 = vmul.f32 %v4950, %v595
        %v4974 = vmul.f32 %v4952, %v595
        %v4975 = vmul.f32 %v4954, %v595
        %v4976 = vmul.f32 %v4956, %v595
        %v4977 = vmul.f32 %v4958, %v595
        %v4978 = vmul.f32 %v4960, %v595
        %v4979 = vmul.f32 %v4962, %v595
        %v4980 = vmul.f32 %v4964, %v595
        %v4981 = vsub.f32 %v4915, %v4965
        %v4982 = vsub.f32 %v4916, %v4966
        %v4983 = vsub.f32 %v4917, %v4967
        %v4984 = vsub.f32 %v4918, %v4968
        %v4985 = vsub.f32 %v4919, %v4969
        %v4986 = vsub.f32 %v4920, %v4970
        %v4987 = vsub.f32 %v4921, %v4971
        %v4988 = vsub.f32 %v4922, %v4972
        %v4989 = vsub.f32 %v4923, %v4973
        %v4990 = vsub.f32 %v4924, %v4974
        %v4991 = vsub.f32 %v4925, %v4975
        %v4992 = vsub.f32 %v4926, %v4976
        %v4993 = vsub.f32 %v4927, %v4977
        %v4994 = vsub.f32 %v4928, %v4978
        %v4995 = vsub.f32 %v4929, %v4979
        %v4996 = vsub.f32 %v4930, %v4980
        %v4997 = vmul.f32 %v4981, %v4981
        %v4998 = vmul.f32 %v4982, %v4982
        %v4999 = vmul.f32 %v4983, %v4983
        %v5000 = vmul.f32 %v4984, %v4984
        %v5001 = vmul.f32 %v4985, %v4985
        %v5002 = vmul.f32 %v4986, %v4986
        %v5003 = vmul.f32 %v4987, %v4987
        %v5004 = vmul.f32 %v4988, %v4988
        %v5005 = vmul.f32 %v4989, %v4989
        %v5006 = vmul.f32 %v4990, %v4990
        %v5007 = vmul.f32 %v4991, %v4991
        %v5008 = vmul.f32 %v4992, %v4992
        %v5009 = vmul.f32 %v4993, %v4993
        %v5010 = vmul.f32 %v4994, %v4994
        %v5011 = vmul.f32 %v4995, %v4995
        %v5012 = vmul.f32 %v4996, %v4996
        %5013 = vadd.xlane.f32.xlu0 %v4997
        %v5014 = vpop.xlane.xlu0 %5013
        %5015 = vadd.xlane.f32.xlu0 %v4998
        %v5016 = vpop.xlane.xlu0 %5015
        %5017 = vadd.xlane.f32.xlu0 %v4999
        %v5018 = vpop.xlane.xlu0 %5017
        %5019 = vadd.xlane.f32.xlu0 %v5000
        %v5020 = vpop.xlane.xlu0 %5019
        %5021 = vadd.xlane.f32.xlu0 %v5001
        %v5022 = vpop.xlane.xlu0 %5021
        %5023 = vadd.xlane.f32.xlu0 %v5002
        %v5024 = vpop.xlane.xlu0 %5023
        %5025 = vadd.xlane.f32.xlu0 %v5003
        %v5026 = vpop.xlane.xlu0 %5025
        %5027 = vadd.xlane.f32.xlu0 %v5004
        %v5028 = vpop.xlane.xlu0 %5027
        %5029 = vadd.xlane.f32.xlu0 %v5005
        %v5030 = vpop.xlane.xlu0 %5029
        %5031 = vadd.xlane.f32.xlu0 %v5006
        %v5032 = vpop.xlane.xlu0 %5031
        %5033 = vadd.xlane.f32.xlu0 %v5007
        %v5034 = vpop.xlane.xlu0 %5033
        %5035 = vadd.xlane.f32.xlu0 %v5008
        %v5036 = vpop.xlane.xlu0 %5035
        %5037 = vadd.xlane.f32.xlu0 %v5009
        %v5038 = vpop.xlane.xlu0 %5037
        %5039 = vadd.xlane.f32.xlu0 %v5010
        %v5040 = vpop.xlane.xlu0 %5039
        %5041 = vadd.xlane.f32.xlu0 %v5011
        %v5042 = vpop.xlane.xlu0 %5041
        %5043 = vadd.xlane.f32.xlu0 %v5012
        %v5044 = vpop.xlane.xlu0 %5043
        %v5045 = vmul.f32 %v5014, %v595
        %v5046 = vmul.f32 %v5016, %v595
        %v5047 = vmul.f32 %v5018, %v595
        %v5048 = vmul.f32 %v5020, %v595
        %v5049 = vmul.f32 %v5022, %v595
        %v5050 = vmul.f32 %v5024, %v595
        %v5051 = vmul.f32 %v5026, %v595
        %v5052 = vmul.f32 %v5028, %v595
        %v5053 = vmul.f32 %v5030, %v595
        %v5054 = vmul.f32 %v5032, %v595
        %v5055 = vmul.f32 %v5034, %v595
        %v5056 = vmul.f32 %v5036, %v595
        %v5057 = vmul.f32 %v5038, %v595
        %v5058 = vmul.f32 %v5040, %v595
        %v5059 = vmul.f32 %v5042, %v595
        %v5060 = vmul.f32 %v5044, %v595
        %v5061 = vadd.f32 %v5045, 1e-05
        %v5062 = vadd.f32 %v5046, 1e-05
        %v5063 = vadd.f32 %v5047, 1e-05
        %v5064 = vadd.f32 %v5048, 1e-05
        %v5065 = vadd.f32 %v5049, 1e-05
        %v5066 = vadd.f32 %v5050, 1e-05
        %v5067 = vadd.f32 %v5051, 1e-05
        %v5068 = vadd.f32 %v5052, 1e-05
        %v5069 = vadd.f32 %v5053, 1e-05
        %v5070 = vadd.f32 %v5054, 1e-05
        %v5071 = vadd.f32 %v5055, 1e-05
        %v5072 = vadd.f32 %v5056, 1e-05
        %v5073 = vadd.f32 %v5057, 1e-05
        %v5074 = vadd.f32 %v5058, 1e-05
        %v5075 = vadd.f32 %v5059, 1e-05
        %v5076 = vadd.f32 %v5060, 1e-05
        %v5077 = vrsqrt.pop %v5061
        %v5078 = vrsqrt.pop %v5062
        %v5079 = vrsqrt.pop %v5063
        %v5080 = vrsqrt.pop %v5064
        %v5081 = vrsqrt.pop %v5065
        %v5082 = vrsqrt.pop %v5066
        %v5083 = vrsqrt.pop %v5067
        %v5084 = vrsqrt.pop %v5068
        %v5085 = vrsqrt.pop %v5069
        %v5086 = vrsqrt.pop %v5070
        %v5087 = vrsqrt.pop %v5071
        %v5088 = vrsqrt.pop %v5072
        %v5089 = vrsqrt.pop %v5073
        %v5090 = vrsqrt.pop %v5074
        %v5091 = vrsqrt.pop %v5075
        %v5092 = vrsqrt.pop %v5076
        %v5093 = vmul.f32 %v4981, %v5077
        %v5094 = vmul.f32 %v4982, %v5078
        %v5095 = vmul.f32 %v4983, %v5079
        %v5096 = vmul.f32 %v4984, %v5080
        %v5097 = vmul.f32 %v4985, %v5081
        %v5098 = vmul.f32 %v4986, %v5082
        %v5099 = vmul.f32 %v4987, %v5083
        %v5100 = vmul.f32 %v4988, %v5084
        %v5101 = vmul.f32 %v4989, %v5085
        %v5102 = vmul.f32 %v4990, %v5086
        %v5103 = vmul.f32 %v4991, %v5087
        %v5104 = vmul.f32 %v4992, %v5088
        %v5105 = vmul.f32 %v4993, %v5089
        %v5106 = vmul.f32 %v4994, %v5090
        %v5107 = vmul.f32 %v4995, %v5091
        %v5108 = vmul.f32 %v4996, %v5092
        %v5110 = vlaneseq
        %v5111 = vshrl.u32 %v5110, 7
        %v5112 = vsub.s32 0, %v5111
        %v5113 = vrot.slane %v4931, %v5112
        %v5115 = vmul.f32 %v5093, %v5113
        %v5116 = vmul.f32 %v5094, %v5113
        %v5117 = vmul.f32 %v5095, %v5113
        %v5118 = vmul.f32 %v5096, %v5113
        %v5119 = vmul.f32 %v5097, %v5113
        %v5120 = vmul.f32 %v5098, %v5113
        %v5121 = vmul.f32 %v5099, %v5113
        %v5122 = vmul.f32 %v5100, %v5113
        %v5123 = vmul.f32 %v5101, %v5113
        %v5124 = vmul.f32 %v5102, %v5113
        %v5125 = vmul.f32 %v5103, %v5113
        %v5126 = vmul.f32 %v5104, %v5113
        %v5127 = vmul.f32 %v5105, %v5113
        %v5128 = vmul.f32 %v5106, %v5113
        %v5129 = vmul.f32 %v5107, %v5113
        %v5130 = vmul.f32 %v5108, %v5113
        %v5132 = vlaneseq
        %v5133 = vshrl.u32 %v5132, 7
        %v5134 = vsub.s32 0, %v5133
        %v5135 = vrot.slane %v4932, %v5134
        %v5137 = vadd.f32 %v5115, %v5135
        %v5138 = vadd.f32 %v5116, %v5135
        %v5139 = vadd.f32 %v5117, %v5135
        %v5140 = vadd.f32 %v5118, %v5135
        %v5141 = vadd.f32 %v5119, %v5135
        %v5142 = vadd.f32 %v5120, %v5135
        %v5143 = vadd.f32 %v5121, %v5135
        %v5144 = vadd.f32 %v5122, %v5135
        %v5145 = vadd.f32 %v5123, %v5135
        %v5146 = vadd.f32 %v5124, %v5135
        %v5147 = vadd.f32 %v5125, %v5135
        %v5148 = vadd.f32 %v5126, %v5135
        %v5149 = vadd.f32 %v5127, %v5135
        %v5150 = vadd.f32 %v5128, %v5135
        %v5151 = vadd.f32 %v5129, %v5135
        %v5152 = vadd.f32 %v5130, %v5135
        %v5153 = vld [vmem:[#allocation12] sm:$0xff]
        %v5154 = vld [vmem:[#allocation12 + $0x8] sm:$0xff]
        %v5155 = vld [vmem:[#allocation12 + $0x10] sm:$0xff]
        %v5156 = vld [vmem:[#allocation12 + $0x18] sm:$0xff]
        %v5157 = vld [vmem:[#allocation12 + $0x20] sm:$0xff]
        %v5158 = vld [vmem:[#allocation12 + $0x28] sm:$0xff]
        %v5159 = vld [vmem:[#allocation12 + $0x30] sm:$0xff]
        %v5160 = vld [vmem:[#allocation12 + $0x38] sm:$0xff]
        %v5161 = vld [vmem:[#allocation12 + $0x40] sm:$0xff]
        %v5162 = vld [vmem:[#allocation12 + $0x48] sm:$0xff]
        %v5163 = vld [vmem:[#allocation12 + $0x50] sm:$0xff]
        %v5164 = vld [vmem:[#allocation12 + $0x58] sm:$0xff]
        %v5165 = vld [vmem:[#allocation12 + $0x60] sm:$0xff]
        %v5166 = vld [vmem:[#allocation12 + $0x68] sm:$0xff]
        %v5167 = vld [vmem:[#allocation12 + $0x70] sm:$0xff]
        %v5168 = vld [vmem:[#allocation12 + $0x78] sm:$0xff]
        %v5169 = vld [vmem:[#allocation12 + $0x80] sm:$0xff]
        %v5170 = vld [vmem:[#allocation12 + $0x88] sm:$0xff]
        %v5171 = vld [vmem:[#allocation12 + $0x90] sm:$0xff]
        %v5172 = vld [vmem:[#allocation12 + $0x98] sm:$0xff]
        %v5173 = vld [vmem:[#allocation12 + $0xa0] sm:$0xff]
        %v5174 = vld [vmem:[#allocation12 + $0xa8] sm:$0xff]
        %v5175 = vld [vmem:[#allocation12 + $0xb0] sm:$0xff]
        %v5176 = vld [vmem:[#allocation12 + $0xb8] sm:$0xff]
        %v5177 = vld [vmem:[#allocation12 + $0xc0] sm:$0xff]
        %v5178 = vld [vmem:[#allocation12 + $0xc8] sm:$0xff]
        %v5179 = vld [vmem:[#allocation12 + $0xd0] sm:$0xff]
        %v5180 = vld [vmem:[#allocation12 + $0xd8] sm:$0xff]
        %v5181 = vld [vmem:[#allocation12 + $0xe0] sm:$0xff]
        %v5182 = vld [vmem:[#allocation12 + $0xe8] sm:$0xff]
        %v5183 = vld [vmem:[#allocation12 + $0xf0] sm:$0xff]
        %v5184 = vld [vmem:[#allocation12 + $0xf8] sm:$0xff]
        %v5185 = vld [vmem:[#allocation12 + $0x100] sm:$0xff]
        %v5186 = vld [vmem:[#allocation12 + $0x108] sm:$0xff]
        %v5187 = vld [vmem:[#allocation12 + $0x110] sm:$0xff]
        %v5188 = vld [vmem:[#allocation12 + $0x118] sm:$0xff]
        %v5189 = vld [vmem:[#allocation12 + $0x120] sm:$0xff]
        %v5190 = vld [vmem:[#allocation12 + $0x128] sm:$0xff]
        %v5191 = vld [vmem:[#allocation12 + $0x130] sm:$0xff]
        %v5192 = vld [vmem:[#allocation12 + $0x138] sm:$0xff]
        %v5193 = vld [vmem:[#allocation12 + $0x140] sm:$0xff]
        %v5194 = vld [vmem:[#allocation12 + $0x148] sm:$0xff]
        %v5195 = vld [vmem:[#allocation12 + $0x150] sm:$0xff]
        %v5196 = vld [vmem:[#allocation12 + $0x158] sm:$0xff]
        %v5197 = vld [vmem:[#allocation12 + $0x160] sm:$0xff]
        %v5198 = vld [vmem:[#allocation12 + $0x168] sm:$0xff]
        %v5199 = vld [vmem:[#allocation12 + $0x170] sm:$0xff]
        %v5200 = vld [vmem:[#allocation12 + $0x178] sm:$0xff]
        %v5201 = vld [vmem:[#allocation12 + $0x180] sm:$0xff]
        %v5202 = vld [vmem:[#allocation12 + $0x188] sm:$0xff]
        %v5203 = vld [vmem:[#allocation12 + $0x190] sm:$0xff]
        %v5204 = vld [vmem:[#allocation12 + $0x198] sm:$0xff]
        %v5205 = vld [vmem:[#allocation12 + $0x1a0] sm:$0xff]
        %v5206 = vld [vmem:[#allocation12 + $0x1a8] sm:$0xff]
        %v5207 = vld [vmem:[#allocation12 + $0x1b0] sm:$0xff]
        %v5208 = vld [vmem:[#allocation12 + $0x1b8] sm:$0xff]
        %v5209 = vld [vmem:[#allocation12 + $0x1c0] sm:$0xff]
        %v5210 = vld [vmem:[#allocation12 + $0x1c8] sm:$0xff]
        %v5211 = vld [vmem:[#allocation12 + $0x1d0] sm:$0xff]
        %v5212 = vld [vmem:[#allocation12 + $0x1d8] sm:$0xff]
        %v5213 = vld [vmem:[#allocation12 + $0x1e0] sm:$0xff]
        %v5214 = vld [vmem:[#allocation12 + $0x1e8] sm:$0xff]
        %v5215 = vld [vmem:[#allocation12 + $0x1f0] sm:$0xff]
        %v5216 = vld [vmem:[#allocation12 + $0x1f8] sm:$0xff]
        %v5217 = vld [vmem:[%s10] sm:$0xf]
        %v5219 = vlaneseq
        %v5220 = vshrl.u32 %v5219, 7
        %v5221 = vsub.s32 0, %v5220
        %v5222 = vrot.slane %v5217, %v5221
        %v5223 = vlaneseq
        %v5224 = vshrl.u32 %v5223, 7
        %v5225 = vsub.s32 1, %v5224
        %v5226 = vrot.slane %v5217, %v5225
        %v5227 = vlaneseq
        %v5228 = vshrl.u32 %v5227, 7
        %v5229 = vsub.s32 2, %v5228
        %v5230 = vrot.slane %v5217, %v5229
        %v5231 = vlaneseq
        %v5232 = vshrl.u32 %v5231, 7
        %v5233 = vsub.s32 3, %v5232
        %v5234 = vrot.slane %v5217, %v5233
        %5239 = vmatprep.subr.mxu0 %v5154
        %5240 = vmatpush1.msra.mxu0 %v5153
        %5241 = vmatprep.subr.mxu0 %v5158
        %5242 = vmatpush1.msra.mxu0 %v5157
        %5243 = vmatprep.subr.mxu0 %v5162
        %5244 = vmatpush1.msra.mxu0 %v5161
        %5245 = vmatprep.subr.mxu0 %v5166
        %5246 = vmatpush1.msra.mxu0 %v5165
        %5247 = vmatprep.subr.mxu0 %v5170
        %5248 = vmatpush1.msra.mxu0 %v5169
        %5249 = vmatprep.subr.mxu0 %v5174
        %5250 = vmatpush1.msra.mxu0 %v5173
        %5251 = vmatprep.subr.mxu0 %v5178
        %5252 = vmatpush1.msra.mxu0 %v5177
        %5253 = vmatprep.subr.mxu0 %v5182
        %5254 = vmatpush1.msra.mxu0 %v5181
        %5255 = vmatprep.subr.mxu0 %v5186
        %5256 = vmatpush1.msra.mxu0 %v5185
        %5257 = vmatprep.subr.mxu0 %v5190
        %5258 = vmatpush1.msra.mxu0 %v5189
        %5259 = vmatprep.subr.mxu0 %v5194
        %5260 = vmatpush1.msra.mxu0 %v5193
        %5261 = vmatprep.subr.mxu0 %v5198
        %5262 = vmatpush1.msra.mxu0 %v5197
        %5263 = vmatprep.subr.mxu0 %v5202
        %5264 = vmatpush1.msra.mxu0 %v5201
        %5265 = vmatprep.subr.mxu0 %v5206
        %5266 = vmatpush1.msra.mxu0 %v5205
        %5267 = vmatprep.subr.mxu0 %v5210
        %5268 = vmatpush1.msra.mxu0 %v5209
        %5269 = vmatprep.subr.mxu0 %v5214
        %5270 = vmatpush1.msra.mxu0 %v5213
        %5271 = vmatprep.subr.mxu0 0.0
        %5272 = vmatpush1.msra.mxu0 0.0
        %5273 = vmatprep.subr.mxu0 0.0
        %5274 = vmatpush1.msra.mxu0 0.0
        %5275 = vmatprep.subr.mxu0 0.0
        %5276 = vmatpush1.msra.mxu0 0.0
        %5277 = vmatprep.subr.mxu0 0.0
        %5278 = vmatpush1.msra.mxu0 0.0
        %5279 = vmatprep.subr.mxu0 0.0
        %5280 = vmatpush1.msra.mxu0 0.0
        %5281 = vmatprep.subr.mxu0 0.0
        %5282 = vmatpush1.msra.mxu0 0.0
        %5283 = vmatprep.subr.mxu0 0.0
        %5284 = vmatpush1.msra.mxu0 0.0
        %5285 = vmatprep.subr.mxu0 0.0
        %5286 = vmatpush1.msra.mxu0 0.0
        %5287 = vmatprep.subr.mxu0 0.0
        %5288 = vmatpush1.msra.mxu0 0.0
        %5289 = vmatprep.subr.mxu0 0.0
        %5290 = vmatpush1.msra.mxu0 0.0
        %5291 = vmatprep.subr.mxu0 0.0
        %5292 = vmatpush1.msra.mxu0 0.0
        %5293 = vmatprep.subr.mxu0 0.0
        %5294 = vmatpush1.msra.mxu0 0.0
        %5295 = vmatprep.subr.mxu0 0.0
        %5296 = vmatpush1.msra.mxu0 0.0
        %5297 = vmatprep.subr.mxu0 0.0
        %5298 = vmatpush1.msra.mxu0 0.0
        %5299 = vmatprep.subr.mxu0 0.0
        %5300 = vmatpush1.msra.mxu0 0.0
        %5301 = vmatprep.subr.mxu0 0.0
        %5302 = vmatpush1.msra.mxu0 0.0
        %5303 = vmatprep.mubr.f32.mxu0 0.0
        %5304 = vmatmul.mubr.f32.gmra.mrb[0].mxu0 %v5137
        %v5305 = vpop.f32.mrb[0].mxu0
        %v5306 = vadd.f32 %v5222, %v5305
        %v5307 = vpop.f32.mrb[0].mxu0
        %v5308 = vadd.f32 %v5226, %v5307
        %5309 = vmatprep.mubr.f32.mxu0 0.0
        %5310 = vmatmul.mubr.f32.gmra.mrb[0].mxu0 %v5138
        %v5311 = vpop.f32.mrb[0].mxu0
        %v5312 = vadd.f32 %v5222, %v5311
        %v5313 = vpop.f32.mrb[0].mxu0
        %v5314 = vadd.f32 %v5226, %v5313
        %5315 = vmatprep.mubr.f32.mxu0 0.0
        %5316 = vmatmul.mubr.f32.gmra.mrb[0].mxu0 %v5139
        %v5317 = vpop.f32.mrb[0].mxu0
        %v5318 = vadd.f32 %v5222, %v5317
        %v5319 = vpop.f32.mrb[0].mxu0
        %v5320 = vadd.f32 %v5226, %v5319
        %5321 = vmatprep.mubr.f32.mxu0 0.0
        %5322 = vmatmul.mubr.f32.gmra.mrb[0].mxu0 %v5140
        %v5323 = vpop.f32.mrb[0].mxu0
        %v5324 = vadd.f32 %v5222, %v5323
        %v5325 = vpop.f32.mrb[0].mxu0
        %v5326 = vadd.f32 %v5226, %v5325
        %5327 = vmatprep.mubr.f32.mxu0 0.0
        %5328 = vmatmul.mubr.f32.gmra.mrb[0].mxu0 %v5141
        %v5329 = vpop.f32.mrb[0].mxu0
        %v5330 = vadd.f32 %v5222, %v5329
        %v5331 = vpop.f32.mrb[0].mxu0
        %v5332 = vadd.f32 %v5226, %v5331
        %5333 = vmatprep.mubr.f32.mxu0 0.0
        %5334 = vmatmul.mubr.f32.gmra.mrb[0].mxu0 %v5142
        %v5335 = vpop.f32.mrb[0].mxu0
        %v5336 = vadd.f32 %v5222, %v5335
        %v5337 = vpop.f32.mrb[0].mxu0
        %v5338 = vadd.f32 %v5226, %v5337
        %5339 = vmatprep.mubr.f32.mxu0 0.0
        %5340 = vmatmul.mubr.f32.gmra.mrb[0].mxu0 %v5143
        %v5341 = vpop.f32.mrb[0].mxu0
        %v5342 = vadd.f32 %v5222, %v5341
        %v5343 = vpop.f32.mrb[0].mxu0
        %v5344 = vadd.f32 %v5226, %v5343
        %5345 = vmatprep.mubr.f32.mxu0 0.0
        %5346 = vmatmul.mubr.f32.gmra.mrb[0].mxu0 %v5144
        %v5347 = vpop.f32.mrb[0].mxu0
        %v5348 = vadd.f32 %v5222, %v5347
        %v5349 = vpop.f32.mrb[0].mxu0
        %v5350 = vadd.f32 %v5226, %v5349
        %5351 = vmatprep.mubr.f32.mxu0 0.0
        %5352 = vmatmul.mubr.f32.gmra.mrb[0].mxu0 %v5145
        %v5353 = vpop.f32.mrb[0].mxu0
        %v5354 = vadd.f32 %v5222, %v5353
        %v5355 = vpop.f32.mrb[0].mxu0
        %v5356 = vadd.f32 %v5226, %v5355
        %5357 = vmatprep.mubr.f32.mxu0 0.0
        %5358 = vmatmul.mubr.f32.gmra.mrb[0].mxu0 %v5146
        %v5359 = vpop.f32.mrb[0].mxu0
        %v5360 = vadd.f32 %v5222, %v5359
        %v5361 = vpop.f32.mrb[0].mxu0
        %v5362 = vadd.f32 %v5226, %v5361
        %5363 = vmatprep.mubr.f32.mxu0 0.0
        %5364 = vmatmul.mubr.f32.gmra.mrb[0].mxu0 %v5147
        %v5365 = vpop.f32.mrb[0].mxu0
        %v5366 = vadd.f32 %v5222, %v5365
        %v5367 = vpop.f32.mrb[0].mxu0
        %v5368 = vadd.f32 %v5226, %v5367
        %5369 = vmatprep.mubr.f32.mxu0 0.0
        %5370 = vmatmul.mubr.f32.gmra.mrb[0].mxu0 %v5148
        %v5371 = vpop.f32.mrb[0].mxu0
        %v5372 = vadd.f32 %v5222, %v5371
        %v5373 = vpop.f32.mrb[0].mxu0
        %v5374 = vadd.f32 %v5226, %v5373
        %5375 = vmatprep.mubr.f32.mxu0 0.0
        %5376 = vmatmul.mubr.f32.gmra.mrb[0].mxu0 %v5149
        %v5377 = vpop.f32.mrb[0].mxu0
        %v5378 = vadd.f32 %v5222, %v5377
        %v5379 = vpop.f32.mrb[0].mxu0
        %v5380 = vadd.f32 %v5226, %v5379
        %5381 = vmatprep.mubr.f32.mxu0 0.0
        %5382 = vmatmul.mubr.f32.gmra.mrb[0].mxu0 %v5150
        %v5383 = vpop.f32.mrb[0].mxu0
        %v5384 = vadd.f32 %v5222, %v5383
        %v5385 = vpop.f32.mrb[0].mxu0
        %v5386 = vadd.f32 %v5226, %v5385
        %5387 = vmatprep.mubr.f32.mxu0 0.0
        %5388 = vmatmul.mubr.f32.gmra.mrb[0].mxu0 %v5151
        %v5389 = vpop.f32.mrb[0].mxu0
        %v5390 = vadd.f32 %v5222, %v5389
        %v5391 = vpop.f32.mrb[0].mxu0
        %v5392 = vadd.f32 %v5226, %v5391
        %5393 = vmatprep.mubr.f32.mxu0 0.0
        %5394 = vmatmul.mubr.f32.gmra.mrb[0].mxu0 %v5152
        %v5395 = vpop.f32.mrb[0].mxu0
        %v5396 = vadd.f32 %v5222, %v5395
        %v5397 = vpop.f32.mrb[0].mxu0
        %v5398 = vadd.f32 %v5226, %v5397
        %5399 = vdwg.mxu0
        %5400 = vmatprep.subr.mxu0 %v5156
        %5401 = vmatpush1.msra.mxu0 %v5155
        %5402 = vmatprep.subr.mxu0 %v5160
        %5403 = vmatpush1.msra.mxu0 %v5159
        %5404 = vmatprep.subr.mxu0 %v5164
        %5405 = vmatpush1.msra.mxu0 %v5163
        %5406 = vmatprep.subr.mxu0 %v5168
        %5407 = vmatpush1.msra.mxu0 %v5167
        %5408 = vmatprep.subr.mxu0 %v5172
        %5409 = vmatpush1.msra.mxu0 %v5171
        %5410 = vmatprep.subr.mxu0 %v5176
        %5411 = vmatpush1.msra.mxu0 %v5175
        %5412 = vmatprep.subr.mxu0 %v5180
        %5413 = vmatpush1.msra.mxu0 %v5179
        %5414 = vmatprep.subr.mxu0 %v5184
        %5415 = vmatpush1.msra.mxu0 %v5183
        %5416 = vmatprep.subr.mxu0 %v5188
        %5417 = vmatpush1.msra.mxu0 %v5187
        %5418 = vmatprep.subr.mxu0 %v5192
        %5419 = vmatpush1.msra.mxu0 %v5191
        %5420 = vmatprep.subr.mxu0 %v5196
        %5421 = vmatpush1.msra.mxu0 %v5195
        %5422 = vmatprep.subr.mxu0 %v5200
        %5423 = vmatpush1.msra.mxu0 %v5199
        %5424 = vmatprep.subr.mxu0 %v5204
        %5425 = vmatpush1.msra.mxu0 %v5203
        %5426 = vmatprep.subr.mxu0 %v5208
        %5427 = vmatpush1.msra.mxu0 %v5207
        %5428 = vmatprep.subr.mxu0 %v5212
        %5429 = vmatpush1.msra.mxu0 %v5211
        %5430 = vmatprep.subr.mxu0 %v5216
        %5431 = vmatpush1.msra.mxu0 %v5215
        %5432 = vmatprep.subr.mxu0 0.0
        %5433 = vmatpush1.msra.mxu0 0.0
        %5434 = vmatprep.subr.mxu0 0.0
        %5435 = vmatpush1.msra.mxu0 0.0
        %5436 = vmatprep.subr.mxu0 0.0
        %5437 = vmatpush1.msra.mxu0 0.0
        %5438 = vmatprep.subr.mxu0 0.0
        %5439 = vmatpush1.msra.mxu0 0.0
        %5440 = vmatprep.subr.mxu0 0.0
        %5441 = vmatpush1.msra.mxu0 0.0
        %5442 = vmatprep.subr.mxu0 0.0
        %5443 = vmatpush1.msra.mxu0 0.0
        %5444 = vmatprep.subr.mxu0 0.0
        %5445 = vmatpush1.msra.mxu0 0.0
        %5446 = vmatprep.subr.mxu0 0.0
        %5447 = vmatpush1.msra.mxu0 0.0
        %5448 = vmatprep.subr.mxu0 0.0
        %5449 = vmatpush1.msra.mxu0 0.0
        %5450 = vmatprep.subr.mxu0 0.0
        %5451 = vmatpush1.msra.mxu0 0.0
        %5452 = vmatprep.subr.mxu0 0.0
        %5453 = vmatpush1.msra.mxu0 0.0
        %5454 = vmatprep.subr.mxu0 0.0
        %5455 = vmatpush1.msra.mxu0 0.0
        %5456 = vmatprep.subr.mxu0 0.0
        %5457 = vmatpush1.msra.mxu0 0.0
        %5458 = vmatprep.subr.mxu0 0.0
        %5459 = vmatpush1.msra.mxu0 0.0
        %5460 = vmatprep.subr.mxu0 0.0
        %5461 = vmatpush1.msra.mxu0 0.0
        %5462 = vmatprep.subr.mxu0 0.0
        %5463 = vmatpush1.msra.mxu0 0.0
        %5464 = vmatprep.mubr.f32.mxu0 0.0
        %5465 = vmatmul.mubr.f32.gmra.mrb[0].mxu0 %v5137
        %v5466 = vpop.f32.mrb[0].mxu0
        %v5467 = vadd.f32 %v5230, %v5466
        %v5468 = vpop.f32.mrb[0].mxu0
        %v5469 = vadd.f32 %v5234, %v5468
        %5470 = vmatprep.mubr.f32.mxu0 0.0
        %5471 = vmatmul.mubr.f32.gmra.mrb[0].mxu0 %v5138
        %v5472 = vpop.f32.mrb[0].mxu0
        %v5473 = vadd.f32 %v5230, %v5472
        %v5474 = vpop.f32.mrb[0].mxu0
        %v5475 = vadd.f32 %v5234, %v5474
        %5476 = vmatprep.mubr.f32.mxu0 0.0
        %5477 = vmatmul.mubr.f32.gmra.mrb[0].mxu0 %v5139
        %v5478 = vpop.f32.mrb[0].mxu0
        %v5479 = vadd.f32 %v5230, %v5478
        %v5480 = vpop.f32.mrb[0].mxu0
        %v5481 = vadd.f32 %v5234, %v5480
        %5482 = vmatprep.mubr.f32.mxu0 0.0
        %5483 = vmatmul.mubr.f32.gmra.mrb[0].mxu0 %v5140
        %v5484 = vpop.f32.mrb[0].mxu0
        %v5485 = vadd.f32 %v5230, %v5484
        %v5486 = vpop.f32.mrb[0].mxu0
        %v5487 = vadd.f32 %v5234, %v5486
        %5488 = vmatprep.mubr.f32.mxu0 0.0
        %5489 = vmatmul.mubr.f32.gmra.mrb[0].mxu0 %v5141
        %v5490 = vpop.f32.mrb[0].mxu0
        %v5491 = vadd.f32 %v5230, %v5490
        %v5492 = vpop.f32.mrb[0].mxu0
        %v5493 = vadd.f32 %v5234, %v5492
        %5494 = vmatprep.mubr.f32.mxu0 0.0
        %5495 = vmatmul.mubr.f32.gmra.mrb[0].mxu0 %v5142
        %v5496 = vpop.f32.mrb[0].mxu0
        %v5497 = vadd.f32 %v5230, %v5496
        %v5498 = vpop.f32.mrb[0].mxu0
        %v5499 = vadd.f32 %v5234, %v5498
        %5500 = vmatprep.mubr.f32.mxu0 0.0
        %5501 = vmatmul.mubr.f32.gmra.mrb[0].mxu0 %v5143
        %v5502 = vpop.f32.mrb[0].mxu0
        %v5503 = vadd.f32 %v5230, %v5502
        %v5504 = vpop.f32.mrb[0].mxu0
        %v5505 = vadd.f32 %v5234, %v5504
        %5506 = vmatprep.mubr.f32.mxu0 0.0
        %5507 = vmatmul.mubr.f32.gmra.mrb[0].mxu0 %v5144
        %v5508 = vpop.f32.mrb[0].mxu0
        %v5509 = vadd.f32 %v5230, %v5508
        %v5510 = vpop.f32.mrb[0].mxu0
        %v5511 = vadd.f32 %v5234, %v5510
        %5512 = vmatprep.mubr.f32.mxu0 0.0
        %5513 = vmatmul.mubr.f32.gmra.mrb[0].mxu0 %v5145
        %v5514 = vpop.f32.mrb[0].mxu0
        %v5515 = vadd.f32 %v5230, %v5514
        %v5516 = vpop.f32.mrb[0].mxu0
        %v5517 = vadd.f32 %v5234, %v5516
        %5518 = vmatprep.mubr.f32.mxu0 0.0
        %5519 = vmatmul.mubr.f32.gmra.mrb[0].mxu0 %v5146
        %v5520 = vpop.f32.mrb[0].mxu0
        %v5521 = vadd.f32 %v5230, %v5520
        %v5522 = vpop.f32.mrb[0].mxu0
        %v5523 = vadd.f32 %v5234, %v5522
        %5524 = vmatprep.mubr.f32.mxu0 0.0
        %5525 = vmatmul.mubr.f32.gmra.mrb[0].mxu0 %v5147
        %v5526 = vpop.f32.mrb[0].mxu0
        %v5527 = vadd.f32 %v5230, %v5526
        %v5528 = vpop.f32.mrb[0].mxu0
        %v5529 = vadd.f32 %v5234, %v5528
        %5530 = vmatprep.mubr.f32.mxu0 0.0
        %5531 = vmatmul.mubr.f32.gmra.mrb[0].mxu0 %v5148
        %v5532 = vpop.f32.mrb[0].mxu0
        %v5533 = vadd.f32 %v5230, %v5532
        %v5534 = vpop.f32.mrb[0].mxu0
        %v5535 = vadd.f32 %v5234, %v5534
        %5536 = vmatprep.mubr.f32.mxu0 0.0
        %5537 = vmatmul.mubr.f32.gmra.mrb[0].mxu0 %v5149
        %v5538 = vpop.f32.mrb[0].mxu0
        %v5539 = vadd.f32 %v5230, %v5538
        %v5540 = vpop.f32.mrb[0].mxu0
        %v5541 = vadd.f32 %v5234, %v5540
        %5542 = vmatprep.mubr.f32.mxu0 0.0
        %5543 = vmatmul.mubr.f32.gmra.mrb[0].mxu0 %v5150
        %v5544 = vpop.f32.mrb[0].mxu0
        %v5545 = vadd.f32 %v5230, %v5544
        %v5546 = vpop.f32.mrb[0].mxu0
        %v5547 = vadd.f32 %v5234, %v5546
        %5548 = vmatprep.mubr.f32.mxu0 0.0
        %5549 = vmatmul.mubr.f32.gmra.mrb[0].mxu0 %v5151
        %v5550 = vpop.f32.mrb[0].mxu0
        %v5551 = vadd.f32 %v5230, %v5550
        %v5552 = vpop.f32.mrb[0].mxu0
        %v5553 = vadd.f32 %v5234, %v5552
        %5554 = vmatprep.mubr.f32.mxu0 0.0
        %5555 = vmatmul.mubr.f32.gmra.mrb[0].mxu0 %v5152
        %v5556 = vpop.f32.mrb[0].mxu0
        %v5557 = vadd.f32 %v5230, %v5556
        %v5558 = vpop.f32.mrb[0].mxu0
        %v5559 = vadd.f32 %v5234, %v5558
        %5560 = vdwg.mxu0
        %v5561 = vmax.f32 %v5306, 0.0
        %v5562 = vmax.f32 %v5308, 0.0
        %v5563 = vmax.f32 %v5467, 0.0
        %v5564 = vmax.f32 %v5469, 0.0
        %v5565 = vmax.f32 %v5312, 0.0
        %v5566 = vmax.f32 %v5314, 0.0
        %v5567 = vmax.f32 %v5473, 0.0
        %v5568 = vmax.f32 %v5475, 0.0
        %v5569 = vmax.f32 %v5318, 0.0
        %v5570 = vmax.f32 %v5320, 0.0
        %v5571 = vmax.f32 %v5479, 0.0
        %v5572 = vmax.f32 %v5481, 0.0
        %v5573 = vmax.f32 %v5324, 0.0
        %v5574 = vmax.f32 %v5326, 0.0
        %v5575 = vmax.f32 %v5485, 0.0
        %v5576 = vmax.f32 %v5487, 0.0
        %v5577 = vmax.f32 %v5330, 0.0
        %v5578 = vmax.f32 %v5332, 0.0
        %v5579 = vmax.f32 %v5491, 0.0
        %v5580 = vmax.f32 %v5493, 0.0
        %v5581 = vmax.f32 %v5336, 0.0
        %v5582 = vmax.f32 %v5338, 0.0
        %v5583 = vmax.f32 %v5497, 0.0
        %v5584 = vmax.f32 %v5499, 0.0
        %v5585 = vmax.f32 %v5342, 0.0
        %v5586 = vmax.f32 %v5344, 0.0
        %v5587 = vmax.f32 %v5503, 0.0
        %v5588 = vmax.f32 %v5505, 0.0
        %v5589 = vmax.f32 %v5348, 0.0
        %v5590 = vmax.f32 %v5350, 0.0
        %v5591 = vmax.f32 %v5509, 0.0
        %v5592 = vmax.f32 %v5511, 0.0
        %v5593 = vmax.f32 %v5354, 0.0
        %v5594 = vmax.f32 %v5356, 0.0
        %v5595 = vmax.f32 %v5515, 0.0
        %v5596 = vmax.f32 %v5517, 0.0
        %v5597 = vmax.f32 %v5360, 0.0
        %v5598 = vmax.f32 %v5362, 0.0
        %v5599 = vmax.f32 %v5521, 0.0
        %v5600 = vmax.f32 %v5523, 0.0
        %v5601 = vmax.f32 %v5366, 0.0
        %v5602 = vmax.f32 %v5368, 0.0
        %v5603 = vmax.f32 %v5527, 0.0
        %v5604 = vmax.f32 %v5529, 0.0
        %v5605 = vmax.f32 %v5372, 0.0
        %v5606 = vmax.f32 %v5374, 0.0
        %v5607 = vmax.f32 %v5533, 0.0
        %v5608 = vmax.f32 %v5535, 0.0
        %v5609 = vmax.f32 %v5378, 0.0
        %v5610 = vmax.f32 %v5380, 0.0
        %v5611 = vmax.f32 %v5539, 0.0
        %v5612 = vmax.f32 %v5541, 0.0
        %v5613 = vmax.f32 %v5384, 0.0
        %v5614 = vmax.f32 %v5386, 0.0
        %v5615 = vmax.f32 %v5545, 0.0
        %v5616 = vmax.f32 %v5547, 0.0
        %v5617 = vmax.f32 %v5390, 0.0
        %v5618 = vmax.f32 %v5392, 0.0
        %v5619 = vmax.f32 %v5551, 0.0
        %v5620 = vmax.f32 %v5553, 0.0
        %v5621 = vmax.f32 %v5396, 0.0
        %v5622 = vmax.f32 %v5398, 0.0
        %v5623 = vmax.f32 %v5557, 0.0
        %v5624 = vmax.f32 %v5559, 0.0
        %v5625 = vld [vmem:[#allocation14] sm:$0xff]
        %v5626 = vld [vmem:[#allocation14 + $0x8] sm:$0xff]
        %v5627 = vld [vmem:[#allocation14 + $0x10] sm:$0xff]
        %v5628 = vld [vmem:[#allocation14 + $0x18] sm:$0xff]
        %v5629 = vld [vmem:[#allocation14 + $0x20] sm:$0xff]
        %v5630 = vld [vmem:[#allocation14 + $0x28] sm:$0xff]
        %v5631 = vld [vmem:[#allocation14 + $0x30] sm:$0xff]
        %v5632 = vld [vmem:[#allocation14 + $0x38] sm:$0xff]
        %v5633 = vld [vmem:[#allocation14 + $0x40] sm:$0xff]
        %v5634 = vld [vmem:[#allocation14 + $0x48] sm:$0xff]
        %v5635 = vld [vmem:[#allocation14 + $0x50] sm:$0xff]
        %v5636 = vld [vmem:[#allocation14 + $0x58] sm:$0xff]
        %v5637 = vld [vmem:[#allocation14 + $0x60] sm:$0xff]
        %v5638 = vld [vmem:[#allocation14 + $0x68] sm:$0xff]
        %v5639 = vld [vmem:[#allocation14 + $0x70] sm:$0xff]
        %v5640 = vld [vmem:[#allocation14 + $0x78] sm:$0xff]
        %v5641 = vld [vmem:[#allocation14 + $0x80] sm:$0xff]
        %v5642 = vld [vmem:[#allocation14 + $0x88] sm:$0xff]
        %v5643 = vld [vmem:[#allocation14 + $0x90] sm:$0xff]
        %v5644 = vld [vmem:[#allocation14 + $0x98] sm:$0xff]
        %v5645 = vld [vmem:[#allocation14 + $0xa0] sm:$0xff]
        %v5646 = vld [vmem:[#allocation14 + $0xa8] sm:$0xff]
        %v5647 = vld [vmem:[#allocation14 + $0xb0] sm:$0xff]
        %v5648 = vld [vmem:[#allocation14 + $0xb8] sm:$0xff]
        %v5649 = vld [vmem:[#allocation14 + $0xc0] sm:$0xff]
        %v5650 = vld [vmem:[#allocation14 + $0xc8] sm:$0xff]
        %v5651 = vld [vmem:[#allocation14 + $0xd0] sm:$0xff]
        %v5652 = vld [vmem:[#allocation14 + $0xd8] sm:$0xff]
        %v5653 = vld [vmem:[#allocation14 + $0xe0] sm:$0xff]
        %v5654 = vld [vmem:[#allocation14 + $0xe8] sm:$0xff]
        %v5655 = vld [vmem:[#allocation14 + $0xf0] sm:$0xff]
        %v5656 = vld [vmem:[#allocation14 + $0xf8] sm:$0xff]
        %v5657 = vld [vmem:[#allocation14 + $0x100] sm:$0xff]
        %v5658 = vld [vmem:[#allocation14 + $0x108] sm:$0xff]
        %v5659 = vld [vmem:[#allocation14 + $0x110] sm:$0xff]
        %v5660 = vld [vmem:[#allocation14 + $0x118] sm:$0xff]
        %v5661 = vld [vmem:[#allocation14 + $0x120] sm:$0xff]
        %v5662 = vld [vmem:[#allocation14 + $0x128] sm:$0xff]
        %v5663 = vld [vmem:[#allocation14 + $0x130] sm:$0xff]
        %v5664 = vld [vmem:[#allocation14 + $0x138] sm:$0xff]
        %v5665 = vld [vmem:[#allocation14 + $0x140] sm:$0xff]
        %v5666 = vld [vmem:[#allocation14 + $0x148] sm:$0xff]
        %v5667 = vld [vmem:[#allocation14 + $0x150] sm:$0xff]
        %v5668 = vld [vmem:[#allocation14 + $0x158] sm:$0xff]
        %v5669 = vld [vmem:[#allocation14 + $0x160] sm:$0xff]
        %v5670 = vld [vmem:[#allocation14 + $0x168] sm:$0xff]
        %v5671 = vld [vmem:[#allocation14 + $0x170] sm:$0xff]
        %v5672 = vld [vmem:[#allocation14 + $0x178] sm:$0xff]
        %v5673 = vld [vmem:[#allocation14 + $0x180] sm:$0xff]
        %v5674 = vld [vmem:[#allocation14 + $0x188] sm:$0xff]
        %v5675 = vld [vmem:[#allocation14 + $0x190] sm:$0xff]
        %v5676 = vld [vmem:[#allocation14 + $0x198] sm:$0xff]
        %v5677 = vld [vmem:[#allocation14 + $0x1a0] sm:$0xff]
        %v5678 = vld [vmem:[#allocation14 + $0x1a8] sm:$0xff]
        %v5679 = vld [vmem:[#allocation14 + $0x1b0] sm:$0xff]
        %v5680 = vld [vmem:[#allocation14 + $0x1b8] sm:$0xff]
        %v5681 = vld [vmem:[#allocation14 + $0x1c0] sm:$0xff]
        %v5682 = vld [vmem:[#allocation14 + $0x1c8] sm:$0xff]
        %v5683 = vld [vmem:[#allocation14 + $0x1d0] sm:$0xff]
        %v5684 = vld [vmem:[#allocation14 + $0x1d8] sm:$0xff]
        %v5685 = vld [vmem:[#allocation14 + $0x1e0] sm:$0xff]
        %v5686 = vld [vmem:[#allocation14 + $0x1e8] sm:$0xff]
        %v5687 = vld [vmem:[#allocation14 + $0x1f0] sm:$0xff]
        %v5688 = vld [vmem:[#allocation14 + $0x1f8] sm:$0xff]
        %v5689 = vld [vmem:[%s12] sm:$0x1]
        %v5691 = vlaneseq
        %v5692 = vshrl.u32 %v5691, 7
        %v5693 = vsub.s32 0, %v5692
        %v5694 = vrot.slane %v5689, %v5693
        %5696 = vmatprep.subr.mxu0 0.0
        %5697 = vmatpush1.msra.mxu0 %v5625
        %5698 = vmatprep.subr.mxu0 0.0
        %5699 = vmatpush1.msra.mxu0 %v5626
        %5700 = vmatprep.subr.mxu0 0.0
        %5701 = vmatpush1.msra.mxu0 %v5627
        %5702 = vmatprep.subr.mxu0 0.0
        %5703 = vmatpush1.msra.mxu0 %v5628
        %5704 = vmatprep.subr.mxu0 0.0
        %5705 = vmatpush1.msra.mxu0 %v5629
        %5706 = vmatprep.subr.mxu0 0.0
        %5707 = vmatpush1.msra.mxu0 %v5630
        %5708 = vmatprep.subr.mxu0 0.0
        %5709 = vmatpush1.msra.mxu0 %v5631
        %5710 = vmatprep.subr.mxu0 0.0
        %5711 = vmatpush1.msra.mxu0 %v5632
        %5712 = vmatprep.subr.mxu0 0.0
        %5713 = vmatpush1.msra.mxu0 %v5633
        %5714 = vmatprep.subr.mxu0 0.0
        %5715 = vmatpush1.msra.mxu0 %v5634
        %5716 = vmatprep.subr.mxu0 0.0
        %5717 = vmatpush1.msra.mxu0 %v5635
        %5718 = vmatprep.subr.mxu0 0.0
        %5719 = vmatpush1.msra.mxu0 %v5636
        %5720 = vmatprep.subr.mxu0 0.0
        %5721 = vmatpush1.msra.mxu0 %v5637
        %5722 = vmatprep.subr.mxu0 0.0
        %5723 = vmatpush1.msra.mxu0 %v5638
        %5724 = vmatprep.subr.mxu0 0.0
        %5725 = vmatpush1.msra.mxu0 %v5639
        %5726 = vmatprep.subr.mxu0 0.0
        %5727 = vmatpush1.msra.mxu0 %v5640
        %5728 = vmatprep.subr.mxu0 0.0
        %5729 = vmatpush1.msra.mxu0 %v5641
        %5730 = vmatprep.subr.mxu0 0.0
        %5731 = vmatpush1.msra.mxu0 %v5642
        %5732 = vmatprep.subr.mxu0 0.0
        %5733 = vmatpush1.msra.mxu0 %v5643
        %5734 = vmatprep.subr.mxu0 0.0
        %5735 = vmatpush1.msra.mxu0 %v5644
        %5736 = vmatprep.subr.mxu0 0.0
        %5737 = vmatpush1.msra.mxu0 %v5645
        %5738 = vmatprep.subr.mxu0 0.0
        %5739 = vmatpush1.msra.mxu0 %v5646
        %5740 = vmatprep.subr.mxu0 0.0
        %5741 = vmatpush1.msra.mxu0 %v5647
        %5742 = vmatprep.subr.mxu0 0.0
        %5743 = vmatpush1.msra.mxu0 %v5648
        %5744 = vmatprep.subr.mxu0 0.0
        %5745 = vmatpush1.msra.mxu0 %v5649
        %5746 = vmatprep.subr.mxu0 0.0
        %5747 = vmatpush1.msra.mxu0 %v5650
        %5748 = vmatprep.subr.mxu0 0.0
        %5749 = vmatpush1.msra.mxu0 %v5651
        %5750 = vmatprep.subr.mxu0 0.0
        %5751 = vmatpush1.msra.mxu0 %v5652
        %5752 = vmatprep.subr.mxu0 0.0
        %5753 = vmatpush1.msra.mxu0 %v5653
        %5754 = vmatprep.subr.mxu0 0.0
        %5755 = vmatpush1.msra.mxu0 %v5654
        %5756 = vmatprep.subr.mxu0 0.0
        %5757 = vmatpush1.msra.mxu0 %v5655
        %5758 = vmatprep.subr.mxu0 0.0
        %5759 = vmatpush1.msra.mxu0 %v5656
        %5760 = vmatprep.mubr.f32.mxu0 %v5562
        %5761 = vmatmul.mubr.f32.gmra.mrb[0].mxu0 %v5561
        %v5762 = vpop.f32.mrb[0].mxu0
        %v5763 = vadd.f32 %v5694, %v5762
        %v5764 = vpop.f32.mrb[0].mxu0
        %5765 = vmatprep.mubr.f32.mxu0 %v5566
        %5766 = vmatmul.mubr.f32.gmra.mrb[0].mxu0 %v5565
        %v5767 = vpop.f32.mrb[0].mxu0
        %v5768 = vadd.f32 %v5694, %v5767
        %v5769 = vpop.f32.mrb[0].mxu0
        %5770 = vmatprep.mubr.f32.mxu0 %v5570
        %5771 = vmatmul.mubr.f32.gmra.mrb[0].mxu0 %v5569
        %v5772 = vpop.f32.mrb[0].mxu0
        %v5773 = vadd.f32 %v5694, %v5772
        %v5774 = vpop.f32.mrb[0].mxu0
        %5775 = vmatprep.mubr.f32.mxu0 %v5574
        %5776 = vmatmul.mubr.f32.gmra.mrb[0].mxu0 %v5573
        %v5777 = vpop.f32.mrb[0].mxu0
        %v5778 = vadd.f32 %v5694, %v5777
        %v5779 = vpop.f32.mrb[0].mxu0
        %5780 = vmatprep.mubr.f32.mxu0 %v5578
        %5781 = vmatmul.mubr.f32.gmra.mrb[0].mxu0 %v5577
        %v5782 = vpop.f32.mrb[0].mxu0
        %v5783 = vadd.f32 %v5694, %v5782
        %v5784 = vpop.f32.mrb[0].mxu0
        %5785 = vmatprep.mubr.f32.mxu0 %v5582
        %5786 = vmatmul.mubr.f32.gmra.mrb[0].mxu0 %v5581
        %v5787 = vpop.f32.mrb[0].mxu0
        %v5788 = vadd.f32 %v5694, %v5787
        %v5789 = vpop.f32.mrb[0].mxu0
        %5790 = vmatprep.mubr.f32.mxu0 %v5586
        %5791 = vmatmul.mubr.f32.gmra.mrb[0].mxu0 %v5585
        %v5792 = vpop.f32.mrb[0].mxu0
        %v5793 = vadd.f32 %v5694, %v5792
        %v5794 = vpop.f32.mrb[0].mxu0
        %5795 = vmatprep.mubr.f32.mxu0 %v5590
        %5796 = vmatmul.mubr.f32.gmra.mrb[0].mxu0 %v5589
        %v5797 = vpop.f32.mrb[0].mxu0
        %v5798 = vadd.f32 %v5694, %v5797
        %v5799 = vpop.f32.mrb[0].mxu0
        %5800 = vmatprep.mubr.f32.mxu0 %v5594
        %5801 = vmatmul.mubr.f32.gmra.mrb[0].mxu0 %v5593
        %v5802 = vpop.f32.mrb[0].mxu0
        %v5803 = vadd.f32 %v5694, %v5802
        %v5804 = vpop.f32.mrb[0].mxu0
        %5805 = vmatprep.mubr.f32.mxu0 %v5598
        %5806 = vmatmul.mubr.f32.gmra.mrb[0].mxu0 %v5597
        %v5807 = vpop.f32.mrb[0].mxu0
        %v5808 = vadd.f32 %v5694, %v5807
        %v5809 = vpop.f32.mrb[0].mxu0
        %5810 = vmatprep.mubr.f32.mxu0 %v5602
        %5811 = vmatmul.mubr.f32.gmra.mrb[0].mxu0 %v5601
        %v5812 = vpop.f32.mrb[0].mxu0
        %v5813 = vadd.f32 %v5694, %v5812
        %v5814 = vpop.f32.mrb[0].mxu0
        %5815 = vmatprep.mubr.f32.mxu0 %v5606
        %5816 = vmatmul.mubr.f32.gmra.mrb[0].mxu0 %v5605
        %v5817 = vpop.f32.mrb[0].mxu0
        %v5818 = vadd.f32 %v5694, %v5817
        %v5819 = vpop.f32.mrb[0].mxu0
        %5820 = vmatprep.mubr.f32.mxu0 %v5610
        %5821 = vmatmul.mubr.f32.gmra.mrb[0].mxu0 %v5609
        %v5822 = vpop.f32.mrb[0].mxu0
        %v5823 = vadd.f32 %v5694, %v5822
        %v5824 = vpop.f32.mrb[0].mxu0
        %5825 = vmatprep.mubr.f32.mxu0 %v5614
        %5826 = vmatmul.mubr.f32.gmra.mrb[0].mxu0 %v5613
        %v5827 = vpop.f32.mrb[0].mxu0
        %v5828 = vadd.f32 %v5694, %v5827
        %v5829 = vpop.f32.mrb[0].mxu0
        %5830 = vmatprep.mubr.f32.mxu0 %v5618
        %5831 = vmatmul.mubr.f32.gmra.mrb[0].mxu0 %v5617
        %v5832 = vpop.f32.mrb[0].mxu0
        %v5833 = vadd.f32 %v5694, %v5832
        %v5834 = vpop.f32.mrb[0].mxu0
        %5835 = vmatprep.mubr.f32.mxu0 %v5622
        %5836 = vmatmul.mubr.f32.gmra.mrb[0].mxu0 %v5621
        %v5837 = vpop.f32.mrb[0].mxu0
        %v5838 = vadd.f32 %v5694, %v5837
        %v5839 = vpop.f32.mrb[0].mxu0
        %5840 = vdwg.mxu0
        %5841 = vmatprep.subr.mxu0 0.0
        %5842 = vmatpush1.msra.mxu0 %v5657
        %5843 = vmatprep.subr.mxu0 0.0
        %5844 = vmatpush1.msra.mxu0 %v5658
        %5845 = vmatprep.subr.mxu0 0.0
        %5846 = vmatpush1.msra.mxu0 %v5659
        %5847 = vmatprep.subr.mxu0 0.0
        %5848 = vmatpush1.msra.mxu0 %v5660
        %5849 = vmatprep.subr.mxu0 0.0
        %5850 = vmatpush1.msra.mxu0 %v5661
        %5851 = vmatprep.subr.mxu0 0.0
        %5852 = vmatpush1.msra.mxu0 %v5662
        %5853 = vmatprep.subr.mxu0 0.0
        %5854 = vmatpush1.msra.mxu0 %v5663
        %5855 = vmatprep.subr.mxu0 0.0
        %5856 = vmatpush1.msra.mxu0 %v5664
        %5857 = vmatprep.subr.mxu0 0.0
        %5858 = vmatpush1.msra.mxu0 %v5665
        %5859 = vmatprep.subr.mxu0 0.0
        %5860 = vmatpush1.msra.mxu0 %v5666
        %5861 = vmatprep.subr.mxu0 0.0
        %5862 = vmatpush1.msra.mxu0 %v5667
        %5863 = vmatprep.subr.mxu0 0.0
        %5864 = vmatpush1.msra.mxu0 %v5668
        %5865 = vmatprep.subr.mxu0 0.0
        %5866 = vmatpush1.msra.mxu0 %v5669
        %5867 = vmatprep.subr.mxu0 0.0
        %5868 = vmatpush1.msra.mxu0 %v5670
        %5869 = vmatprep.subr.mxu0 0.0
        %5870 = vmatpush1.msra.mxu0 %v5671
        %5871 = vmatprep.subr.mxu0 0.0
        %5872 = vmatpush1.msra.mxu0 %v5672
        %5873 = vmatprep.subr.mxu0 0.0
        %5874 = vmatpush1.msra.mxu0 %v5673
        %5875 = vmatprep.subr.mxu0 0.0
        %5876 = vmatpush1.msra.mxu0 %v5674
        %5877 = vmatprep.subr.mxu0 0.0
        %5878 = vmatpush1.msra.mxu0 %v5675
        %5879 = vmatprep.subr.mxu0 0.0
        %5880 = vmatpush1.msra.mxu0 %v5676
        %5881 = vmatprep.subr.mxu0 0.0
        %5882 = vmatpush1.msra.mxu0 %v5677
        %5883 = vmatprep.subr.mxu0 0.0
        %5884 = vmatpush1.msra.mxu0 %v5678
        %5885 = vmatprep.subr.mxu0 0.0
        %5886 = vmatpush1.msra.mxu0 %v5679
        %5887 = vmatprep.subr.mxu0 0.0
        %5888 = vmatpush1.msra.mxu0 %v5680
        %5889 = vmatprep.subr.mxu0 0.0
        %5890 = vmatpush1.msra.mxu0 %v5681
        %5891 = vmatprep.subr.mxu0 0.0
        %5892 = vmatpush1.msra.mxu0 %v5682
        %5893 = vmatprep.subr.mxu0 0.0
        %5894 = vmatpush1.msra.mxu0 %v5683
        %5895 = vmatprep.subr.mxu0 0.0
        %5896 = vmatpush1.msra.mxu0 %v5684
        %5897 = vmatprep.subr.mxu0 0.0
        %5898 = vmatpush1.msra.mxu0 %v5685
        %5899 = vmatprep.subr.mxu0 0.0
        %5900 = vmatpush1.msra.mxu0 %v5686
        %5901 = vmatprep.subr.mxu0 0.0
        %5902 = vmatpush1.msra.mxu0 %v5687
        %5903 = vmatprep.subr.mxu0 0.0
        %5904 = vmatpush1.msra.mxu0 %v5688
        %5905 = vmatprep.mubr.f32.mxu0 %v5564
        %5906 = vmatmul.mubr.f32.gmra.mrb[0].mxu0 %v5563
        %v5907 = vpop.f32.mrb[0].mxu0
        %v5908 = vadd.f32 %v5763, %v5907
        %v5909 = vpop.f32.mrb[0].mxu0
        %5910 = vmatprep.mubr.f32.mxu0 %v5568
        %5911 = vmatmul.mubr.f32.gmra.mrb[0].mxu0 %v5567
        %v5912 = vpop.f32.mrb[0].mxu0
        %v5913 = vadd.f32 %v5768, %v5912
        %v5914 = vpop.f32.mrb[0].mxu0
        %5915 = vmatprep.mubr.f32.mxu0 %v5572
        %5916 = vmatmul.mubr.f32.gmra.mrb[0].mxu0 %v5571
        %v5917 = vpop.f32.mrb[0].mxu0
        %v5918 = vadd.f32 %v5773, %v5917
        %v5919 = vpop.f32.mrb[0].mxu0
        %5920 = vmatprep.mubr.f32.mxu0 %v5576
        %5921 = vmatmul.mubr.f32.gmra.mrb[0].mxu0 %v5575
        %v5922 = vpop.f32.mrb[0].mxu0
        %v5923 = vadd.f32 %v5778, %v5922
        %v5924 = vpop.f32.mrb[0].mxu0
        %5925 = vmatprep.mubr.f32.mxu0 %v5580
        %5926 = vmatmul.mubr.f32.gmra.mrb[0].mxu0 %v5579
        %v5927 = vpop.f32.mrb[0].mxu0
        %v5928 = vadd.f32 %v5783, %v5927
        %v5929 = vpop.f32.mrb[0].mxu0
        %5930 = vmatprep.mubr.f32.mxu0 %v5584
        %5931 = vmatmul.mubr.f32.gmra.mrb[0].mxu0 %v5583
        %v5932 = vpop.f32.mrb[0].mxu0
        %v5933 = vadd.f32 %v5788, %v5932
        %v5934 = vpop.f32.mrb[0].mxu0
        %5935 = vmatprep.mubr.f32.mxu0 %v5588
        %5936 = vmatmul.mubr.f32.gmra.mrb[0].mxu0 %v5587
        %v5937 = vpop.f32.mrb[0].mxu0
        %v5938 = vadd.f32 %v5793, %v5937
        %v5939 = vpop.f32.mrb[0].mxu0
        %5940 = vmatprep.mubr.f32.mxu0 %v5592
        %5941 = vmatmul.mubr.f32.gmra.mrb[0].mxu0 %v5591
        %v5942 = vpop.f32.mrb[0].mxu0
        %v5943 = vadd.f32 %v5798, %v5942
        %v5944 = vpop.f32.mrb[0].mxu0
        %5945 = vmatprep.mubr.f32.mxu0 %v5596
        %5946 = vmatmul.mubr.f32.gmra.mrb[0].mxu0 %v5595
        %v5947 = vpop.f32.mrb[0].mxu0
        %v5948 = vadd.f32 %v5803, %v5947
        %v5949 = vpop.f32.mrb[0].mxu0
        %5950 = vmatprep.mubr.f32.mxu0 %v5600
        %5951 = vmatmul.mubr.f32.gmra.mrb[0].mxu0 %v5599
        %v5952 = vpop.f32.mrb[0].mxu0
        %v5953 = vadd.f32 %v5808, %v5952
        %v5954 = vpop.f32.mrb[0].mxu0
        %5955 = vmatprep.mubr.f32.mxu0 %v5604
        %5956 = vmatmul.mubr.f32.gmra.mrb[0].mxu0 %v5603
        %v5957 = vpop.f32.mrb[0].mxu0
        %v5958 = vadd.f32 %v5813, %v5957
        %v5959 = vpop.f32.mrb[0].mxu0
        %5960 = vmatprep.mubr.f32.mxu0 %v5608
        %5961 = vmatmul.mubr.f32.gmra.mrb[0].mxu0 %v5607
        %v5962 = vpop.f32.mrb[0].mxu0
        %v5963 = vadd.f32 %v5818, %v5962
        %v5964 = vpop.f32.mrb[0].mxu0
        %5965 = vmatprep.mubr.f32.mxu0 %v5612
        %5966 = vmatmul.mubr.f32.gmra.mrb[0].mxu0 %v5611
        %v5967 = vpop.f32.mrb[0].mxu0
        %v5968 = vadd.f32 %v5823, %v5967
        %v5969 = vpop.f32.mrb[0].mxu0
        %5970 = vmatprep.mubr.f32.mxu0 %v5616
        %5971 = vmatmul.mubr.f32.gmra.mrb[0].mxu0 %v5615
        %v5972 = vpop.f32.mrb[0].mxu0
        %v5973 = vadd.f32 %v5828, %v5972
        %v5974 = vpop.f32.mrb[0].mxu0
        %5975 = vmatprep.mubr.f32.mxu0 %v5620
        %5976 = vmatmul.mubr.f32.gmra.mrb[0].mxu0 %v5619
        %v5977 = vpop.f32.mrb[0].mxu0
        %v5978 = vadd.f32 %v5833, %v5977
        %v5979 = vpop.f32.mrb[0].mxu0
        %5980 = vmatprep.mubr.f32.mxu0 %v5624
        %5981 = vmatmul.mubr.f32.gmra.mrb[0].mxu0 %v5623
        %v5982 = vpop.f32.mrb[0].mxu0
        %v5983 = vadd.f32 %v5838, %v5982
        %v5984 = vpop.f32.mrb[0].mxu0
        %5985 = vdwg.mxu0
        %v5986 = vadd.f32 %v4915, %v5908
        %v5987 = vadd.f32 %v4916, %v5913
        %v5988 = vadd.f32 %v4917, %v5918
        %v5989 = vadd.f32 %v4918, %v5923
        %v5990 = vadd.f32 %v4919, %v5928
        %v5991 = vadd.f32 %v4920, %v5933
        %v5992 = vadd.f32 %v4921, %v5938
        %v5993 = vadd.f32 %v4922, %v5943
        %v5994 = vadd.f32 %v4923, %v5948
        %v5995 = vadd.f32 %v4924, %v5953
        %v5996 = vadd.f32 %v4925, %v5958
        %v5997 = vadd.f32 %v4926, %v5963
        %v5998 = vadd.f32 %v4927, %v5968
        %v5999 = vadd.f32 %v4928, %v5973
        %v6000 = vadd.f32 %v4929, %v5978
        %v6001 = vadd.f32 %v4930, %v5983
        %6002 = vst [vmem:[%s542] sm:$0xff] %v5986
        %6003 = vst [vmem:[%s542 + $0x8] sm:$0xff] %v5987
        %6004 = vst [vmem:[%s542 + $0x10] sm:$0xff] %v5988
        %6005 = vst [vmem:[%s542 + $0x18] sm:$0xff] %v5989
        %6006 = vst [vmem:[%s542 + $0x20] sm:$0xff] %v5990
        %6007 = vst [vmem:[%s542 + $0x28] sm:$0xff] %v5991
        %6008 = vst [vmem:[%s542 + $0x30] sm:$0xff] %v5992
        %6009 = vst [vmem:[%s542 + $0x38] sm:$0xff] %v5993
        %6010 = vst [vmem:[%s542 + $0x40] sm:$0xff] %v5994
        %6011 = vst [vmem:[%s542 + $0x48] sm:$0xff] %v5995
        %6012 = vst [vmem:[%s542 + $0x50] sm:$0xff] %v5996
        %6013 = vst [vmem:[%s542 + $0x58] sm:$0xff] %v5997
        %6014 = vst [vmem:[%s542 + $0x60] sm:$0xff] %v5998
        %6015 = vst [vmem:[%s542 + $0x68] sm:$0xff] %v5999
        %6016 = vst [vmem:[%s542 + $0x70] sm:$0xff] %v6000
        %6017 = vst [vmem:[%s542 + $0x78] sm:$0xff] %v6001
        %s6018 = sand.u32 %s319, 1
        %s6019 = scalar_lea.sflag [#allocation5], %s6018
        %s6020 = sand.u32 %s319, 1
        %s6021 = smul.addr %s6020, 128
        %s6022 = scalar_lea.vmem [#allocation15], %s6021
        // Predicated region
        $region101: #{tpu_custom_call.1} parent=71 // pred_check
          %p6023 = pneg %p329
        $region102: #{tpu_custom_call.1} parent=71 // pred_check_branch
          %6025 = sbr.rel (%p6023) target = $region104
        $region103: #{tpu_custom_call.1} parent=71 // pred_region
          %s6026 = smul.u32 2, %s33
          %s6028 = ssub.s32 2048, 2048
          %6029 = vsyncadd %s6019, %s6028
          %s6030 = smul.addr %s6026, 8
          %s6031 = smul.addr %s6030, 128
          %s6032 = scalar_lea.hbm %s13, %s6031
          %s6033 = sshll.u32 %s6022, 4
          %s6034 = int_to_ptr.vmem [resolvable:$true] %s6033
          %6039 = dma.vmem_to_hbm [thread:$0]  %s6034, 2048, %s6032, %s6019, 128, 128, 8
        $region104: #{tpu_custom_call.1} parent=71 // pred_fallthru
          _
      $region72: #{tpu_custom_call.1} parent=5 // pred_fallthru
        _
      %p6040 = scmp.le.s32.totalorder 2, %s28
      // Predicated region
      $region105: #{tpu_custom_call.1} parent=5 // pred_check
        %p6041 = pneg %p6040
      $region106: #{tpu_custom_call.1} parent=5 // pred_check_branch
        %6043 = sbr.rel (%p6041) target = $region108
      $region107: #{tpu_custom_call.1} parent=5 // pred_region
        %s6044 = ssub.s32 %s28, 2
        // Predicated region
        $region109: #{tpu_custom_call.1} parent=107 // pred_check
          %p6045 = pneg %p335
        $region110: #{tpu_custom_call.1} parent=107 // pred_check_branch
          %6047 = sbr.rel (%p6045) target = $region112
        $region111: #{tpu_custom_call.1} parent=107 // pred_region
          %s6048 = sand.u32 %s320, 1
          %s6049 = scalar_lea.sflag [#allocation5], %s6048
          %s6050 = sand.u32 %s320, 1
          %s6051 = smul.addr %s6050, 128
          %s6052 = scalar_lea.vmem [#allocation15], %s6051
          %6053 = dma.done %s6049, 2048
        $region112: #{tpu_custom_call.1} parent=107 // pred_fallthru
          _
      $region108: #{tpu_custom_call.1} parent=5 // pred_fallthru
        _
    $region6: #{tpu_custom_call.1} parent=1 // loop_footer
      %s32 = sadd.s32 1, %s28
    $region7: #{tpu_custom_call.1} parent=1 // loop_footer_branch
      %27 = sbr.rel target = $region3
    $region8: #{tpu_custom_call.1} parent=1 // loop_exit
      _
    %6054 = vsyncpa [#allocation4], 1
    %s6055 = scalar_lea.sflag [#allocation4], 1
    %6056 = vsyncpa %s6055, 1
    %6057 = vsyncpa [#allocation7], 1
    %6058 = vsyncpa [#allocation10], 1
    %6059 = vsyncpa [#allocation13], 1
    %6060 = vsyncpa [#allocation5], 1
    %s6061 = scalar_lea.sflag [#allocation5], 1
    %6062 = vsyncpa %s6061, 1

</llo_original>
